<compile_context>
chip_gen: v7x
topology: tpu7x:2x2x1
jax: 0.10.0
libtpu: 0.0.40
codegen_flags: <defaults>
</compile_context>

<pallas_src>
import functools
import numpy as np
import jax
import jax.numpy as jnp
from jax.experimental import pallas as pl
from jax.experimental.pallas import tpu as pltpu

# ----------------------------- small synthetic configuration -----------------------------
NUM_FEAT = 32            # num_feat
NUM_FRAME = 3            # num_frame (centre frame = NUM_FRAME // 2)
WINDOW = 8               # window_size
HEADS = 2                # num_heads per RSTB
FUSION_HEADS = 2         # fusion_num_heads
FUSION_DEPTH = 2         # fusion_depth
DEPTHS = (2, 2)          # depths (number of RSTB layers / blocks per layer)
MLP_RATIO = 2            # mlp_ratio
NUM_EXTRACT_BLOCK = 2    # num_extract_block (ResidualBlockNoBN)
DEF_GROUPS = 4           # deformable_groups


def _round_up(v, m):
    return (v + m - 1) // m * m


def _vmem_capacity_bytes():
    try:
        return int(pltpu.get_tpu_info().vmem_capacity_bytes)
    except Exception:
        return 64 * 1024 * 1024          # conservative default (safe on v7x too)


_VMEM_CAP = _vmem_capacity_bytes()
_VMEM_LIMIT = int(min(100 * 1024 * 1024, 0.75 * _VMEM_CAP))   # ~96 MiB v5e/v6e, ~48 MiB v7x
_CONV_BUDGET = _VMEM_LIMIT // 3
_ATTN_SCORE_BUDGET = int(min(4 * 1024 * 1024, _VMEM_CAP // 16))


def _apply_act(y, act):
    if act == "lrelu":
        return jnp.where(y >= 0.0, y, 0.1 * y)
    if act == "relu":
        return jnp.maximum(y, 0.0)
    if act == "gelu":
        # TODO(synk): tanh-approx GELU (PyTorch nn.GELU default is erf-based).
        return 0.5 * y * (1.0 + jnp.tanh(0.7978845608028654 * (y + 0.044715 * y * y * y)))
    return y


def _m_tiling(M):
    """Pad M to 8 (or 256) and tile with a divisor - never rounds up a full tile."""
    if M <= 1024:
        mp = _round_up(M, 8)
        return mp, mp
    mp = _round_up(M, 256)
    for cand in (2048, 1024, 512, 256):
        if mp % cand == 0:
            return mp, cand
    return mp, 256


# ----------------------------- Pallas kernel 1: fused matmul + bias + act ------------------
def _mm_kernel(x_ref, w_ref, b_ref, o_ref, *, act):
    y = jnp.dot(x_ref[...], w_ref[...], preferred_element_type=jnp.float32)
    y = _apply_act(y + b_ref[...], act)
    o_ref[...] = y.astype(o_ref.dtype)


@functools.partial(jax.jit, static_argnames=("act", "out_dtype"))
def matmul_bias_act(x, w, b, *, act="none", out_dtype=jnp.bfloat16):
    """y = act(x @ w + b);  x:[M,K] w:[K,N] b:[N].  bf16 operands / fp32 accumulation,
    unpadded N (block last dim == full array dim), bf16 output by default.
    TODO(synk): for N<<128 a lane-dense [M/4, 4N] output reinterpretation would also remove
    masked partial stores; bytes are already minimal so it is left as glue-free bf16 stores."""
    M, K = x.shape
    N = w.shape[1]
    Mp, TM = _m_tiling(M)
    xb = x.astype(jnp.bfloat16)
    if Mp != M:
        xb = jnp.pad(xb, ((0, Mp - M), (0, 0)))
    out = pl.pallas_call(
        functools.partial(_mm_kernel, act=act),
        out_shape=jax.ShapeDtypeStruct((Mp, N), out_dtype),
        grid=(Mp // TM,),
        in_specs=[
            pl.BlockSpec((TM, K), lambda i: (i, 0)),
            pl.BlockSpec((K, N), lambda i: (0, 0)),
            pl.BlockSpec((1, N), lambda i: (0, 0)),
        ],
        out_specs=pl.BlockSpec((TM, N), lambda i: (i, 0)),
        compiler_params=pltpu.CompilerParams(
            dimension_semantics=("parallel",), vmem_limit_bytes=_VMEM_LIMIT),
    )(xb, w.astype(jnp.bfloat16), b.astype(jnp.float32).reshape(1, N))
    if Mp != M:
        out = out[:M]
    return out


# ----------------------------- Pallas kernel 2: 3x3 conv (single K=9*Cin dot) --------------
def _conv_kernel(x_ref, w_ref, b_ref, *rest, OH, OW, KH, KW, act, has_res):
    if has_res:
        r_ref, o_ref = rest
    else:
        (o_ref,) = rest
    cin = x_ref.shape[3]
    cout = o_ref.shape[3]
    # stage all taps into one [OH*OW, KH*KW*Cin] buffer -> one big MXU contraction
    cols = [x_ref[0, ki:ki + OH, kj:kj + OW, :].reshape(OH * OW, cin)
            for ki in range(KH) for kj in range(KW)]
    patches = jnp.concatenate(cols, axis=-1)
    y = jnp.dot(patches, w_ref[...], preferred_element_type=jnp.float32) + b_ref[...]
    if has_res:
        y = y + r_ref[0].reshape(OH * OW, cout).astype(jnp.float32)
    y = _apply_act(y, act)
    o_ref[0] = y.reshape(OH, OW, cout).astype(o_ref.dtype)


@functools.partial(jax.jit, static_argnames=("act", "out_dtype"))
def conv2d(x, w, b, res=None, *, act="none", out_dtype=jnp.bfloat16):
    """'same' 3x3 (or kxk) conv, stride 1, NHWC.  The padded image (or a row band + halo)
    stays resident in VMEM; taps are staged and contracted with a single K=KH*KW*Cin dot.
    Optional fused residual add (res has the output shape).  No HBM im2col, ever."""
    KH, KW, Cin, Cout = w.shape
    B, H, W, _ = x.shape
    ph, pw = KH // 2, KW // 2
    Wp = W + 2 * pw
    xp = jnp.pad(x.astype(jnp.bfloat16), ((0, 0), (ph, ph), (pw, pw), (0, 0)))
    wf = w.reshape(KH * KW * Cin, Cout).astype(jnp.bfloat16)
    bf = b.astype(jnp.float32).reshape(1, Cout)

    def vmem_need(th):
        thp = th + 2 * ph
        return (2 * thp * Wp * Cin * 2 + KH * KW * Cin * Cout * 2
                + th * W * KH * KW * Cin * 2 + th * W * Cout * 4
                + 3 * th * W * Cout * 2)

    TH = H
    while vmem_need(TH) > _CONV_BUDGET and TH % 2 == 0 and TH > 8:
        TH //= 2

    if TH == H:
        xin, Bb = xp, B
        res_in = None if res is None else res.astype(jnp.bfloat16)
    else:
        # row-band tiling with halo (gathered once in JAX; retires the im2col fallback)
        nb = H // TH
        ridx = jnp.arange(nb)[:, None] * TH + jnp.arange(TH + 2 * ph)[None, :]
        xin = xp[:, ridx].reshape(B * nb, TH + 2 * ph, Wp, Cin)
        Bb = B * nb
        res_in = None if res is None else res.astype(jnp.bfloat16).reshape(B * nb, TH, W, Cout)

    has_res = res_in is not None
    in_specs = [
        pl.BlockSpec((1, TH + 2 * ph, Wp, Cin), lambda i: (i, 0, 0, 0)),
        pl.BlockSpec((KH * KW * Cin, Cout), lambda i: (0, 0)),
        pl.BlockSpec((1, Cout), lambda i: (0, 0)),
    ]
    args = [xin, wf, bf]
    if has_res:
        in_specs.append(pl.BlockSpec((1, TH, W, Cout), lambda i: (i, 0, 0, 0)))
        args.append(res_in)

    out = pl.pallas_call(
        functools.partial(_conv_kernel, OH=TH, OW=W, KH=KH, KW=KW, act=act, has_res=has_res),
        out_shape=jax.ShapeDtypeStruct((Bb, TH, W, Cout), out_dtype),
        grid=(Bb,),
        in_specs=in_specs,
        out_specs=pl.BlockSpec((1, TH, W, Cout), lambda i: (i, 0, 0, 0)),
        compiler_params=pltpu.CompilerParams(
            dimension_semantics=("parallel",), vmem_limit_bytes=_VMEM_LIMIT),
    )(*args)
    return out.reshape(B, H, W, Cout)


def conv1x1(x, w, b, *, act="none"):
    B, H, W, C = x.shape
    y = matmul_bias_act(x.reshape(B * H * W, C), w, b, act=act)
    return y.reshape(B, H, W, -1)


# ----------------------------- Pallas kernel 3: fused window attention ---------------------
def _attn_kernel(x_ref, qw_ref, qb_ref, pw_ref, pb_ref, g_ref, bt_ref, bias_ref, *rest,
                 heads, scale, masked):
    if masked:
        mask_ref, o_ref = rest
    else:
        (o_ref,) = rest
    Wb, T, C = x_ref.shape
    dh = C // heads
    # LayerNorm prologue (fp32), residual kept around
    xf = x_ref[...].astype(jnp.float32).reshape(Wb * T, C)
    mu = jnp.mean(xf, axis=-1, keepdims=True)
    var = jnp.mean((xf - mu) ** 2, axis=-1, keepdims=True)
    xn = ((xf - mu) * jax.lax.rsqrt(var + 1e-5) * g_ref[...] + bt_ref[...]).astype(jnp.bfloat16)
    # qkv projection once for all windows in the block
    qkv = jnp.dot(xn, qw_ref[...], preferred_element_type=jnp.float32) + qb_ref[...]
    qkv = qkv.astype(jnp.bfloat16)
    head_outs = []
    for h in range(heads):                                   # heads is tiny (static loop)
        q = qkv[:, h * dh:(h + 1) * dh].reshape(Wb, T, dh)
        k = qkv[:, C + h * dh:C + (h + 1) * dh].reshape(Wb, T, dh)
        v = qkv[:, 2 * C + h * dh:2 * C + (h + 1) * dh].reshape(Wb, T, dh)
        s = jnp.einsum("wqd,wkd->wqk", q, k, preferred_element_type=jnp.float32) * scale
        s = s + bias_ref[h][None]
        if masked:
            s = s + mask_ref[...]
        s = s - jnp.max(s, axis=-1, keepdims=True)
        p = jnp.exp(s)
        p = p * pl.reciprocal(jnp.sum(p, axis=-1, keepdims=True), approx=True)
        o = jnp.einsum("wqk,wkd->wqd", p.astype(jnp.bfloat16), v,
                       preferred_element_type=jnp.float32)
        head_outs.append(o.reshape(Wb * T, dh).astype(jnp.bfloat16))
    attn = jnp.concatenate(head_outs, axis=-1)               # [Wb*T, C]
    y = jnp.dot(attn, pw_ref[...], preferred_element_type=jnp.float32) + pb_ref[...]
    y = y + xf                                                # fused residual
    o_ref[...] = y.reshape(Wb, T, C).astype(o_ref.dtype)


def _pick_wb(nW, base, T):
    """Windows per grid step: largest divisor that fits the score budget and keeps >=2
    (ideally >=8) grid steps for pipelining / dual-TensorCore sharding."""
    per_win = 3 * T * T * 4
    best = 1
    for wb in range(1, base + 1):
        if base % wb or nW % wb:
            continue
        if wb * per_win > _ATTN_SCORE_BUDGET:
            continue
        steps = nW // wb
        if steps < 2 and nW >= 2:
            continue
        if steps >= min(8, nW):
            best = wb
    return best


@functools.partial(jax.jit, static_argnames=("heads", "scale", "nWp"))
def attn_block(xw, qkv_w, qkv_b, proj_w, proj_b, ln_g, ln_b, rel, mask, *, heads, scale, nWp):
    """Fused Swin attention:  out = x + proj(MHSA(LN(x))) over windowed tokens.
    xw:[nW,T,C] bf16 (pre-norm windows);  rel:[heads,T,T];  mask:[nWp,T,T] or None."""
    nW, T, C = xw.shape
    masked = mask is not None
    base = nWp if masked else nW
    Wb = _pick_wb(nW, base, T)
    x_spec = pl.BlockSpec((Wb, T, C), lambda i: (i, 0, 0))
    in_specs = [x_spec,
                pl.BlockSpec((C, 3 * C), lambda i: (0, 0)),
                pl.BlockSpec((1, 3 * C), lambda i: (0, 0)),
                pl.BlockSpec((C, C), lambda i: (0, 0)),
                pl.BlockSpec((1, C), lambda i: (0, 0)),
                pl.BlockSpec((1, C), lambda i: (0, 0)),
                pl.BlockSpec((1, C), lambda i: (0, 0)),
                pl.BlockSpec((heads, T, T), lambda i: (0, 0, 0))]
    args = [xw.astype(jnp.bfloat16),
            qkv_w.astype(jnp.bfloat16), qkv_b.astype(jnp.float32).reshape(1, 3 * C),
            proj_w.astype(jnp.bfloat16), proj_b.astype(jnp.float32).reshape(1, C),
            ln_g.astype(jnp.float32).reshape(1, C), ln_b.astype(jnp.float32).reshape(1, C),
            rel.astype(jnp.float32)]
    if masked:
        nmb = nWp // Wb
        in_specs.append(pl.BlockSpec((Wb, T, T), lambda i: (i % nmb, 0, 0)))
        args.append(mask.astype(jnp.float32))
    return pl.pallas_call(
        functools.partial(_attn_kernel, heads=heads, scale=scale, masked=masked),
        out_shape=jax.ShapeDtypeStruct((nW, T, C), jnp.bfloat16),
        grid=(nW // Wb,),
        in_specs=in_specs,
        out_specs=x_spec,
        compiler_params=pltpu.CompilerParams(
            dimension_semantics=("parallel",), vmem_limit_bytes=_VMEM_LIMIT),
    )(*args)


# ----------------------------- Pallas kernel 4: fused MLP (LN -> fc1 -> GELU -> fc2 -> +x) -
def _mlp_kernel(x_ref, w1_ref, b1_ref, w2_ref, b2_ref, g_ref, bt_ref, o_ref):
    xf = x_ref[...].astype(jnp.float32)
    mu = jnp.mean(xf, axis=-1, keepdims=True)
    var = jnp.mean((xf - mu) ** 2, axis=-1, keepdims=True)
    h = ((xf - mu) * jax.lax.rsqrt(var + 1e-5) * g_ref[...] + bt_ref[...]).astype(jnp.bfloat16)
    h = jnp.dot(h, w1_ref[...], preferred_element_type=jnp.float32) + b1_ref[...]
    h = _apply_act(h, "gelu").astype(jnp.bfloat16)
    y = jnp.dot(h, w2_ref[...], preferred_element_type=jnp.float32) + b2_ref[...]
    o_ref[...] = (y + xf).astype(o_ref.dtype)


@jax.jit
def mlp_block(x, fc1_w, fc1_b, fc2_w, fc2_b, ln_g, ln_b):
    """out = x + fc2(gelu(fc1(LN(x)))) over the last dim."""
    shp = x.shape
    C = shp[-1]
    Ch = fc1_w.shape[1]
    x2 = x.reshape(-1, C).astype(jnp.bfloat16)
    M = x2.shape[0]
    Mp, TM = _m_tiling(M)
    if Mp != M:
        x2 = jnp.pad(x2, ((0, Mp - M), (0, 0)))
    out = pl.pallas_call(
        _mlp_kernel,
        out_shape=jax.ShapeDtypeStruct((Mp, C), jnp.bfloat16),
        grid=(Mp // TM,),
        in_specs=[pl.BlockSpec((TM, C), lambda i: (i, 0)),
                  pl.BlockSpec((C, Ch), lambda i: (0, 0)),
                  pl.BlockSpec((1, Ch), lambda i: (0, 0)),
                  pl.BlockSpec((Ch, C), lambda i: (0, 0)),
                  pl.BlockSpec((1, C), lambda i: (0, 0)),
                  pl.BlockSpec((1, C), lambda i: (0, 0)),
                  pl.BlockSpec((1, C), lambda i: (0, 0))],
        out_specs=pl.BlockSpec((TM, C), lambda i: (i, 0)),
        compiler_params=pltpu.CompilerParams(
            dimension_semantics=("parallel",), vmem_limit_bytes=_VMEM_LIMIT),
    )(x2, fc1_w.astype(jnp.bfloat16), fc1_b.astype(jnp.float32).reshape(1, Ch),
      fc2_w.astype(jnp.bfloat16), fc2_b.astype(jnp.float32).reshape(1, C),
      ln_g.astype(jnp.float32).reshape(1, C), ln_b.astype(jnp.float32).reshape(1, C))
    if Mp != M:
        out = out[:M]
    return out.reshape(shp)


# ----------------------------- JAX glue (gathers / resize / norm) --------------------------
@jax.jit
def layer_norm(x, g, b):
    xf = x.astype(jnp.float32)
    mu = jnp.mean(xf, axis=-1, keepdims=True)
    var = jnp.mean((xf - mu) ** 2, axis=-1, keepdims=True)
    return ((xf - mu) * jax.lax.rsqrt(var + 1e-5) * g + b).astype(x.dtype)


def pixel_shuffle(x, r=2):
    B, H, W, Crr = x.shape
    C = Crr // (r * r)
    return x.reshape(B, H, W, C, r, r).transpose(0, 1, 4, 2, 5, 3).reshape(B, H * r, W * r, C)


@functools.partial(jax.jit, static_argnames=("oh", "ow", "align_corners"))
def resize_bilinear(x, *, oh, ow, align_corners):
    B, H, W, C = x.shape

    def coords(o, s):
        if align_corners:
            if o == 1:
                return jnp.zeros((o,), jnp.float32)
            return jnp.arange(o, dtype=jnp.float32) * ((s - 1) / (o - 1))
        c = (jnp.arange(o, dtype=jnp.float32) + 0.5) * (s / o) - 0.5
        return jnp.clip(c, 0.0, s - 1.0)

    ys, xs = coords(oh, H), coords(ow, W)
    y0 = jnp.floor(ys).astype(jnp.int32)
    x0 = jnp.floor(xs).astype(jnp.int32)
    y1 = jnp.minimum(y0 + 1, H - 1)
    x1 = jnp.minimum(x0 + 1, W - 1)
    wy = (ys - y0.astype(jnp.float32))[None, :, None, None]
    wx = (xs - x0.astype(jnp.float32))[None, None, :, None]
    a = x[:, y0][:, :, x0]
    bb = x[:, y0][:, :, x1]
    c = x[:, y1][:, :, x0]
    d = x[:, y1][:, :, x1]
    return (a * (1 - wx) + bb * wx) * (1 - wy) + (c * (1 - wx) + d * wx) * wy


def _bilinear_sample(img, sy, sx, padding_mode):
    B, H, W, _ = img.shape
    y0 = jnp.floor(sy)
    x0 = jnp.floor(sx)
    y1 = y0 + 1.0
    x1 = x0 + 1.0
    wy1 = sy - y0
    wx1 = sx - x0
    wy0 = 1.0 - wy1
    wx0 = 1.0 - wx1
    bidx = jnp.arange(B)[:, None, None]

    def gather(yy, xx):
        yi = jnp.clip(yy, 0.0, H - 1.0).astype(jnp.int32)
        xi = jnp.clip(xx, 0.0, W - 1.0).astype(jnp.int32)
        val = img[bidx, yi, xi]
        if padding_mode == "zeros":
            inb = (yy >= 0.0) & (yy <= H - 1.0) & (xx >= 0.0) & (xx <= W - 1.0)
            val = val * inb[..., None].astype(img.dtype)
        return val

    return (gather(y0, x0) * (wy0 * wx0)[..., None]
            + gather(y0, x1) * (wy0 * wx1)[..., None]
            + gather(y1, x0) * (wy1 * wx0)[..., None]
            + gather(y1, x1) * (wy1 * wx1)[..., None])


@jax.jit
def deform_sample(x, offset, mask):
    """x:[B,H,W,Cin]; offset:[B,H,W,dg,9,2]=(dy,dx); mask:[B,H,W,dg,9] -> bf16 [B,H,W,9*Cin].
    TODO(synk): accumulating the 3x3 contraction tap-by-tap would avoid this column tensor
    entirely; it is emitted in bf16 to halve the HBM blow-up."""
    B, H, W, Cin = x.shape
    dg = offset.shape[3]
    cg = Cin // dg
    xg = x.reshape(B, H, W, dg, cg)
    ys = jnp.arange(H, dtype=jnp.float32)[None, :, None]
    xs = jnp.arange(W, dtype=jnp.float32)[None, None, :]
    cols = []
    for k in range(9):
        ki, kj = k // 3, k % 3
        per_g = []
        for g in range(dg):
            sy = ys + (ki - 1) + offset[:, :, :, g, k, 0]
            sx = xs + (kj - 1) + offset[:, :, :, g, k, 1]
            v = _bilinear_sample(xg[:, :, :, g, :], sy, sx, "zeros")
            per_g.append(v * mask[:, :, :, g, k:k + 1])
        cols.append(jnp.concatenate(per_g, axis=-1).astype(jnp.bfloat16))
    return jnp.concatenate(cols, axis=-1)


# ----------------------------- window MSA wrappers -----------------------------------------
def _rel_pos_index_2d(ws):
    coords = np.stack(np.meshgrid(np.arange(ws), np.arange(ws), indexing="ij"))
    cf = coords.reshape(2, -1)
    rel = (cf[:, :, None] - cf[:, None, :]).transpose(1, 2, 0).astype(np.int64)
    rel[:, :, 0] += ws - 1
    rel[:, :, 1] += ws - 1
    rel[:, :, 0] *= 2 * ws - 1
    return rel.sum(-1)


def _rel_pos_index_3d(wt, ws):
    coords = np.stack(np.meshgrid(np.arange(wt), np.arange(ws), np.arange(ws), indexing="ij"))
    cf = coords.reshape(3, -1)
    rel = (cf[:, :, None] - cf[:, None, :]).transpose(1, 2, 0).astype(np.int64)
    rel[:, :, 0] += wt - 1
    rel[:, :, 1] += ws - 1
    rel[:, :, 2] += ws - 1
    rel[:, :, 0] *= (2 * ws - 1) * (2 * ws - 1)
    rel[:, :, 1] *= 2 * ws - 1
    return rel.sum(-1)


REL_IDX_2D = jnp.asarray(_rel_pos_index_2d(WINDOW))
REL_IDX_3D = jnp.asarray(_rel_pos_index_3d(NUM_FRAME, WINDOW))


def _region_ids(H, W, ws, shift):
    m = np.zeros((H, W), np.int32)
    cnt = 0
    for hs in (slice(0, -ws), slice(-ws, -shift), slice(-shift, None)):
        for wsl in (slice(0, -ws), slice(-ws, -shift), slice(-shift, None)):
            m[hs, wsl] = cnt
            cnt += 1
    nh, nw = H // ws, W // ws
    return m.reshape(nh, ws, nw, ws).transpose(0, 2, 1, 3).reshape(nh * nw, ws * ws)


@functools.lru_cache(maxsize=None)
def _shift_mask_2d(H, W, ws, shift):
    ids = _region_ids(H, W, ws, shift)
    return jnp.asarray(np.where(ids[:, :, None] != ids[:, None, :], -100.0, 0.0).astype(np.float32))


@functools.lru_cache(maxsize=None)
def _shift_mask_3d(H, W, ws, wt, shift):
    ids = np.tile(_region_ids(H, W, ws, shift), (1, wt))
    return jnp.asarray(np.where(ids[:, :, None] != ids[:, None, :], -100.0, 0.0).astype(np.float32))


def window_msa_2d(x, layer, shift, heads):
    """Returns x + attn(ln1(x)) (residual fused in the kernel).  x:[B,H,W,C] bf16."""
    B, H, W, C = x.shape
    ws = WINDOW
    T = ws * ws
    dh = C // heads
    xs = jnp.roll(x, (-shift, -shift), axis=(1, 2)) if shift > 0 else x
    nh, nw = H // ws, W // ws
    nWp = nh * nw
    # TODO(synk): the window partition / un-partition could be expressed as a (B, nh, nw)
    # BlockSpec gather to avoid these two HBM permutations.
    xw = xs.reshape(B, nh, ws, nw, ws, C).transpose(0, 1, 3, 2, 4, 5).reshape(B * nWp, T, C)
    rel = layer["rel_table"][REL_IDX_2D].transpose(2, 0, 1)
    mask = _shift_mask_2d(H, W, ws, shift) if shift > 0 else None
    o = attn_block(xw, layer["qkv_w"], layer["qkv_b"], layer["proj_w"], layer["proj_b"],
                   layer["ln1_g"], layer["ln1_b"], rel, mask,
                   heads=heads, scale=float(dh) ** -0.5, nWp=nWp)
    o = o.reshape(B, nh, nw, ws, ws, C).transpose(0, 1, 3, 2, 4, 5).reshape(B, H, W, C)
    return jnp.roll(o, (shift, shift), axis=(1, 2)) if shift > 0 else o


def window_msa_3d(x, layer, shift, heads):
    """Returns x + attn(ln1(x)) for (T, ws, ws) 3-D windows.  x:[B,T,H,W,C] bf16."""
    B, Tt, H, W, C = x.shape
    ws = WINDOW
    T3 = Tt * ws * ws
    dh = C // heads
    xs = jnp.roll(x, (-shift, -shift), axis=(2, 3)) if shift > 0 else x
    nh, nw = H // ws, W // ws
    nWp = nh * nw
    xw = xs.reshape(B, Tt, nh, ws, nw, ws, C).transpose(0, 2, 4, 1, 3, 5, 6).reshape(B * nWp, T3, C)
    rel = layer["rel_table"][REL_IDX_3D].transpose(2, 0, 1)
    mask = _shift_mask_3d(H, W, ws, Tt, shift) if shift > 0 else None
    o = attn_block(xw, layer["qkv_w"], layer["qkv_b"], layer["proj_w"], layer["proj_b"],
                   layer["ln1_g"], layer["ln1_b"], rel, mask,
                   heads=heads, scale=float(dh) ** -0.5, nWp=nWp)
    o = o.reshape(B, nh, nw, Tt, ws, ws, C).transpose(0, 3, 1, 4, 2, 5, 6).reshape(B, Tt, H, W, C)
    return jnp.roll(o, (shift, shift), axis=(2, 3)) if shift > 0 else o


def _mlp(layer, x):
    return mlp_block(x, layer["fc1_w"], layer["fc1_b"], layer["fc2_w"], layer["fc2_b"],
                     layer["ln2_g"], layer["ln2_b"])


def swin_layer_2d(layer, x, shift):
    x = window_msa_2d(x, layer, shift, HEADS)      # LN1 + MHSA + proj + residual fused
    x = _mlp(layer, x)                             # LN2 + MLP + residual fused
    return x


def rstb(lp, x):
    res = x
    for d, layer in enumerate(lp["blocks"]):
        x = swin_layer_2d(layer, x, 0 if d % 2 == 0 else WINDOW // 2)
    # resi_connection='1conv'; the RSTB residual is fused into the conv kernel
    return conv2d(x, lp["conv_w"], lp["conv_b"], res=res, act="none")


def forward_features(p, x):
    x = layer_norm(x, p["pe_g"], p["pe_b"])        # patch_embed (patch_size=1) + norm
    for lp in p["layers"]:
        x = rstb(lp, x)
    return layer_norm(x, p["norm_g"], p["norm_b"])


def swin_fusion(p, x):
    # TODO(synk): exact SwinFusion source unavailable; standard video-Swin layers with a
    # (num_frame, window, window) 3-D window are used.
    for d, layer in enumerate(p["layers"]):
        shift = 0 if d % 2 == 0 else WINDOW // 2
        x = window_msa_3d(x, layer, shift, FUSION_HEADS)
        x = _mlp(layer, x)
    return x


# ----------------------------- PCD alignment (deformable) ----------------------------------
def dcn_v2_pack(p, x, offset_feat, *, act="none"):
    """DCNv2Pack: modulated 3x3 deformable conv; offsets/masks predicted from offset_feat.
    TODO(synk): the bilinear sampling is a data-dependent gather -> plain JAX; the 9*Cin
    column contraction runs in the Pallas matmul kernel."""
    B, H, W, Cin = x.shape
    dg = DEF_GROUPS
    off = conv2d(offset_feat, p["off_w"], p["off_b"], act="none", out_dtype=jnp.float32)
    o1 = off[..., :9 * dg].reshape(B, H, W, dg, 9)
    o2 = off[..., 9 * dg:18 * dg].reshape(B, H, W, dg, 9)
    m = jax.nn.sigmoid(off[..., 18 * dg:]).reshape(B, H, W, dg, 9)
    # TODO(synk): (dy,dx)=(o1,o2) channel layout assumed; loading pretrained PyTorch weights
    # would require a verified permutation.
    offset = jnp.stack([o1, o2], axis=-1)
    cols = deform_sample(x, offset, m)                                      # bf16 [B,H,W,9*Cin]
    cout = p["w"].shape[-1]
    y = matmul_bias_act(cols.reshape(B * H * W, 9 * Cin),
                        p["w"].reshape(9 * Cin, cout), p["b"], act=act)
    return y.reshape(B, H, W, cout)


def pcd_align(p, nbr_l, ref_l):
    """EDVR pyramid-cascading deformable alignment (standard basicsr structure)."""
    up_off = None
    up_feat = None
    feat = None
    for i in (3, 2, 1):
        lp = p["l%d" % i]
        off = jnp.concatenate([nbr_l[i - 1], ref_l[i - 1]], axis=-1)
        off = conv2d(off, lp["oc1_w"], lp["oc1_b"], act="lrelu")
        if i == 3:
            off = conv2d(off, lp["oc2_w"], lp["oc2_b"], act="lrelu")
        else:
            off = conv2d(jnp.concatenate([off, up_off], axis=-1),
                         lp["oc2_w"], lp["oc2_b"], act="lrelu")
            off = conv2d(off, lp["oc3_w"], lp["oc3_b"], act="lrelu")
        if i == 3:
            feat = dcn_v2_pack(lp["dcn"], nbr_l[i - 1], off, act="lrelu")
        else:
            feat = dcn_v2_pack(lp["dcn"], nbr_l[i - 1], off, act="none")
            feat = conv2d(jnp.concatenate([feat, up_feat], axis=-1),
                          lp["fc_w"], lp["fc_b"], act="lrelu" if i > 1 else "none")
        if i > 1:
            H2, W2 = off.shape[1] * 2, off.shape[2] * 2
            up_off = (resize_bilinear(off, oh=H2, ow=W2, align_corners=False)
                      .astype(jnp.bfloat16) * 2.0)
            up_feat = resize_bilinear(feat, oh=H2, ow=W2,
                                      align_corners=False).astype(jnp.bfloat16)
    off = jnp.concatenate([feat, ref_l[0]], axis=-1)
    off = conv2d(off, p["cas_oc1_w"], p["cas_oc1_b"], act="lrelu")
    off = conv2d(off, p["cas_oc2_w"], p["cas_oc2_b"], act="lrelu")
    return dcn_v2_pack(p["cas_dcn"], feat, off, act="lrelu")


# ----------------------------- full forward pass --------------------------------------------
def forward(params, x):
    """x: [b, t, 3, h, w]  ->  [b, 3, 4h, 4w] (super-resolved centre frame)."""
    b, t, c, h, w = x.shape
    assert h % 4 == 0 and w % 4 == 0
    center = t // 2
    nf = NUM_FEAT
    frames = jnp.transpose(x, (0, 1, 3, 4, 2)).astype(jnp.float32).reshape(b * t, h, w, c)

    # feature pyramid (bf16 activations throughout)
    f1 = conv2d(frames, params["conv_first_w"], params["conv_first_b"], act="lrelu")
    for rb in params["extract"]:                                  # ResidualBlockNoBN (fused +x)
        inner = conv2d(f1, rb["w1"], rb["b1"], act="relu")
        f1 = conv2d(inner, rb["w2"], rb["b2"], res=f1, act="none")
    f2 = conv2d(f1, params["l2_1_w"], params["l2_1_b"], act="lrelu")[:, ::2, ::2, :]
    f2 = conv2d(f2, params["l2_2_w"], params["l2_2_b"], act="lrelu")
    f3 = conv2d(f2, params["l3_1_w"], params["l3_1_b"], act="lrelu")[:, ::2, ::2, :]
    f3 = conv2d(f3, params["l3_2_w"], params["l3_2_b"], act="lrelu")

    f1 = f1.reshape(b, t, h, w, nf)
    f2 = f2.reshape(b, t, h // 2, w // 2, nf)
    f3 = f3.reshape(b, t, h // 4, w // 4, nf)
    ref_l = [f1[:, center], f2[:, center], f3[:, center]]

    # PCD alignment per frame (jitted helpers are shape-cached -> traced once across frames)
    aligned = []
    for i in range(t):
        nbr_l = [f1[:, i], f2[:, i], f3[:, i]]
        aligned.append(pcd_align(params["pcd"], nbr_l, ref_l))
    al = jnp.stack(aligned, axis=1)                               # [b, t, h, w, nf]

    # spatial-temporal attention + fusion
    al = swin_fusion(params["fusion_att"], al)
    al = jnp.transpose(al, (0, 2, 3, 1, 4)).reshape(b, h, w, t * nf)   # t-major channels
    feat = conv1x1(al, params["fusion_w"], params["fusion_b"], act="none")

    # reconstruction trunk + upsampling (lrelu commutes with pixel_shuffle -> fused in conv)
    out = forward_features(params["body"], feat)
    out = pixel_shuffle(conv2d(out, params["up1_w"], params["up1_b"], act="lrelu"), 2)
    out = pixel_shuffle(conv2d(out, params["up2_w"], params["up2_b"], act="lrelu"), 2)
    out = conv2d(out, params["hr_w"], params["hr_b"], act="lrelu")
    out = conv2d(out, params["last_w"], params["last_b"], act="none", out_dtype=jnp.float32)

    xc = jnp.transpose(x[:, center], (0, 2, 3, 1)).astype(jnp.float32)
    base = resize_bilinear(xc, oh=4 * h, ow=4 * w, align_corners=False)
    out = out + base
    return jnp.transpose(out, (0, 3, 1, 2))                       # [b, 3, 4h, 4w]


# ----------------------------- deterministic parameter construction ------------------------
class _Keys:
    def __init__(self, key):
        self._key = key

    def __call__(self):
        self._key, sub = jax.random.split(self._key)
        return sub


def _conv_init(kg, kh, kw, cin, cout):
    std = 0.5 * (2.0 / (kh * kw * cin)) ** 0.5
    return (jax.random.normal(kg(), (kh, kw, cin, cout), jnp.float32) * std,
            jax.random.normal(kg(), (cout,), jnp.float32) * 0.01)


def _dense_init(kg, cin, cout):
    std = 0.5 * (1.0 / cin) ** 0.5
    return (jax.random.normal(kg(), (cin, cout), jnp.float32) * std,
            jax.random.normal(kg(), (cout,), jnp.float32) * 0.01)


def _swin_layer_init(kg, c, heads, rel_size):
    layer = {
        "ln1_g": jnp.ones((c,), jnp.float32), "ln1_b": jnp.zeros((c,), jnp.float32),
        "ln2_g": jnp.ones((c,), jnp.float32), "ln2_b": jnp.zeros((c,), jnp.float32),
        "rel_table": 0.02 * jax.random.normal(kg(), (rel_size, heads), jnp.float32),
    }
    layer["qkv_w"], layer["qkv_b"] = _dense_init(kg, c, 3 * c)
    layer["proj_w"], layer["proj_b"] = _dense_init(kg, c, c)
    layer["fc1_w"], layer["fc1_b"] = _dense_init(kg, c, MLP_RATIO * c)
    layer["fc2_w"], layer["fc2_b"] = _dense_init(kg, MLP_RATIO * c, c)
    return layer


def _dcn_init(kg, nf):
    d = {}
    d["off_w"], d["off_b"] = _conv_init(kg, 3, 3, nf, 27 * DEF_GROUPS)
    d["w"], d["b"] = _conv_init(kg, 3, 3, nf, nf)
    return d


def init_params(key):
    kg = _Keys(key)
    nf = NUM_FEAT
    p = {}
    p["conv_first_w"], p["conv_first_b"] = _conv_init(kg, 3, 3, 3, nf)
    p["extract"] = []
    for _ in range(NUM_EXTRACT_BLOCK):
        w1, b1 = _conv_init(kg, 3, 3, nf, nf)
        w2, b2 = _conv_init(kg, 3, 3, nf, nf)
        p["extract"].append({"w1": w1, "b1": b1, "w2": w2, "b2": b2})
    p["l2_1_w"], p["l2_1_b"] = _conv_init(kg, 3, 3, nf, nf)
    p["l2_2_w"], p["l2_2_b"] = _conv_init(kg, 3, 3, nf, nf)
    p["l3_1_w"], p["l3_1_b"] = _conv_init(kg, 3, 3, nf, nf)
    p["l3_2_w"], p["l3_2_b"] = _conv_init(kg, 3, 3, nf, nf)
    pcd = {}
    for lvl in (3, 2, 1):
        d = {}
        d["oc1_w"], d["oc1_b"] = _conv_init(kg, 3, 3, 2 * nf, nf)
        if lvl == 3:
            d["oc2_w"], d["oc2_b"] = _conv_init(kg, 3, 3, nf, nf)
        else:
            d["oc2_w"], d["oc2_b"] = _conv_init(kg, 3, 3, 2 * nf, nf)
            d["oc3_w"], d["oc3_b"] = _conv_init(kg, 3, 3, nf, nf)
            d["fc_w"], d["fc_b"] = _conv_init(kg, 3, 3, 2 * nf, nf)
        d["dcn"] = _dcn_init(kg, nf)
        pcd["l%d" % lvl] = d
    pcd["cas_oc1_w"], pcd["cas_oc1_b"] = _conv_init(kg, 3, 3, 2 * nf, nf)
    pcd["cas_oc2_w"], pcd["cas_oc2_b"] = _conv_init(kg, 3, 3, nf, nf)
    pcd["cas_dcn"] = _dcn_init(kg, nf)
    p["pcd"] = pcd
    rel3 = (2 * NUM_FRAME - 1) * (2 * WINDOW - 1) ** 2
    p["fusion_att"] = {"layers": [_swin_layer_init(kg, nf, FUSION_HEADS, rel3)
                                  for _ in range(FUSION_DEPTH)]}
    p["fusion_w"], p["fusion_b"] = _dense_init(kg, NUM_FRAME * nf, nf)
    body = {"pe_g": jnp.ones((nf,), jnp.float32), "pe_b": jnp.zeros((nf,), jnp.float32),
            "norm_g": jnp.ones((nf,), jnp.float32), "norm_b": jnp.zeros((nf,), jnp.float32),
            "layers": []}
    rel2 = (2 * WINDOW - 1) ** 2
    for depth in DEPTHS:
        lp = {"blocks": [_swin_layer_init(kg, nf, HEADS, rel2) for _ in range(depth)]}
        lp["conv_w"], lp["conv_b"] = _conv_init(kg, 3, 3, nf, nf)
        body["layers"].append(lp)
    p["body"] = body
    p["up1_w"], p["up1_b"] = _conv_init(kg, 3, 3, nf, 4 * nf)
    p["up2_w"], p["up2_b"] = _conv_init(kg, 3, 3, nf, 64 * 4)
    p["hr_w"], p["hr_b"] = _conv_init(kg, 3, 3, 64, 64)
    p["last_w"], p["last_b"] = _conv_init(kg, 3, 3, 64, 3)
    return p


# ----------------------------- main --------------------------------------------------------
if __name__ == "__main__":
    root = jax.random.PRNGKey(0)
    pkey, xkey = jax.random.split(root)
    params = init_params(pkey)
    # x: [batch, frames, channels, h, w]  (same NCHW frame convention as the PyTorch module)
    x = jax.random.uniform(xkey, (1, NUM_FRAME, 3, 16, 16), jnp.float32)
    y = forward(params, x)
    y = jax.block_until_ready(y)
    assert y.shape == (1, 3, 64, 64), y.shape
    assert bool(jnp.all(jnp.isfinite(y)))
    print("KERNEL_OK")
</pallas_src>

<mosaic_0001>
module attributes {stable_mosaic.version = 11 : i64} {
  func.func @_conv_kernel(%arg0: i32, %arg1: memref<1x18x18x3xbf16, #tpu.memory_space<vmem>>, %arg2: memref<27x32xbf16, #tpu.memory_space<vmem>>, %arg3: memref<1x32xf32, #tpu.memory_space<vmem>>, %arg4: memref<1x16x16x32xbf16, #tpu.memory_space<vmem>>) attributes {dimension_semantics = [#tpu.dimension_semantics<parallel>], iteration_bounds = array<i64: 3>, scalar_prefetch = 0 : i64, scratch_operands = 0 : i64, tpu.core_type = #tpu.core_type<tc>, window_params = [{transform_indices = @transform_0, window_bounds = array<i64: 1, 18, 18, 3>}, {pipeline_mode = #tpu.pipeline_mode<synchronous>, transform_indices = @transform_1, window_bounds = array<i64: 27, 32>}, {pipeline_mode = #tpu.pipeline_mode<synchronous>, transform_indices = @transform_2, window_bounds = array<i64: 1, 32>}, {transform_indices = @transform_3, window_bounds = array<i64: 1, 16, 16, 32>}]} {
    %c0 = arith.constant 0 : index
    %c0_0 = arith.constant 0 : index
    %c0_1 = arith.constant 0 : index
    %c0_2 = arith.constant 0 : index
    %0 = vector.load %arg1[%c0, %c0_0, %c0_1, %c0_2] : memref<1x18x18x3xbf16, #tpu.memory_space<vmem>>, vector<1x16x16x3xbf16>
    %1 = vector.shape_cast %0 : vector<1x16x16x3xbf16> to vector<16x16x3xbf16>
    %2 = vector.shape_cast %1 : vector<16x16x3xbf16> to vector<256x3xbf16>
    %c0_3 = arith.constant 0 : index
    %c0_4 = arith.constant 0 : index
    %c1 = arith.constant 1 : index
    %c0_5 = arith.constant 0 : index
    %3 = vector.load %arg1[%c0_3, %c0_4, %c1, %c0_5] : memref<1x18x18x3xbf16, #tpu.memory_space<vmem>>, vector<1x16x16x3xbf16>
    %4 = vector.shape_cast %3 : vector<1x16x16x3xbf16> to vector<16x16x3xbf16>
    %5 = vector.shape_cast %4 : vector<16x16x3xbf16> to vector<256x3xbf16>
    %c0_6 = arith.constant 0 : index
    %c0_7 = arith.constant 0 : index
    %c2 = arith.constant 2 : index
    %c0_8 = arith.constant 0 : index
    %6 = vector.load %arg1[%c0_6, %c0_7, %c2, %c0_8] : memref<1x18x18x3xbf16, #tpu.memory_space<vmem>>, vector<1x16x16x3xbf16>
    %7 = vector.shape_cast %6 : vector<1x16x16x3xbf16> to vector<16x16x3xbf16>
    %8 = vector.shape_cast %7 : vector<16x16x3xbf16> to vector<256x3xbf16>
    %c0_9 = arith.constant 0 : index
    %c1_10 = arith.constant 1 : index
    %c0_11 = arith.constant 0 : index
    %c0_12 = arith.constant 0 : index
    %9 = vector.load %arg1[%c0_9, %c1_10, %c0_11, %c0_12] : memref<1x18x18x3xbf16, #tpu.memory_space<vmem>>, vector<1x16x16x3xbf16>
    %10 = vector.shape_cast %9 : vector<1x16x16x3xbf16> to vector<16x16x3xbf16>
    %11 = vector.shape_cast %10 : vector<16x16x3xbf16> to vector<256x3xbf16>
    %c0_13 = arith.constant 0 : index
    %c1_14 = arith.constant 1 : index
    %c1_15 = arith.constant 1 : index
    %c0_16 = arith.constant 0 : index
    %12 = vector.load %arg1[%c0_13, %c1_14, %c1_15, %c0_16] : memref<1x18x18x3xbf16, #tpu.memory_space<vmem>>, vector<1x16x16x3xbf16>
    %13 = vector.shape_cast %12 : vector<1x16x16x3xbf16> to vector<16x16x3xbf16>
    %14 = vector.shape_cast %13 : vector<16x16x3xbf16> to vector<256x3xbf16>
    %c0_17 = arith.constant 0 : index
    %c1_18 = arith.constant 1 : index
    %c2_19 = arith.constant 2 : index
    %c0_20 = arith.constant 0 : index
    %15 = vector.load %arg1[%c0_17, %c1_18, %c2_19, %c0_20] : memref<1x18x18x3xbf16, #tpu.memory_space<vmem>>, vector<1x16x16x3xbf16>
    %16 = vector.shape_cast %15 : vector<1x16x16x3xbf16> to vector<16x16x3xbf16>
    %17 = vector.shape_cast %16 : vector<16x16x3xbf16> to vector<256x3xbf16>
    %c0_21 = arith.constant 0 : index
    %c2_22 = arith.constant 2 : index
    %c0_23 = arith.constant 0 : index
    %c0_24 = arith.constant 0 : index
    %18 = vector.load %arg1[%c0_21, %c2_22, %c0_23, %c0_24] : memref<1x18x18x3xbf16, #tpu.memory_space<vmem>>, vector<1x16x16x3xbf16>
    %19 = vector.shape_cast %18 : vector<1x16x16x3xbf16> to vector<16x16x3xbf16>
    %20 = vector.shape_cast %19 : vector<16x16x3xbf16> to vector<256x3xbf16>
    %c0_25 = arith.constant 0 : index
    %c2_26 = arith.constant 2 : index
    %c1_27 = arith.constant 1 : index
    %c0_28 = arith.constant 0 : index
    %21 = vector.load %arg1[%c0_25, %c2_26, %c1_27, %c0_28] : memref<1x18x18x3xbf16, #tpu.memory_space<vmem>>, vector<1x16x16x3xbf16>
    %22 = vector.shape_cast %21 : vector<1x16x16x3xbf16> to vector<16x16x3xbf16>
    %23 = vector.shape_cast %22 : vector<16x16x3xbf16> to vector<256x3xbf16>
    %c0_29 = arith.constant 0 : index
    %c2_30 = arith.constant 2 : index
    %c2_31 = arith.constant 2 : index
    %c0_32 = arith.constant 0 : index
    %24 = vector.load %arg1[%c0_29, %c2_30, %c2_31, %c0_32] : memref<1x18x18x3xbf16, #tpu.memory_space<vmem>>, vector<1x16x16x3xbf16>
    %25 = vector.shape_cast %24 : vector<1x16x16x3xbf16> to vector<16x16x3xbf16>
    %26 = vector.shape_cast %25 : vector<16x16x3xbf16> to vector<256x3xbf16>
    %27 = tpu.concatenate %2, %5, %8, %11, %14, %17, %20, %23, %26 in 1 : vector<256x3xbf16>, vector<256x3xbf16>, vector<256x3xbf16>, vector<256x3xbf16>, vector<256x3xbf16>, vector<256x3xbf16>, vector<256x3xbf16>, vector<256x3xbf16>, vector<256x3xbf16> -> vector<256x27xbf16>
    %c0_33 = arith.constant 0 : index
    %c0_34 = arith.constant 0 : index
    %28 = vector.load %arg2[%c0_33, %c0_34] : memref<27x32xbf16, #tpu.memory_space<vmem>>, vector<27x32xbf16>
    %cst = arith.constant dense<0.000000e+00> : vector<256x32xf32>
    %29 = tpu.matmul %27, %28, %cst {dimension_numbers = #tpu.dot_dimension_numbers<[1], [0], [0], [1], [0, 0, 1, 1], [], []>} : vector<256x27xbf16>, vector<27x32xbf16>, vector<256x32xf32> -> vector<256x32xf32>
    %c0_35 = arith.constant 0 : index
    %c0_36 = arith.constant 0 : index
    %30 = vector.load %arg3[%c0_35, %c0_36] : memref<1x32xf32, #tpu.memory_space<vmem>>, vector<1x32xf32>
    %31 = vector.broadcast %30 : vector<1x32xf32> to vector<256x32xf32>
    %32 = arith.addf %29, %31 : vector<256x32xf32>
    %cst_37 = arith.constant 0.000000e+00 : f32
    %33 = vector.broadcast %cst_37 : f32 to vector<256x32xf32>
    %34 = arith.cmpf oge, %32, %33 : vector<256x32xf32>
    %cst_38 = arith.constant 1.000000e-01 : f32
    %35 = vector.broadcast %cst_38 : f32 to vector<256x32xf32>
    %36 = arith.mulf %35, %32 : vector<256x32xf32>
    %37 = arith.select %34, %32, %36 : vector<256x32xi1>, vector<256x32xf32>
    %38 = vector.shape_cast %37 : vector<256x32xf32> to vector<16x16x32xf32>
    %39 = arith.truncf %38 : vector<16x16x32xf32> to vector<16x16x32xbf16>
    %c0_39 = arith.constant 0 : index
    %c0_40 = arith.constant 0 : index
    %c0_41 = arith.constant 0 : index
    %c0_42 = arith.constant 0 : index
    %40 = vector.load %arg4[%c0_39, %c0_40, %c0_41, %c0_42] : memref<1x16x16x32xbf16, #tpu.memory_space<vmem>>, vector<1x16x16x32xbf16>
    %41 = vector.shape_cast %40 : vector<1x16x16x32xbf16> to vector<16x16x32xbf16>
    %42 = vector.shape_cast %39 : vector<16x16x32xbf16> to vector<1x16x16x32xbf16>
    tpu.vector_store %arg4[%c0_39, %c0_40, %c0_41, %c0_42], %42 {strides = array<i32>} : memref<1x16x16x32xbf16, #tpu.memory_space<vmem>>, vector<1x16x16x32xbf16>,
    return
  }
  func.func @transform_0(%arg0: i32) -> (i32, i32, i32, i32) {
    %c0_i32 = arith.constant 0 : i32
    %c0_i32_0 = arith.constant 0 : i32
    %c0_i32_1 = arith.constant 0 : i32
    %c0_i32_2 = arith.constant 0 : i32
    return %arg0, %c0_i32, %c0_i32_0, %c0_i32_1 : i32, i32, i32, i32
  }
  func.func @transform_1(%arg0: i32) -> (i32, i32) {
    %c0_i32 = arith.constant 0 : i32
    %c0_i32_0 = arith.constant 0 : i32
    %c0_i32_1 = arith.constant 0 : i32
    return %c0_i32, %c0_i32_0 : i32, i32
  }
  func.func @transform_2(%arg0: i32) -> (i32, i32) {
    %c0_i32 = arith.constant 0 : i32
    %c0_i32_0 = arith.constant 0 : i32
    %c0_i32_1 = arith.constant 0 : i32
    return %c0_i32, %c0_i32_0 : i32, i32
  }
  func.func @transform_3(%arg0: i32) -> (i32, i32, i32, i32) {
    %c0_i32 = arith.constant 0 : i32
    %c0_i32_0 = arith.constant 0 : i32
    %c0_i32_1 = arith.constant 0 : i32
    %c0_i32_2 = arith.constant 0 : i32
    return %arg0, %c0_i32, %c0_i32_0, %c0_i32_1 : i32, i32, i32, i32
  }
}

</mosaic_0001>

<llo_original>
// kernel: conv2d.1
$region0: #{conv2d.1}
  #allocation0 [shape = 'u32[]', space=smem, size = 0x4, offset = 0x4, fixed_abs, tag = 'smem constant byte address 0x4 - core index']
  #allocation1 [shape = 'u32[144,128]{1,0:T(1,128)}', space=vmem, size = 0x12000, scoped, tag = 'internal scratch']
  %s0 = inlined_call_operand.vmem [shape: bf16[3,18,18,3], index: 0, kind: input, shape index: {}]
  %s1 = inlined_call_operand.vmem [shape: bf16[27,32], index: 1, kind: input, shape index: {}]
  %s2 = inlined_call_operand.vmem [shape: f32[1,32], index: 2, kind: input, shape index: {}]
  %s3 = inlined_call_operand.hbm [shape: bf16[3,16,16,32], index: 3, kind: output, shape index: {}]
  %s4 = sld [smem:[#allocation0]]
  $region45: #{conv2d.1} parent=0
    _
  %s6 = ssub.s32 1, %s4
  %s7 = scalar_select 0, %s6, %s4
  $region1: #{conv2d.1} parent=0
    #allocation2 [shape = 'u8[131072]{0}', space=vmem, size = 0x20000, scoped, tag = 'output window, operand 0']
    #allocation3 [shape = 's32[2]{0}', space=sflag, size = 0x8, scoped, tag = 'scoped memory for conv2d.1']
    %8 = vsyncpa [#allocation3], 0
    %s9 = scalar_lea.sflag [#allocation3], 1
    %10 = vsyncpa %s9, 0
    loop: start=0, step=1, limit=5
    $region2: #{conv2d.1} parent=1 // loop_pre_header
      _
    $region3: #{conv2d.1} parent=1 // loop_header
      %s12 = sphi 0, %s16
      %p13 = scmp.ge.s32.totalorder %s12, 5
      %s22 = sphi 0, %s24
      %s25 = sphi 0, %s22
      %s26 = sphi 0, %s25
      %s42 = sphi 0, %s26
      %s46 = sphi 0, %s46
      %s48 = sphi 0, %s46
      %s49 = sphi 0, %s48
      %s63 = sphi 0, %s49
      %s67 = sphi 0, %s67
      %s69 = sphi 0, %s67
      %s70 = sphi 0, %s69
      %s84 = sphi 0, %s70
      %s90 = sphi 0, %s92
      %s93 = sphi 0, %s90
      %s94 = sphi 0, %s93
      %s110 = sphi 0, %s94
    $region4: #{conv2d.1} parent=1 // loop_header_branch
      %15 = sbr.rel (%p13) target = $region8
    $region5: #{conv2d.1} parent=1 // loop_body
      %s17 = ssub.s32 %s12, 1
      %s18 = ssub.s32 %s12, 2
      %s19 = sadd.s32 %s12, 1
      %s20 = ssub.s32 %s12, %s19
      %p21 = scmp.eq.s32.totalorder %s20, 0
      %s23 = sadd.s32 %s22, 1
      %s24 = scalar_select %p21, %s22, %s23
      %p27 = pneg %p21
      %p28 = scmp.eq.s32.totalorder %s12, 2
      %p29 = por %p27, %p28
      %p30 = scmp.ne.s32.totalorder %s22, %s25
      %p31 = scmp.eq.s32.totalorder %s12, 0
      %p32 = por %p30, %p31
      %p33 = scmp.ne.s32.totalorder %s22, %s25
      %p34 = scmp.eq.s32.totalorder %s17, 2
      %p35 = por %p33, %p34
      %p36 = scmp.ne.s32.totalorder %s25, %s26
      %p37 = scmp.eq.s32.totalorder %s17, 0
      %p38 = por %p36, %p37
      %p39 = scmp.ne.s32.totalorder %s25, %s26
      %p40 = scmp.eq.s32.totalorder %s18, 2
      %p41 = por %p39, %p40
      %p43 = scmp.ne.s32.totalorder %s26, %s42
      %p44 = scmp.eq.s32.totalorder %s18, 0
      %p45 = por %p43, %p44
      %s47 = sadd.s32 %s46, 1
      %p50 = scmp.eq.s32.totalorder %s12, 2
      %p51 = scmp.ne.s32.totalorder %s46, %s48
      %p52 = scmp.eq.s32.totalorder %s12, 0
      %p53 = por %p51, %p52
      %p54 = scmp.ne.s32.totalorder %s46, %s48
      %p55 = scmp.eq.s32.totalorder %s17, 2
      %p56 = por %p54, %p55
      %p57 = scmp.ne.s32.totalorder %s48, %s49
      %p58 = scmp.eq.s32.totalorder %s17, 0
      %p59 = por %p57, %p58
      %p60 = scmp.ne.s32.totalorder %s48, %s49
      %p61 = scmp.eq.s32.totalorder %s18, 2
      %p62 = por %p60, %p61
      %p64 = scmp.ne.s32.totalorder %s49, %s63
      %p65 = scmp.eq.s32.totalorder %s18, 0
      %p66 = por %p64, %p65
      %s68 = sadd.s32 %s67, 1
      %p71 = scmp.eq.s32.totalorder %s12, 2
      %p72 = scmp.ne.s32.totalorder %s67, %s69
      %p73 = scmp.eq.s32.totalorder %s12, 0
      %p74 = por %p72, %p73
      %p75 = scmp.ne.s32.totalorder %s67, %s69
      %p76 = scmp.eq.s32.totalorder %s17, 2
      %p77 = por %p75, %p76
      %p78 = scmp.ne.s32.totalorder %s69, %s70
      %p79 = scmp.eq.s32.totalorder %s17, 0
      %p80 = por %p78, %p79
      %p81 = scmp.ne.s32.totalorder %s69, %s70
      %p82 = scmp.eq.s32.totalorder %s18, 2
      %p83 = por %p81, %p82
      %p85 = scmp.ne.s32.totalorder %s70, %s84
      %p86 = scmp.eq.s32.totalorder %s18, 0
      %p87 = por %p85, %p86
      %s88 = ssub.s32 %s12, %s19
      %p89 = scmp.eq.s32.totalorder %s88, 0
      %s91 = sadd.s32 %s90, 1
      %s92 = scalar_select %p89, %s90, %s91
      %p95 = pneg %p89
      %p96 = scmp.eq.s32.totalorder %s12, 2
      %p97 = por %p95, %p96
      %p98 = scmp.ne.s32.totalorder %s90, %s93
      %p99 = scmp.eq.s32.totalorder %s12, 0
      %p100 = por %p98, %p99
      %p101 = scmp.ne.s32.totalorder %s90, %s93
      %p102 = scmp.eq.s32.totalorder %s17, 2
      %p103 = por %p101, %p102
      %p104 = scmp.ne.s32.totalorder %s93, %s94
      %p105 = scmp.eq.s32.totalorder %s17, 0
      %p106 = por %p104, %p105
      %p107 = scmp.ne.s32.totalorder %s93, %s94
      %p108 = scmp.eq.s32.totalorder %s18, 2
      %p109 = por %p107, %p108
      %p111 = scmp.ne.s32.totalorder %s94, %s110
      %p112 = scmp.eq.s32.totalorder %s18, 0
      %p113 = por %p111, %p112
      %p114 = scmp.le.s32.totalorder 1, %s12
      %p115 = scmp.lt.s32.totalorder %s12, 4
      %p116 = pnand %p114, %p115
      %p117 = pneg %p116
      // Predicated region
      $region9: #{conv2d.1} parent=5 // pred_check
        _
      $region10: #{conv2d.1} parent=5 // pred_check_branch
        %119 = sbr.rel (%p116) target = $region12
      $region11: #{conv2d.1} parent=5 // pred_region
        %s120 = ssub.s32 %s12, 1
        // Predicated region
        $region13: #{conv2d.1} parent=11 // pred_check
          %p121 = pneg %p59
        $region14: #{conv2d.1} parent=11 // pred_check_branch
          %123 = sbr.rel (%p121) target = $region16
        $region15: #{conv2d.1} parent=11 // pred_region
          _
        $region16: #{conv2d.1} parent=11 // pred_fallthru
          _
        // Predicated region
        $region17: #{conv2d.1} parent=11 // pred_check
          %p124 = pneg %p80
        $region18: #{conv2d.1} parent=11 // pred_check_branch
          %126 = sbr.rel (%p124) target = $region20
        $region19: #{conv2d.1} parent=11 // pred_region
          _
        $region20: #{conv2d.1} parent=11 // pred_fallthru
          _
      $region12: #{conv2d.1} parent=5 // pred_fallthru
        _
      %p127 = scmp.lt.s32.totalorder %s12, 3
      // Predicated region
      $region21: #{conv2d.1} parent=5 // pred_check
        %p128 = pneg %p127
      $region22: #{conv2d.1} parent=5 // pred_check_branch
        %130 = sbr.rel (%p128) target = $region24
      $region23: #{conv2d.1} parent=5 // pred_region
        // Predicated region
        $region25: #{conv2d.1} parent=23 // pred_check
          %p131 = pneg %p32
        $region26: #{conv2d.1} parent=23 // pred_check_branch
          %133 = sbr.rel (%p131) target = $region28
        $region27: #{conv2d.1} parent=23 // pred_region
          %p134 = scmp.lt.s32.totalorder %s12, 2
          %s135 = scalar_select %p134, %s12, 2
          %s136 = smul.addr %s135, 54
          %s137 = smul.addr %s136, 4
          %s138 = scalar_lea.vmem %s0, %s137
        $region28: #{conv2d.1} parent=23 // pred_fallthru
          _
      $region24: #{conv2d.1} parent=5 // pred_fallthru
        _
      %p139 = scmp.le.s32.totalorder 1, %s12
      %p140 = scmp.lt.s32.totalorder %s12, 4
      %p141 = pnand %p139, %p140
      %p142 = pneg %p141
      // Predicated region
      $region29: #{conv2d.1} parent=5 // pred_check
        _
      $region30: #{conv2d.1} parent=5 // pred_check_branch
        %144 = sbr.rel (%p141) target = $region32
      $region31: #{conv2d.1} parent=5 // pred_region
        %s145 = ssub.s32 %s12, 1
        %p146 = scmp.lt.s32.totalorder %s17, 2
        %s147 = scalar_select %p146, %s17, 2
        %s148 = smul.addr %s147, 54
        %s149 = smul.addr %s148, 4
        %s150 = scalar_lea.vmem %s0, %s149
        %p151 = pneg %p38
        %p152 = pneg %p35
        %p153 = pneg %p59
        %p154 = pneg %p56
        %p155 = pneg %p80
        %p156 = pneg %p77
        %p157 = pneg %p106
        %p158 = pneg %p103
        %s159 = sand.u32 %s93, 1
        %s160 = scalar_lea.sflag [#allocation3], %s159
        %s161 = sand.u32 %s93, 1
        %s162 = smul.addr %s161, 128
        %s163 = scalar_lea.vmem [#allocation2], %s162
        %p164 = scmp.lt.s32.totalorder %s17, 2
        %s165 = scalar_select %p164, %s17, 2
        %s166 = smul.addr %s165, 54
        %s167 = smul.addr %s166, 4
        %s168 = scalar_lea.vmem %s0, %s167
        %v170 = vld [vmem:[%s168] sm:$0xf]
        %v171 = vld [vmem:[%s168 + $0x4] sm:$0xf]
        %v172 = vld [vmem:[%s168 + $0xc] sm:$0xf]
        %v173 = vld [vmem:[%s168 + $0x10] sm:$0xf]
        %v174 = vld [vmem:[%s168 + $0x18] sm:$0xf]
        %v175 = vld [vmem:[%s168 + $0x1c] sm:$0xf]
        %v176 = vld [vmem:[%s168 + $0x24] sm:$0xf]
        %v177 = vld [vmem:[%s168 + $0x28] sm:$0xf]
        %v178 = vld [vmem:[%s168 + $0x30] sm:$0xf]
        %v179 = vld [vmem:[%s168 + $0x34] sm:$0xf]
        %v180 = vld [vmem:[%s168 + $0x3c] sm:$0xf]
        %v181 = vld [vmem:[%s168 + $0x40] sm:$0xf]
        %v182 = vld [vmem:[%s168 + $0x48] sm:$0xf]
        %v183 = vld [vmem:[%s168 + $0x4c] sm:$0xf]
        %v184 = vld [vmem:[%s168 + $0x54] sm:$0xf]
        %v185 = vld [vmem:[%s168 + $0x58] sm:$0xf]
        %v186 = vld [vmem:[%s168 + $0x60] sm:$0xf]
        %v187 = vld [vmem:[%s168 + $0x64] sm:$0xf]
        %v188 = vld [vmem:[%s168 + $0x6c] sm:$0xf]
        %v189 = vld [vmem:[%s168 + $0x70] sm:$0xf]
        %v190 = vld [vmem:[%s168 + $0x78] sm:$0xf]
        %v191 = vld [vmem:[%s168 + $0x7c] sm:$0xf]
        %v192 = vld [vmem:[%s168 + $0x84] sm:$0xf]
        %v193 = vld [vmem:[%s168 + $0x88] sm:$0xf]
        %v194 = vld [vmem:[%s168 + $0x90] sm:$0xf]
        %v195 = vld [vmem:[%s168 + $0x94] sm:$0xf]
        %v196 = vld [vmem:[%s168 + $0x9c] sm:$0xf]
        %v197 = vld [vmem:[%s168 + $0xa0] sm:$0xf]
        %v198 = vld [vmem:[%s168 + $0xa8] sm:$0xf]
        %v199 = vld [vmem:[%s168 + $0xac] sm:$0xf]
        %v200 = vld [vmem:[%s168 + $0xb4] sm:$0xf]
        %v201 = vld [vmem:[%s168 + $0xb8] sm:$0xf]
        %v202 = vld [vmem:[%s168 + $0x8] sm:$0x1]
        %v203 = vld [vmem:[%s168 + $0x14] sm:$0x1]
        %v204 = vld [vmem:[%s168 + $0x20] sm:$0x1]
        %v205 = vld [vmem:[%s168 + $0x2c] sm:$0x1]
        %v206 = vld [vmem:[%s168 + $0x38] sm:$0x1]
        %v207 = vld [vmem:[%s168 + $0x44] sm:$0x1]
        %v208 = vld [vmem:[%s168 + $0x50] sm:$0x1]
        %v209 = vld [vmem:[%s168 + $0x5c] sm:$0x1]
        %v210 = vld [vmem:[%s168 + $0x68] sm:$0x1]
        %v211 = vld [vmem:[%s168 + $0x74] sm:$0x1]
        %v212 = vld [vmem:[%s168 + $0x80] sm:$0x1]
        %v213 = vld [vmem:[%s168 + $0x8c] sm:$0x1]
        %v214 = vld [vmem:[%s168 + $0x98] sm:$0x1]
        %v215 = vld [vmem:[%s168 + $0xa4] sm:$0x1]
        %v216 = vld [vmem:[%s168 + $0xb0] sm:$0x1]
        %v217 = vld [vmem:[%s168 + $0xbc] sm:$0x1]
        %vm218 = vsmask.f32 3328
        %vm219 = vsmask.f32 7440
        %vm220 = vmor %vm218, %vm219
        %v222 = vshrl.u32 %v170, 16
        %v224 = vrot.slane %v222, 4
        %v225 = vshll.u32 %v170, 16
        %v227 = vrot.slane %v225, 5
        %v228 = vor.u32 %v224, %v227
        %v229 = vrot.slane %v228, 4
        %v231 = vshll.u32 %v171, 16
        %v233 = vrot.slane %v231, 5
        %v234 = vsel %vm220, %v229, %v233
        %v235 = vshrl.u32 %v171, 16
        %v237 = vrot.slane %v235, 4
        %v238 = vor.u32 %v237, %v233
        %v239 = vrot.slane %v238, 4
        %v241 = vshll.u32 %v202, 16
        %v243 = vrot.slane %v241, 5
        %v244 = vsel %vm220, %v239, %v243
        %v246 = vshrl.u32 %v172, 16
        %v248 = vrot.slane %v246, 4
        %v249 = vshll.u32 %v172, 16
        %v251 = vrot.slane %v249, 5
        %v252 = vor.u32 %v248, %v251
        %v253 = vrot.slane %v252, 4
        %v255 = vshll.u32 %v173, 16
        %v257 = vrot.slane %v255, 5
        %v258 = vsel %vm220, %v253, %v257
        %v259 = vshrl.u32 %v173, 16
        %v261 = vrot.slane %v259, 4
        %v262 = vor.u32 %v261, %v257
        %v263 = vrot.slane %v262, 4
        %v265 = vshll.u32 %v203, 16
        %v267 = vrot.slane %v265, 5
        %v268 = vsel %vm220, %v263, %v267
        %v270 = vshrl.u32 %v174, 16
        %v272 = vrot.slane %v270, 4
        %v273 = vshll.u32 %v174, 16
        %v275 = vrot.slane %v273, 5
        %v276 = vor.u32 %v272, %v275
        %v277 = vrot.slane %v276, 4
        %v279 = vshll.u32 %v175, 16
        %v281 = vrot.slane %v279, 5
        %v282 = vsel %vm220, %v277, %v281
        %v283 = vshrl.u32 %v175, 16
        %v285 = vrot.slane %v283, 4
        %v286 = vor.u32 %v285, %v281
        %v287 = vrot.slane %v286, 4
        %v289 = vshll.u32 %v204, 16
        %v291 = vrot.slane %v289, 5
        %v292 = vsel %vm220, %v287, %v291
        %v294 = vshrl.u32 %v176, 16
        %v296 = vrot.slane %v294, 4
        %v297 = vshll.u32 %v176, 16
        %v299 = vrot.slane %v297, 5
        %v300 = vor.u32 %v296, %v299
        %v301 = vrot.slane %v300, 4
        %v303 = vshll.u32 %v177, 16
        %v305 = vrot.slane %v303, 5
        %v306 = vsel %vm220, %v301, %v305
        %v307 = vshrl.u32 %v177, 16
        %v309 = vrot.slane %v307, 4
        %v310 = vor.u32 %v309, %v305
        %v311 = vrot.slane %v310, 4
        %v313 = vshll.u32 %v205, 16
        %v315 = vrot.slane %v313, 5
        %v316 = vsel %vm220, %v311, %v315
        %v318 = vshrl.u32 %v178, 16
        %v320 = vrot.slane %v318, 4
        %v321 = vshll.u32 %v178, 16
        %v323 = vrot.slane %v321, 5
        %v324 = vor.u32 %v320, %v323
        %v325 = vrot.slane %v324, 4
        %v327 = vshll.u32 %v179, 16
        %v329 = vrot.slane %v327, 5
        %v330 = vsel %vm220, %v325, %v329
        %v331 = vshrl.u32 %v179, 16
        %v333 = vrot.slane %v331, 4
        %v334 = vor.u32 %v333, %v329
        %v335 = vrot.slane %v334, 4
        %v337 = vshll.u32 %v206, 16
        %v339 = vrot.slane %v337, 5
        %v340 = vsel %vm220, %v335, %v339
        %v342 = vshrl.u32 %v180, 16
        %v344 = vrot.slane %v342, 4
        %v345 = vshll.u32 %v180, 16
        %v347 = vrot.slane %v345, 5
        %v348 = vor.u32 %v344, %v347
        %v349 = vrot.slane %v348, 4
        %v351 = vshll.u32 %v181, 16
        %v353 = vrot.slane %v351, 5
        %v354 = vsel %vm220, %v349, %v353
        %v355 = vshrl.u32 %v181, 16
        %v357 = vrot.slane %v355, 4
        %v358 = vor.u32 %v357, %v353
        %v359 = vrot.slane %v358, 4
        %v361 = vshll.u32 %v207, 16
        %v363 = vrot.slane %v361, 5
        %v364 = vsel %vm220, %v359, %v363
        %v366 = vshrl.u32 %v182, 16
        %v368 = vrot.slane %v366, 4
        %v369 = vshll.u32 %v182, 16
        %v371 = vrot.slane %v369, 5
        %v372 = vor.u32 %v368, %v371
        %v373 = vrot.slane %v372, 4
        %v375 = vshll.u32 %v183, 16
        %v377 = vrot.slane %v375, 5
        %v378 = vsel %vm220, %v373, %v377
        %v379 = vshrl.u32 %v183, 16
        %v381 = vrot.slane %v379, 4
        %v382 = vor.u32 %v381, %v377
        %v383 = vrot.slane %v382, 4
        %v385 = vshll.u32 %v208, 16
        %v387 = vrot.slane %v385, 5
        %v388 = vsel %vm220, %v383, %v387
        %v390 = vshrl.u32 %v184, 16
        %v392 = vrot.slane %v390, 4
        %v393 = vshll.u32 %v184, 16
        %v395 = vrot.slane %v393, 5
        %v396 = vor.u32 %v392, %v395
        %v397 = vrot.slane %v396, 4
        %v399 = vshll.u32 %v185, 16
        %v401 = vrot.slane %v399, 5
        %v402 = vsel %vm220, %v397, %v401
        %v403 = vshrl.u32 %v185, 16
        %v405 = vrot.slane %v403, 4
        %v406 = vor.u32 %v405, %v401
        %v407 = vrot.slane %v406, 4
        %v409 = vshll.u32 %v209, 16
        %v411 = vrot.slane %v409, 5
        %v412 = vsel %vm220, %v407, %v411
        %v414 = vshrl.u32 %v186, 16
        %v416 = vrot.slane %v414, 4
        %v417 = vshll.u32 %v186, 16
        %v419 = vrot.slane %v417, 5
        %v420 = vor.u32 %v416, %v419
        %v421 = vrot.slane %v420, 4
        %v423 = vshll.u32 %v187, 16
        %v425 = vrot.slane %v423, 5
        %v426 = vsel %vm220, %v421, %v425
        %v427 = vshrl.u32 %v187, 16
        %v429 = vrot.slane %v427, 4
        %v430 = vor.u32 %v429, %v425
        %v431 = vrot.slane %v430, 4
        %v433 = vshll.u32 %v210, 16
        %v435 = vrot.slane %v433, 5
        %v436 = vsel %vm220, %v431, %v435
        %v438 = vshrl.u32 %v188, 16
        %v440 = vrot.slane %v438, 4
        %v441 = vshll.u32 %v188, 16
        %v443 = vrot.slane %v441, 5
        %v444 = vor.u32 %v440, %v443
        %v445 = vrot.slane %v444, 4
        %v447 = vshll.u32 %v189, 16
        %v449 = vrot.slane %v447, 5
        %v450 = vsel %vm220, %v445, %v449
        %v451 = vshrl.u32 %v189, 16
        %v453 = vrot.slane %v451, 4
        %v454 = vor.u32 %v453, %v449
        %v455 = vrot.slane %v454, 4
        %v457 = vshll.u32 %v211, 16
        %v459 = vrot.slane %v457, 5
        %v460 = vsel %vm220, %v455, %v459
        %v462 = vshrl.u32 %v190, 16
        %v464 = vrot.slane %v462, 4
        %v465 = vshll.u32 %v190, 16
        %v467 = vrot.slane %v465, 5
        %v468 = vor.u32 %v464, %v467
        %v469 = vrot.slane %v468, 4
        %v471 = vshll.u32 %v191, 16
        %v473 = vrot.slane %v471, 5
        %v474 = vsel %vm220, %v469, %v473
        %v475 = vshrl.u32 %v191, 16
        %v477 = vrot.slane %v475, 4
        %v478 = vor.u32 %v477, %v473
        %v479 = vrot.slane %v478, 4
        %v481 = vshll.u32 %v212, 16
        %v483 = vrot.slane %v481, 5
        %v484 = vsel %vm220, %v479, %v483
        %v486 = vshrl.u32 %v192, 16
        %v488 = vrot.slane %v486, 4
        %v489 = vshll.u32 %v192, 16
        %v491 = vrot.slane %v489, 5
        %v492 = vor.u32 %v488, %v491
        %v493 = vrot.slane %v492, 4
        %v495 = vshll.u32 %v193, 16
        %v497 = vrot.slane %v495, 5
        %v498 = vsel %vm220, %v493, %v497
        %v499 = vshrl.u32 %v193, 16
        %v501 = vrot.slane %v499, 4
        %v502 = vor.u32 %v501, %v497
        %v503 = vrot.slane %v502, 4
        %v505 = vshll.u32 %v213, 16
        %v507 = vrot.slane %v505, 5
        %v508 = vsel %vm220, %v503, %v507
        %v510 = vshrl.u32 %v194, 16
        %v512 = vrot.slane %v510, 4
        %v513 = vshll.u32 %v194, 16
        %v515 = vrot.slane %v513, 5
        %v516 = vor.u32 %v512, %v515
        %v517 = vrot.slane %v516, 4
        %v519 = vshll.u32 %v195, 16
        %v521 = vrot.slane %v519, 5
        %v522 = vsel %vm220, %v517, %v521
        %v523 = vshrl.u32 %v195, 16
        %v525 = vrot.slane %v523, 4
        %v526 = vor.u32 %v525, %v521
        %v527 = vrot.slane %v526, 4
        %v529 = vshll.u32 %v214, 16
        %v531 = vrot.slane %v529, 5
        %v532 = vsel %vm220, %v527, %v531
        %v534 = vshrl.u32 %v196, 16
        %v536 = vrot.slane %v534, 4
        %v537 = vshll.u32 %v196, 16
        %v539 = vrot.slane %v537, 5
        %v540 = vor.u32 %v536, %v539
        %v541 = vrot.slane %v540, 4
        %v543 = vshll.u32 %v197, 16
        %v545 = vrot.slane %v543, 5
        %v546 = vsel %vm220, %v541, %v545
        %v547 = vshrl.u32 %v197, 16
        %v549 = vrot.slane %v547, 4
        %v550 = vor.u32 %v549, %v545
        %v551 = vrot.slane %v550, 4
        %v553 = vshll.u32 %v215, 16
        %v555 = vrot.slane %v553, 5
        %v556 = vsel %vm220, %v551, %v555
        %v558 = vshrl.u32 %v198, 16
        %v560 = vrot.slane %v558, 4
        %v561 = vshll.u32 %v198, 16
        %v563 = vrot.slane %v561, 5
        %v564 = vor.u32 %v560, %v563
        %v565 = vrot.slane %v564, 4
        %v567 = vshll.u32 %v199, 16
        %v569 = vrot.slane %v567, 5
        %v570 = vsel %vm220, %v565, %v569
        %v571 = vshrl.u32 %v199, 16
        %v573 = vrot.slane %v571, 4
        %v574 = vor.u32 %v573, %v569
        %v575 = vrot.slane %v574, 4
        %v577 = vshll.u32 %v216, 16
        %v579 = vrot.slane %v577, 5
        %v580 = vsel %vm220, %v575, %v579
        %v582 = vshrl.u32 %v200, 16
        %v584 = vrot.slane %v582, 4
        %v585 = vshll.u32 %v200, 16
        %v587 = vrot.slane %v585, 5
        %v588 = vor.u32 %v584, %v587
        %v589 = vrot.slane %v588, 4
        %v591 = vshll.u32 %v201, 16
        %v593 = vrot.slane %v591, 5
        %v594 = vsel %vm220, %v589, %v593
        %v595 = vshrl.u32 %v201, 16
        %v597 = vrot.slane %v595, 4
        %v598 = vor.u32 %v597, %v593
        %v599 = vrot.slane %v598, 4
        %v601 = vshll.u32 %v217, 16
        %v603 = vrot.slane %v601, 5
        %v604 = vsel %vm220, %v599, %v603
        %v605 = vld [vmem:[%s168] sm:$0xe]
        %v606 = vld [vmem:[%s168 + $0xc] sm:$0xe]
        %v607 = vld [vmem:[%s168 + $0x18] sm:$0xe]
        %v608 = vld [vmem:[%s168 + $0x24] sm:$0xe]
        %v609 = vld [vmem:[%s168 + $0x30] sm:$0xe]
        %v610 = vld [vmem:[%s168 + $0x3c] sm:$0xe]
        %v611 = vld [vmem:[%s168 + $0x48] sm:$0xe]
        %v612 = vld [vmem:[%s168 + $0x54] sm:$0xe]
        %v613 = vld [vmem:[%s168 + $0x60] sm:$0xe]
        %v614 = vld [vmem:[%s168 + $0x6c] sm:$0xe]
        %v615 = vld [vmem:[%s168 + $0x78] sm:$0xe]
        %v616 = vld [vmem:[%s168 + $0x84] sm:$0xe]
        %v617 = vld [vmem:[%s168 + $0x90] sm:$0xe]
        %v618 = vld [vmem:[%s168 + $0x9c] sm:$0xe]
        %v619 = vld [vmem:[%s168 + $0xa8] sm:$0xe]
        %v620 = vld [vmem:[%s168 + $0xb4] sm:$0xe]
        %vm669 = vcmask 1042432
        %vm670 = vcmask 1046532
        %vm671 = vmor %vm669, %vm670
        %v672 = vrot.slane %v605, 5
        %v673 = vrot.slane %v672, 4
        %v674 = vrot.slane %v171, 5
        %v675 = vsel %vm671, %v673, %v674
        %v676 = vrot.slane %v674, 4
        %v677 = vrot.slane %v202, 5
        %v678 = vsel %vm671, %v676, %v677
        %v679 = vrot.slane %v606, 5
        %v680 = vrot.slane %v679, 4
        %v681 = vrot.slane %v173, 5
        %v682 = vsel %vm671, %v680, %v681
        %v683 = vrot.slane %v681, 4
        %v684 = vrot.slane %v203, 5
        %v685 = vsel %vm671, %v683, %v684
        %v686 = vrot.slane %v607, 5
        %v687 = vrot.slane %v686, 4
        %v688 = vrot.slane %v175, 5
        %v689 = vsel %vm671, %v687, %v688
        %v690 = vrot.slane %v688, 4
        %v691 = vrot.slane %v204, 5
        %v692 = vsel %vm671, %v690, %v691
        %v693 = vrot.slane %v608, 5
        %v694 = vrot.slane %v693, 4
        %v695 = vrot.slane %v177, 5
        %v696 = vsel %vm671, %v694, %v695
        %v697 = vrot.slane %v695, 4
        %v698 = vrot.slane %v205, 5
        %v699 = vsel %vm671, %v697, %v698
        %v700 = vrot.slane %v609, 5
        %v701 = vrot.slane %v700, 4
        %v702 = vrot.slane %v179, 5
        %v703 = vsel %vm671, %v701, %v702
        %v704 = vrot.slane %v702, 4
        %v705 = vrot.slane %v206, 5
        %v706 = vsel %vm671, %v704, %v705
        %v707 = vrot.slane %v610, 5
        %v708 = vrot.slane %v707, 4
        %v709 = vrot.slane %v181, 5
        %v710 = vsel %vm671, %v708, %v709
        %v711 = vrot.slane %v709, 4
        %v712 = vrot.slane %v207, 5
        %v713 = vsel %vm671, %v711, %v712
        %v714 = vrot.slane %v611, 5
        %v715 = vrot.slane %v714, 4
        %v716 = vrot.slane %v183, 5
        %v717 = vsel %vm671, %v715, %v716
        %v718 = vrot.slane %v716, 4
        %v719 = vrot.slane %v208, 5
        %v720 = vsel %vm671, %v718, %v719
        %v721 = vrot.slane %v612, 5
        %v722 = vrot.slane %v721, 4
        %v723 = vrot.slane %v185, 5
        %v724 = vsel %vm671, %v722, %v723
        %v725 = vrot.slane %v723, 4
        %v726 = vrot.slane %v209, 5
        %v727 = vsel %vm671, %v725, %v726
        %v728 = vrot.slane %v613, 5
        %v729 = vrot.slane %v728, 4
        %v730 = vrot.slane %v187, 5
        %v731 = vsel %vm671, %v729, %v730
        %v732 = vrot.slane %v730, 4
        %v733 = vrot.slane %v210, 5
        %v734 = vsel %vm671, %v732, %v733
        %v735 = vrot.slane %v614, 5
        %v736 = vrot.slane %v735, 4
        %v737 = vrot.slane %v189, 5
        %v738 = vsel %vm671, %v736, %v737
        %v739 = vrot.slane %v737, 4
        %v740 = vrot.slane %v211, 5
        %v741 = vsel %vm671, %v739, %v740
        %v742 = vrot.slane %v615, 5
        %v743 = vrot.slane %v742, 4
        %v744 = vrot.slane %v191, 5
        %v745 = vsel %vm671, %v743, %v744
        %v746 = vrot.slane %v744, 4
        %v747 = vrot.slane %v212, 5
        %v748 = vsel %vm671, %v746, %v747
        %v749 = vrot.slane %v616, 5
        %v750 = vrot.slane %v749, 4
        %v751 = vrot.slane %v193, 5
        %v752 = vsel %vm671, %v750, %v751
        %v753 = vrot.slane %v751, 4
        %v754 = vrot.slane %v213, 5
        %v755 = vsel %vm671, %v753, %v754
        %v756 = vrot.slane %v617, 5
        %v757 = vrot.slane %v756, 4
        %v758 = vrot.slane %v195, 5
        %v759 = vsel %vm671, %v757, %v758
        %v760 = vrot.slane %v758, 4
        %v761 = vrot.slane %v214, 5
        %v762 = vsel %vm671, %v760, %v761
        %v763 = vrot.slane %v618, 5
        %v764 = vrot.slane %v763, 4
        %v765 = vrot.slane %v197, 5
        %v766 = vsel %vm671, %v764, %v765
        %v767 = vrot.slane %v765, 4
        %v768 = vrot.slane %v215, 5
        %v769 = vsel %vm671, %v767, %v768
        %v770 = vrot.slane %v619, 5
        %v771 = vrot.slane %v770, 4
        %v772 = vrot.slane %v199, 5
        %v773 = vsel %vm671, %v771, %v772
        %v774 = vrot.slane %v772, 4
        %v775 = vrot.slane %v216, 5
        %v776 = vsel %vm671, %v774, %v775
        %v777 = vrot.slane %v620, 5
        %v778 = vrot.slane %v777, 4
        %v779 = vrot.slane %v201, 5
        %v780 = vsel %vm671, %v778, %v779
        %v781 = vrot.slane %v779, 4
        %v782 = vrot.slane %v217, 5
        %v783 = vsel %vm671, %v781, %v782
        %s784 = scalar_lea.vmem %s168, 12
        %v785 = vld [vmem:[%s784] sm:$0xf]
        %v786 = vld [vmem:[%s784 + $0x4] sm:$0xf]
        %v787 = vld [vmem:[%s784 + $0xc] sm:$0xf]
        %v788 = vld [vmem:[%s784 + $0x10] sm:$0xf]
        %v789 = vld [vmem:[%s784 + $0x18] sm:$0xf]
        %v790 = vld [vmem:[%s784 + $0x1c] sm:$0xf]
        %v791 = vld [vmem:[%s784 + $0x24] sm:$0xf]
        %v792 = vld [vmem:[%s784 + $0x28] sm:$0xf]
        %v793 = vld [vmem:[%s784 + $0x30] sm:$0xf]
        %v794 = vld [vmem:[%s784 + $0x34] sm:$0xf]
        %v795 = vld [vmem:[%s784 + $0x3c] sm:$0xf]
        %v796 = vld [vmem:[%s784 + $0x40] sm:$0xf]
        %v797 = vld [vmem:[%s784 + $0x48] sm:$0xf]
        %v798 = vld [vmem:[%s784 + $0x4c] sm:$0xf]
        %v799 = vld [vmem:[%s784 + $0x54] sm:$0xf]
        %v800 = vld [vmem:[%s784 + $0x58] sm:$0xf]
        %v801 = vld [vmem:[%s784 + $0x60] sm:$0xf]
        %v802 = vld [vmem:[%s784 + $0x64] sm:$0xf]
        %v803 = vld [vmem:[%s784 + $0x6c] sm:$0xf]
        %v804 = vld [vmem:[%s784 + $0x70] sm:$0xf]
        %v805 = vld [vmem:[%s784 + $0x78] sm:$0xf]
        %v806 = vld [vmem:[%s784 + $0x7c] sm:$0xf]
        %v807 = vld [vmem:[%s784 + $0x84] sm:$0xf]
        %v808 = vld [vmem:[%s784 + $0x88] sm:$0xf]
        %v809 = vld [vmem:[%s784 + $0x90] sm:$0xf]
        %v810 = vld [vmem:[%s784 + $0x94] sm:$0xf]
        %v811 = vld [vmem:[%s784 + $0x9c] sm:$0xf]
        %v812 = vld [vmem:[%s784 + $0xa0] sm:$0xf]
        %v813 = vld [vmem:[%s784 + $0xa8] sm:$0xf]
        %v814 = vld [vmem:[%s784 + $0xac] sm:$0xf]
        %v815 = vld [vmem:[%s784 + $0xb4] sm:$0xf]
        %v816 = vld [vmem:[%s784 + $0xb8] sm:$0xf]
        %v817 = vld [vmem:[%s784 + $0x8] sm:$0x1]
        %v818 = vld [vmem:[%s784 + $0x14] sm:$0x1]
        %v819 = vld [vmem:[%s784 + $0x20] sm:$0x1]
        %v820 = vld [vmem:[%s784 + $0x2c] sm:$0x1]
        %v821 = vld [vmem:[%s784 + $0x38] sm:$0x1]
        %v822 = vld [vmem:[%s784 + $0x44] sm:$0x1]
        %v823 = vld [vmem:[%s784 + $0x50] sm:$0x1]
        %v824 = vld [vmem:[%s784 + $0x5c] sm:$0x1]
        %v825 = vld [vmem:[%s784 + $0x68] sm:$0x1]
        %v826 = vld [vmem:[%s784 + $0x74] sm:$0x1]
        %v827 = vld [vmem:[%s784 + $0x80] sm:$0x1]
        %v828 = vld [vmem:[%s784 + $0x8c] sm:$0x1]
        %v829 = vld [vmem:[%s784 + $0x98] sm:$0x1]
        %v830 = vld [vmem:[%s784 + $0xa4] sm:$0x1]
        %v831 = vld [vmem:[%s784 + $0xb0] sm:$0x1]
        %v832 = vld [vmem:[%s784 + $0xbc] sm:$0x1]
        %v834 = vshrl.u32 %v785, 16
        %v836 = vrot.slane %v834, 4
        %v837 = vshll.u32 %v785, 16
        %v839 = vrot.slane %v837, 5
        %v840 = vor.u32 %v836, %v839
        %v841 = vrot.slane %v840, 4
        %v843 = vshll.u32 %v786, 16
        %v845 = vrot.slane %v843, 5
        %v846 = vsel %vm220, %v841, %v845
        %v847 = vshrl.u32 %v786, 16
        %v849 = vrot.slane %v847, 4
        %v850 = vor.u32 %v849, %v845
        %v851 = vrot.slane %v850, 4
        %v853 = vshll.u32 %v817, 16
        %v855 = vrot.slane %v853, 5
        %v856 = vsel %vm220, %v851, %v855
        %v858 = vshrl.u32 %v787, 16
        %v860 = vrot.slane %v858, 4
        %v861 = vshll.u32 %v787, 16
        %v863 = vrot.slane %v861, 5
        %v864 = vor.u32 %v860, %v863
        %v865 = vrot.slane %v864, 4
        %v867 = vshll.u32 %v788, 16
        %v869 = vrot.slane %v867, 5
        %v870 = vsel %vm220, %v865, %v869
        %v871 = vshrl.u32 %v788, 16
        %v873 = vrot.slane %v871, 4
        %v874 = vor.u32 %v873, %v869
        %v875 = vrot.slane %v874, 4
        %v877 = vshll.u32 %v818, 16
        %v879 = vrot.slane %v877, 5
        %v880 = vsel %vm220, %v875, %v879
        %v882 = vshrl.u32 %v789, 16
        %v884 = vrot.slane %v882, 4
        %v885 = vshll.u32 %v789, 16
        %v887 = vrot.slane %v885, 5
        %v888 = vor.u32 %v884, %v887
        %v889 = vrot.slane %v888, 4
        %v891 = vshll.u32 %v790, 16
        %v893 = vrot.slane %v891, 5
        %v894 = vsel %vm220, %v889, %v893
        %v895 = vshrl.u32 %v790, 16
        %v897 = vrot.slane %v895, 4
        %v898 = vor.u32 %v897, %v893
        %v899 = vrot.slane %v898, 4
        %v901 = vshll.u32 %v819, 16
        %v903 = vrot.slane %v901, 5
        %v904 = vsel %vm220, %v899, %v903
        %v906 = vshrl.u32 %v791, 16
        %v908 = vrot.slane %v906, 4
        %v909 = vshll.u32 %v791, 16
        %v911 = vrot.slane %v909, 5
        %v912 = vor.u32 %v908, %v911
        %v913 = vrot.slane %v912, 4
        %v915 = vshll.u32 %v792, 16
        %v917 = vrot.slane %v915, 5
        %v918 = vsel %vm220, %v913, %v917
        %v919 = vshrl.u32 %v792, 16
        %v921 = vrot.slane %v919, 4
        %v922 = vor.u32 %v921, %v917
        %v923 = vrot.slane %v922, 4
        %v925 = vshll.u32 %v820, 16
        %v927 = vrot.slane %v925, 5
        %v928 = vsel %vm220, %v923, %v927
        %v930 = vshrl.u32 %v793, 16
        %v932 = vrot.slane %v930, 4
        %v933 = vshll.u32 %v793, 16
        %v935 = vrot.slane %v933, 5
        %v936 = vor.u32 %v932, %v935
        %v937 = vrot.slane %v936, 4
        %v939 = vshll.u32 %v794, 16
        %v941 = vrot.slane %v939, 5
        %v942 = vsel %vm220, %v937, %v941
        %v943 = vshrl.u32 %v794, 16
        %v945 = vrot.slane %v943, 4
        %v946 = vor.u32 %v945, %v941
        %v947 = vrot.slane %v946, 4
        %v949 = vshll.u32 %v821, 16
        %v951 = vrot.slane %v949, 5
        %v952 = vsel %vm220, %v947, %v951
        %v954 = vshrl.u32 %v795, 16
        %v956 = vrot.slane %v954, 4
        %v957 = vshll.u32 %v795, 16
        %v959 = vrot.slane %v957, 5
        %v960 = vor.u32 %v956, %v959
        %v961 = vrot.slane %v960, 4
        %v963 = vshll.u32 %v796, 16
        %v965 = vrot.slane %v963, 5
        %v966 = vsel %vm220, %v961, %v965
        %v967 = vshrl.u32 %v796, 16
        %v969 = vrot.slane %v967, 4
        %v970 = vor.u32 %v969, %v965
        %v971 = vrot.slane %v970, 4
        %v973 = vshll.u32 %v822, 16
        %v975 = vrot.slane %v973, 5
        %v976 = vsel %vm220, %v971, %v975
        %v978 = vshrl.u32 %v797, 16
        %v980 = vrot.slane %v978, 4
        %v981 = vshll.u32 %v797, 16
        %v983 = vrot.slane %v981, 5
        %v984 = vor.u32 %v980, %v983
        %v985 = vrot.slane %v984, 4
        %v987 = vshll.u32 %v798, 16
        %v989 = vrot.slane %v987, 5
        %v990 = vsel %vm220, %v985, %v989
        %v991 = vshrl.u32 %v798, 16
        %v993 = vrot.slane %v991, 4
        %v994 = vor.u32 %v993, %v989
        %v995 = vrot.slane %v994, 4
        %v997 = vshll.u32 %v823, 16
        %v999 = vrot.slane %v997, 5
        %v1000 = vsel %vm220, %v995, %v999
        %v1002 = vshrl.u32 %v799, 16
        %v1004 = vrot.slane %v1002, 4
        %v1005 = vshll.u32 %v799, 16
        %v1007 = vrot.slane %v1005, 5
        %v1008 = vor.u32 %v1004, %v1007
        %v1009 = vrot.slane %v1008, 4
        %v1011 = vshll.u32 %v800, 16
        %v1013 = vrot.slane %v1011, 5
        %v1014 = vsel %vm220, %v1009, %v1013
        %v1015 = vshrl.u32 %v800, 16
        %v1017 = vrot.slane %v1015, 4
        %v1018 = vor.u32 %v1017, %v1013
        %v1019 = vrot.slane %v1018, 4
        %v1021 = vshll.u32 %v824, 16
        %v1023 = vrot.slane %v1021, 5
        %v1024 = vsel %vm220, %v1019, %v1023
        %v1026 = vshrl.u32 %v801, 16
        %v1028 = vrot.slane %v1026, 4
        %v1029 = vshll.u32 %v801, 16
        %v1031 = vrot.slane %v1029, 5
        %v1032 = vor.u32 %v1028, %v1031
        %v1033 = vrot.slane %v1032, 4
        %v1035 = vshll.u32 %v802, 16
        %v1037 = vrot.slane %v1035, 5
        %v1038 = vsel %vm220, %v1033, %v1037
        %v1039 = vshrl.u32 %v802, 16
        %v1041 = vrot.slane %v1039, 4
        %v1042 = vor.u32 %v1041, %v1037
        %v1043 = vrot.slane %v1042, 4
        %v1045 = vshll.u32 %v825, 16
        %v1047 = vrot.slane %v1045, 5
        %v1048 = vsel %vm220, %v1043, %v1047
        %v1050 = vshrl.u32 %v803, 16
        %v1052 = vrot.slane %v1050, 4
        %v1053 = vshll.u32 %v803, 16
        %v1055 = vrot.slane %v1053, 5
        %v1056 = vor.u32 %v1052, %v1055
        %v1057 = vrot.slane %v1056, 4
        %v1059 = vshll.u32 %v804, 16
        %v1061 = vrot.slane %v1059, 5
        %v1062 = vsel %vm220, %v1057, %v1061
        %v1063 = vshrl.u32 %v804, 16
        %v1065 = vrot.slane %v1063, 4
        %v1066 = vor.u32 %v1065, %v1061
        %v1067 = vrot.slane %v1066, 4
        %v1069 = vshll.u32 %v826, 16
        %v1071 = vrot.slane %v1069, 5
        %v1072 = vsel %vm220, %v1067, %v1071
        %v1074 = vshrl.u32 %v805, 16
        %v1076 = vrot.slane %v1074, 4
        %v1077 = vshll.u32 %v805, 16
        %v1079 = vrot.slane %v1077, 5
        %v1080 = vor.u32 %v1076, %v1079
        %v1081 = vrot.slane %v1080, 4
        %v1083 = vshll.u32 %v806, 16
        %v1085 = vrot.slane %v1083, 5
        %v1086 = vsel %vm220, %v1081, %v1085
        %v1087 = vshrl.u32 %v806, 16
        %v1089 = vrot.slane %v1087, 4
        %v1090 = vor.u32 %v1089, %v1085
        %v1091 = vrot.slane %v1090, 4
        %v1093 = vshll.u32 %v827, 16
        %v1095 = vrot.slane %v1093, 5
        %v1096 = vsel %vm220, %v1091, %v1095
        %v1098 = vshrl.u32 %v807, 16
        %v1100 = vrot.slane %v1098, 4
        %v1101 = vshll.u32 %v807, 16
        %v1103 = vrot.slane %v1101, 5
        %v1104 = vor.u32 %v1100, %v1103
        %v1105 = vrot.slane %v1104, 4
        %v1107 = vshll.u32 %v808, 16
        %v1109 = vrot.slane %v1107, 5
        %v1110 = vsel %vm220, %v1105, %v1109
        %v1111 = vshrl.u32 %v808, 16
        %v1113 = vrot.slane %v1111, 4
        %v1114 = vor.u32 %v1113, %v1109
        %v1115 = vrot.slane %v1114, 4
        %v1117 = vshll.u32 %v828, 16
        %v1119 = vrot.slane %v1117, 5
        %v1120 = vsel %vm220, %v1115, %v1119
        %v1122 = vshrl.u32 %v809, 16
        %v1124 = vrot.slane %v1122, 4
        %v1125 = vshll.u32 %v809, 16
        %v1127 = vrot.slane %v1125, 5
        %v1128 = vor.u32 %v1124, %v1127
        %v1129 = vrot.slane %v1128, 4
        %v1131 = vshll.u32 %v810, 16
        %v1133 = vrot.slane %v1131, 5
        %v1134 = vsel %vm220, %v1129, %v1133
        %v1135 = vshrl.u32 %v810, 16
        %v1137 = vrot.slane %v1135, 4
        %v1138 = vor.u32 %v1137, %v1133
        %v1139 = vrot.slane %v1138, 4
        %v1141 = vshll.u32 %v829, 16
        %v1143 = vrot.slane %v1141, 5
        %v1144 = vsel %vm220, %v1139, %v1143
        %v1146 = vshrl.u32 %v811, 16
        %v1148 = vrot.slane %v1146, 4
        %v1149 = vshll.u32 %v811, 16
        %v1151 = vrot.slane %v1149, 5
        %v1152 = vor.u32 %v1148, %v1151
        %v1153 = vrot.slane %v1152, 4
        %v1155 = vshll.u32 %v812, 16
        %v1157 = vrot.slane %v1155, 5
        %v1158 = vsel %vm220, %v1153, %v1157
        %v1159 = vshrl.u32 %v812, 16
        %v1161 = vrot.slane %v1159, 4
        %v1162 = vor.u32 %v1161, %v1157
        %v1163 = vrot.slane %v1162, 4
        %v1165 = vshll.u32 %v830, 16
        %v1167 = vrot.slane %v1165, 5
        %v1168 = vsel %vm220, %v1163, %v1167
        %v1170 = vshrl.u32 %v813, 16
        %v1172 = vrot.slane %v1170, 4
        %v1173 = vshll.u32 %v813, 16
        %v1175 = vrot.slane %v1173, 5
        %v1176 = vor.u32 %v1172, %v1175
        %v1177 = vrot.slane %v1176, 4
        %v1179 = vshll.u32 %v814, 16
        %v1181 = vrot.slane %v1179, 5
        %v1182 = vsel %vm220, %v1177, %v1181
        %v1183 = vshrl.u32 %v814, 16
        %v1185 = vrot.slane %v1183, 4
        %v1186 = vor.u32 %v1185, %v1181
        %v1187 = vrot.slane %v1186, 4
        %v1189 = vshll.u32 %v831, 16
        %v1191 = vrot.slane %v1189, 5
        %v1192 = vsel %vm220, %v1187, %v1191
        %v1194 = vshrl.u32 %v815, 16
        %v1196 = vrot.slane %v1194, 4
        %v1197 = vshll.u32 %v815, 16
        %v1199 = vrot.slane %v1197, 5
        %v1200 = vor.u32 %v1196, %v1199
        %v1201 = vrot.slane %v1200, 4
        %v1203 = vshll.u32 %v816, 16
        %v1205 = vrot.slane %v1203, 5
        %v1206 = vsel %vm220, %v1201, %v1205
        %v1207 = vshrl.u32 %v816, 16
        %v1209 = vrot.slane %v1207, 4
        %v1210 = vor.u32 %v1209, %v1205
        %v1211 = vrot.slane %v1210, 4
        %v1213 = vshll.u32 %v832, 16
        %v1215 = vrot.slane %v1213, 5
        %v1216 = vsel %vm220, %v1211, %v1215
        %v1217 = vld [vmem:[%s784] sm:$0xe]
        %v1218 = vld [vmem:[%s784 + $0xc] sm:$0xe]
        %v1219 = vld [vmem:[%s784 + $0x18] sm:$0xe]
        %v1220 = vld [vmem:[%s784 + $0x24] sm:$0xe]
        %v1221 = vld [vmem:[%s784 + $0x30] sm:$0xe]
        %v1222 = vld [vmem:[%s784 + $0x3c] sm:$0xe]
        %v1223 = vld [vmem:[%s784 + $0x48] sm:$0xe]
        %v1224 = vld [vmem:[%s784 + $0x54] sm:$0xe]
        %v1225 = vld [vmem:[%s784 + $0x60] sm:$0xe]
        %v1226 = vld [vmem:[%s784 + $0x6c] sm:$0xe]
        %v1227 = vld [vmem:[%s784 + $0x78] sm:$0xe]
        %v1228 = vld [vmem:[%s784 + $0x84] sm:$0xe]
        %v1229 = vld [vmem:[%s784 + $0x90] sm:$0xe]
        %v1230 = vld [vmem:[%s784 + $0x9c] sm:$0xe]
        %v1231 = vld [vmem:[%s784 + $0xa8] sm:$0xe]
        %v1232 = vld [vmem:[%s784 + $0xb4] sm:$0xe]
        %v1281 = vrot.slane %v1217, 5
        %v1282 = vrot.slane %v1281, 4
        %v1283 = vrot.slane %v786, 5
        %v1284 = vsel %vm671, %v1282, %v1283
        %v1285 = vrot.slane %v1283, 4
        %v1286 = vrot.slane %v817, 5
        %v1287 = vsel %vm671, %v1285, %v1286
        %v1288 = vrot.slane %v1218, 5
        %v1289 = vrot.slane %v1288, 4
        %v1290 = vrot.slane %v788, 5
        %v1291 = vsel %vm671, %v1289, %v1290
        %v1292 = vrot.slane %v1290, 4
        %v1293 = vrot.slane %v818, 5
        %v1294 = vsel %vm671, %v1292, %v1293
        %v1295 = vrot.slane %v1219, 5
        %v1296 = vrot.slane %v1295, 4
        %v1297 = vrot.slane %v790, 5
        %v1298 = vsel %vm671, %v1296, %v1297
        %v1299 = vrot.slane %v1297, 4
        %v1300 = vrot.slane %v819, 5
        %v1301 = vsel %vm671, %v1299, %v1300
        %v1302 = vrot.slane %v1220, 5
        %v1303 = vrot.slane %v1302, 4
        %v1304 = vrot.slane %v792, 5
        %v1305 = vsel %vm671, %v1303, %v1304
        %v1306 = vrot.slane %v1304, 4
        %v1307 = vrot.slane %v820, 5
        %v1308 = vsel %vm671, %v1306, %v1307
        %v1309 = vrot.slane %v1221, 5
        %v1310 = vrot.slane %v1309, 4
        %v1311 = vrot.slane %v794, 5
        %v1312 = vsel %vm671, %v1310, %v1311
        %v1313 = vrot.slane %v1311, 4
        %v1314 = vrot.slane %v821, 5
        %v1315 = vsel %vm671, %v1313, %v1314
        %v1316 = vrot.slane %v1222, 5
        %v1317 = vrot.slane %v1316, 4
        %v1318 = vrot.slane %v796, 5
        %v1319 = vsel %vm671, %v1317, %v1318
        %v1320 = vrot.slane %v1318, 4
        %v1321 = vrot.slane %v822, 5
        %v1322 = vsel %vm671, %v1320, %v1321
        %v1323 = vrot.slane %v1223, 5
        %v1324 = vrot.slane %v1323, 4
        %v1325 = vrot.slane %v798, 5
        %v1326 = vsel %vm671, %v1324, %v1325
        %v1327 = vrot.slane %v1325, 4
        %v1328 = vrot.slane %v823, 5
        %v1329 = vsel %vm671, %v1327, %v1328
        %v1330 = vrot.slane %v1224, 5
        %v1331 = vrot.slane %v1330, 4
        %v1332 = vrot.slane %v800, 5
        %v1333 = vsel %vm671, %v1331, %v1332
        %v1334 = vrot.slane %v1332, 4
        %v1335 = vrot.slane %v824, 5
        %v1336 = vsel %vm671, %v1334, %v1335
        %v1337 = vrot.slane %v1225, 5
        %v1338 = vrot.slane %v1337, 4
        %v1339 = vrot.slane %v802, 5
        %v1340 = vsel %vm671, %v1338, %v1339
        %v1341 = vrot.slane %v1339, 4
        %v1342 = vrot.slane %v825, 5
        %v1343 = vsel %vm671, %v1341, %v1342
        %v1344 = vrot.slane %v1226, 5
        %v1345 = vrot.slane %v1344, 4
        %v1346 = vrot.slane %v804, 5
        %v1347 = vsel %vm671, %v1345, %v1346
        %v1348 = vrot.slane %v1346, 4
        %v1349 = vrot.slane %v826, 5
        %v1350 = vsel %vm671, %v1348, %v1349
        %v1351 = vrot.slane %v1227, 5
        %v1352 = vrot.slane %v1351, 4
        %v1353 = vrot.slane %v806, 5
        %v1354 = vsel %vm671, %v1352, %v1353
        %v1355 = vrot.slane %v1353, 4
        %v1356 = vrot.slane %v827, 5
        %v1357 = vsel %vm671, %v1355, %v1356
        %v1358 = vrot.slane %v1228, 5
        %v1359 = vrot.slane %v1358, 4
        %v1360 = vrot.slane %v808, 5
        %v1361 = vsel %vm671, %v1359, %v1360
        %v1362 = vrot.slane %v1360, 4
        %v1363 = vrot.slane %v828, 5
        %v1364 = vsel %vm671, %v1362, %v1363
        %v1365 = vrot.slane %v1229, 5
        %v1366 = vrot.slane %v1365, 4
        %v1367 = vrot.slane %v810, 5
        %v1368 = vsel %vm671, %v1366, %v1367
        %v1369 = vrot.slane %v1367, 4
        %v1370 = vrot.slane %v829, 5
        %v1371 = vsel %vm671, %v1369, %v1370
        %v1372 = vrot.slane %v1230, 5
        %v1373 = vrot.slane %v1372, 4
        %v1374 = vrot.slane %v812, 5
        %v1375 = vsel %vm671, %v1373, %v1374
        %v1376 = vrot.slane %v1374, 4
        %v1377 = vrot.slane %v830, 5
        %v1378 = vsel %vm671, %v1376, %v1377
        %v1379 = vrot.slane %v1231, 5
        %v1380 = vrot.slane %v1379, 4
        %v1381 = vrot.slane %v814, 5
        %v1382 = vsel %vm671, %v1380, %v1381
        %v1383 = vrot.slane %v1381, 4
        %v1384 = vrot.slane %v831, 5
        %v1385 = vsel %vm671, %v1383, %v1384
        %v1386 = vrot.slane %v1232, 5
        %v1387 = vrot.slane %v1386, 4
        %v1388 = vrot.slane %v816, 5
        %v1389 = vsel %vm671, %v1387, %v1388
        %v1390 = vrot.slane %v1388, 4
        %v1391 = vrot.slane %v832, 5
        %v1392 = vsel %vm671, %v1390, %v1391
        %s1393 = scalar_lea.vmem %s168, 24
        %v1394 = vld [vmem:[%s1393] sm:$0xf]
        %v1395 = vld [vmem:[%s1393 + $0x4] sm:$0xf]
        %v1396 = vld [vmem:[%s1393 + $0xc] sm:$0xf]
        %v1397 = vld [vmem:[%s1393 + $0x10] sm:$0xf]
        %v1398 = vld [vmem:[%s1393 + $0x18] sm:$0xf]
        %v1399 = vld [vmem:[%s1393 + $0x1c] sm:$0xf]
        %v1400 = vld [vmem:[%s1393 + $0x24] sm:$0xf]
        %v1401 = vld [vmem:[%s1393 + $0x28] sm:$0xf]
        %v1402 = vld [vmem:[%s1393 + $0x30] sm:$0xf]
        %v1403 = vld [vmem:[%s1393 + $0x34] sm:$0xf]
        %v1404 = vld [vmem:[%s1393 + $0x3c] sm:$0xf]
        %v1405 = vld [vmem:[%s1393 + $0x40] sm:$0xf]
        %v1406 = vld [vmem:[%s1393 + $0x48] sm:$0xf]
        %v1407 = vld [vmem:[%s1393 + $0x4c] sm:$0xf]
        %v1408 = vld [vmem:[%s1393 + $0x54] sm:$0xf]
        %v1409 = vld [vmem:[%s1393 + $0x58] sm:$0xf]
        %v1410 = vld [vmem:[%s1393 + $0x60] sm:$0xf]
        %v1411 = vld [vmem:[%s1393 + $0x64] sm:$0xf]
        %v1412 = vld [vmem:[%s1393 + $0x6c] sm:$0xf]
        %v1413 = vld [vmem:[%s1393 + $0x70] sm:$0xf]
        %v1414 = vld [vmem:[%s1393 + $0x78] sm:$0xf]
        %v1415 = vld [vmem:[%s1393 + $0x7c] sm:$0xf]
        %v1416 = vld [vmem:[%s1393 + $0x84] sm:$0xf]
        %v1417 = vld [vmem:[%s1393 + $0x88] sm:$0xf]
        %v1418 = vld [vmem:[%s1393 + $0x90] sm:$0xf]
        %v1419 = vld [vmem:[%s1393 + $0x94] sm:$0xf]
        %v1420 = vld [vmem:[%s1393 + $0x9c] sm:$0xf]
        %v1421 = vld [vmem:[%s1393 + $0xa0] sm:$0xf]
        %v1422 = vld [vmem:[%s1393 + $0xa8] sm:$0xf]
        %v1423 = vld [vmem:[%s1393 + $0xac] sm:$0xf]
        %v1424 = vld [vmem:[%s1393 + $0xb4] sm:$0xf]
        %v1425 = vld [vmem:[%s1393 + $0xb8] sm:$0xf]
        %v1426 = vld [vmem:[%s1393 + $0x8] sm:$0x1]
        %v1427 = vld [vmem:[%s1393 + $0x14] sm:$0x1]
        %v1428 = vld [vmem:[%s1393 + $0x20] sm:$0x1]
        %v1429 = vld [vmem:[%s1393 + $0x2c] sm:$0x1]
        %v1430 = vld [vmem:[%s1393 + $0x38] sm:$0x1]
        %v1431 = vld [vmem:[%s1393 + $0x44] sm:$0x1]
        %v1432 = vld [vmem:[%s1393 + $0x50] sm:$0x1]
        %v1433 = vld [vmem:[%s1393 + $0x5c] sm:$0x1]
        %v1434 = vld [vmem:[%s1393 + $0x68] sm:$0x1]
        %v1435 = vld [vmem:[%s1393 + $0x74] sm:$0x1]
        %v1436 = vld [vmem:[%s1393 + $0x80] sm:$0x1]
        %v1437 = vld [vmem:[%s1393 + $0x8c] sm:$0x1]
        %v1438 = vld [vmem:[%s1393 + $0x98] sm:$0x1]
        %v1439 = vld [vmem:[%s1393 + $0xa4] sm:$0x1]
        %v1440 = vld [vmem:[%s1393 + $0xb0] sm:$0x1]
        %v1441 = vld [vmem:[%s1393 + $0xbc] sm:$0x1]
        %v1443 = vshrl.u32 %v1394, 16
        %v1445 = vrot.slane %v1443, 4
        %v1446 = vshll.u32 %v1394, 16
        %v1448 = vrot.slane %v1446, 5
        %v1449 = vor.u32 %v1445, %v1448
        %v1450 = vrot.slane %v1449, 4
        %v1452 = vshll.u32 %v1395, 16
        %v1454 = vrot.slane %v1452, 5
        %v1455 = vsel %vm220, %v1450, %v1454
        %v1456 = vshrl.u32 %v1395, 16
        %v1458 = vrot.slane %v1456, 4
        %v1459 = vor.u32 %v1458, %v1454
        %v1460 = vrot.slane %v1459, 4
        %v1462 = vshll.u32 %v1426, 16
        %v1464 = vrot.slane %v1462, 5
        %v1465 = vsel %vm220, %v1460, %v1464
        %v1467 = vshrl.u32 %v1396, 16
        %v1469 = vrot.slane %v1467, 4
        %v1470 = vshll.u32 %v1396, 16
        %v1472 = vrot.slane %v1470, 5
        %v1473 = vor.u32 %v1469, %v1472
        %v1474 = vrot.slane %v1473, 4
        %v1476 = vshll.u32 %v1397, 16
        %v1478 = vrot.slane %v1476, 5
        %v1479 = vsel %vm220, %v1474, %v1478
        %v1480 = vshrl.u32 %v1397, 16
        %v1482 = vrot.slane %v1480, 4
        %v1483 = vor.u32 %v1482, %v1478
        %v1484 = vrot.slane %v1483, 4
        %v1486 = vshll.u32 %v1427, 16
        %v1488 = vrot.slane %v1486, 5
        %v1489 = vsel %vm220, %v1484, %v1488
        %v1491 = vshrl.u32 %v1398, 16
        %v1493 = vrot.slane %v1491, 4
        %v1494 = vshll.u32 %v1398, 16
        %v1496 = vrot.slane %v1494, 5
        %v1497 = vor.u32 %v1493, %v1496
        %v1498 = vrot.slane %v1497, 4
        %v1500 = vshll.u32 %v1399, 16
        %v1502 = vrot.slane %v1500, 5
        %v1503 = vsel %vm220, %v1498, %v1502
        %v1504 = vshrl.u32 %v1399, 16
        %v1506 = vrot.slane %v1504, 4
        %v1507 = vor.u32 %v1506, %v1502
        %v1508 = vrot.slane %v1507, 4
        %v1510 = vshll.u32 %v1428, 16
        %v1512 = vrot.slane %v1510, 5
        %v1513 = vsel %vm220, %v1508, %v1512
        %v1515 = vshrl.u32 %v1400, 16
        %v1517 = vrot.slane %v1515, 4
        %v1518 = vshll.u32 %v1400, 16
        %v1520 = vrot.slane %v1518, 5
        %v1521 = vor.u32 %v1517, %v1520
        %v1522 = vrot.slane %v1521, 4
        %v1524 = vshll.u32 %v1401, 16
        %v1526 = vrot.slane %v1524, 5
        %v1527 = vsel %vm220, %v1522, %v1526
        %v1528 = vshrl.u32 %v1401, 16
        %v1530 = vrot.slane %v1528, 4
        %v1531 = vor.u32 %v1530, %v1526
        %v1532 = vrot.slane %v1531, 4
        %v1534 = vshll.u32 %v1429, 16
        %v1536 = vrot.slane %v1534, 5
        %v1537 = vsel %vm220, %v1532, %v1536
        %v1539 = vshrl.u32 %v1402, 16
        %v1541 = vrot.slane %v1539, 4
        %v1542 = vshll.u32 %v1402, 16
        %v1544 = vrot.slane %v1542, 5
        %v1545 = vor.u32 %v1541, %v1544
        %v1546 = vrot.slane %v1545, 4
        %v1548 = vshll.u32 %v1403, 16
        %v1550 = vrot.slane %v1548, 5
        %v1551 = vsel %vm220, %v1546, %v1550
        %v1552 = vshrl.u32 %v1403, 16
        %v1554 = vrot.slane %v1552, 4
        %v1555 = vor.u32 %v1554, %v1550
        %v1556 = vrot.slane %v1555, 4
        %v1558 = vshll.u32 %v1430, 16
        %v1560 = vrot.slane %v1558, 5
        %v1561 = vsel %vm220, %v1556, %v1560
        %v1563 = vshrl.u32 %v1404, 16
        %v1565 = vrot.slane %v1563, 4
        %v1566 = vshll.u32 %v1404, 16
        %v1568 = vrot.slane %v1566, 5
        %v1569 = vor.u32 %v1565, %v1568
        %v1570 = vrot.slane %v1569, 4
        %v1572 = vshll.u32 %v1405, 16
        %v1574 = vrot.slane %v1572, 5
        %v1575 = vsel %vm220, %v1570, %v1574
        %v1576 = vshrl.u32 %v1405, 16
        %v1578 = vrot.slane %v1576, 4
        %v1579 = vor.u32 %v1578, %v1574
        %v1580 = vrot.slane %v1579, 4
        %v1582 = vshll.u32 %v1431, 16
        %v1584 = vrot.slane %v1582, 5
        %v1585 = vsel %vm220, %v1580, %v1584
        %v1587 = vshrl.u32 %v1406, 16
        %v1589 = vrot.slane %v1587, 4
        %v1590 = vshll.u32 %v1406, 16
        %v1592 = vrot.slane %v1590, 5
        %v1593 = vor.u32 %v1589, %v1592
        %v1594 = vrot.slane %v1593, 4
        %v1596 = vshll.u32 %v1407, 16
        %v1598 = vrot.slane %v1596, 5
        %v1599 = vsel %vm220, %v1594, %v1598
        %v1600 = vshrl.u32 %v1407, 16
        %v1602 = vrot.slane %v1600, 4
        %v1603 = vor.u32 %v1602, %v1598
        %v1604 = vrot.slane %v1603, 4
        %v1606 = vshll.u32 %v1432, 16
        %v1608 = vrot.slane %v1606, 5
        %v1609 = vsel %vm220, %v1604, %v1608
        %v1611 = vshrl.u32 %v1408, 16
        %v1613 = vrot.slane %v1611, 4
        %v1614 = vshll.u32 %v1408, 16
        %v1616 = vrot.slane %v1614, 5
        %v1617 = vor.u32 %v1613, %v1616
        %v1618 = vrot.slane %v1617, 4
        %v1620 = vshll.u32 %v1409, 16
        %v1622 = vrot.slane %v1620, 5
        %v1623 = vsel %vm220, %v1618, %v1622
        %v1624 = vshrl.u32 %v1409, 16
        %v1626 = vrot.slane %v1624, 4
        %v1627 = vor.u32 %v1626, %v1622
        %v1628 = vrot.slane %v1627, 4
        %v1630 = vshll.u32 %v1433, 16
        %v1632 = vrot.slane %v1630, 5
        %v1633 = vsel %vm220, %v1628, %v1632
        %v1635 = vshrl.u32 %v1410, 16
        %v1637 = vrot.slane %v1635, 4
        %v1638 = vshll.u32 %v1410, 16
        %v1640 = vrot.slane %v1638, 5
        %v1641 = vor.u32 %v1637, %v1640
        %v1642 = vrot.slane %v1641, 4
        %v1644 = vshll.u32 %v1411, 16
        %v1646 = vrot.slane %v1644, 5
        %v1647 = vsel %vm220, %v1642, %v1646
        %v1648 = vshrl.u32 %v1411, 16
        %v1650 = vrot.slane %v1648, 4
        %v1651 = vor.u32 %v1650, %v1646
        %v1652 = vrot.slane %v1651, 4
        %v1654 = vshll.u32 %v1434, 16
        %v1656 = vrot.slane %v1654, 5
        %v1657 = vsel %vm220, %v1652, %v1656
        %v1659 = vshrl.u32 %v1412, 16
        %v1661 = vrot.slane %v1659, 4
        %v1662 = vshll.u32 %v1412, 16
        %v1664 = vrot.slane %v1662, 5
        %v1665 = vor.u32 %v1661, %v1664
        %v1666 = vrot.slane %v1665, 4
        %v1668 = vshll.u32 %v1413, 16
        %v1670 = vrot.slane %v1668, 5
        %v1671 = vsel %vm220, %v1666, %v1670
        %v1672 = vshrl.u32 %v1413, 16
        %v1674 = vrot.slane %v1672, 4
        %v1675 = vor.u32 %v1674, %v1670
        %v1676 = vrot.slane %v1675, 4
        %v1678 = vshll.u32 %v1435, 16
        %v1680 = vrot.slane %v1678, 5
        %v1681 = vsel %vm220, %v1676, %v1680
        %v1683 = vshrl.u32 %v1414, 16
        %v1685 = vrot.slane %v1683, 4
        %v1686 = vshll.u32 %v1414, 16
        %v1688 = vrot.slane %v1686, 5
        %v1689 = vor.u32 %v1685, %v1688
        %v1690 = vrot.slane %v1689, 4
        %v1692 = vshll.u32 %v1415, 16
        %v1694 = vrot.slane %v1692, 5
        %v1695 = vsel %vm220, %v1690, %v1694
        %v1696 = vshrl.u32 %v1415, 16
        %v1698 = vrot.slane %v1696, 4
        %v1699 = vor.u32 %v1698, %v1694
        %v1700 = vrot.slane %v1699, 4
        %v1702 = vshll.u32 %v1436, 16
        %v1704 = vrot.slane %v1702, 5
        %v1705 = vsel %vm220, %v1700, %v1704
        %v1707 = vshrl.u32 %v1416, 16
        %v1709 = vrot.slane %v1707, 4
        %v1710 = vshll.u32 %v1416, 16
        %v1712 = vrot.slane %v1710, 5
        %v1713 = vor.u32 %v1709, %v1712
        %v1714 = vrot.slane %v1713, 4
        %v1716 = vshll.u32 %v1417, 16
        %v1718 = vrot.slane %v1716, 5
        %v1719 = vsel %vm220, %v1714, %v1718
        %v1720 = vshrl.u32 %v1417, 16
        %v1722 = vrot.slane %v1720, 4
        %v1723 = vor.u32 %v1722, %v1718
        %v1724 = vrot.slane %v1723, 4
        %v1726 = vshll.u32 %v1437, 16
        %v1728 = vrot.slane %v1726, 5
        %v1729 = vsel %vm220, %v1724, %v1728
        %v1731 = vshrl.u32 %v1418, 16
        %v1733 = vrot.slane %v1731, 4
        %v1734 = vshll.u32 %v1418, 16
        %v1736 = vrot.slane %v1734, 5
        %v1737 = vor.u32 %v1733, %v1736
        %v1738 = vrot.slane %v1737, 4
        %v1740 = vshll.u32 %v1419, 16
        %v1742 = vrot.slane %v1740, 5
        %v1743 = vsel %vm220, %v1738, %v1742
        %v1744 = vshrl.u32 %v1419, 16
        %v1746 = vrot.slane %v1744, 4
        %v1747 = vor.u32 %v1746, %v1742
        %v1748 = vrot.slane %v1747, 4
        %v1750 = vshll.u32 %v1438, 16
        %v1752 = vrot.slane %v1750, 5
        %v1753 = vsel %vm220, %v1748, %v1752
        %v1755 = vshrl.u32 %v1420, 16
        %v1757 = vrot.slane %v1755, 4
        %v1758 = vshll.u32 %v1420, 16
        %v1760 = vrot.slane %v1758, 5
        %v1761 = vor.u32 %v1757, %v1760
        %v1762 = vrot.slane %v1761, 4
        %v1764 = vshll.u32 %v1421, 16
        %v1766 = vrot.slane %v1764, 5
        %v1767 = vsel %vm220, %v1762, %v1766
        %v1768 = vshrl.u32 %v1421, 16
        %v1770 = vrot.slane %v1768, 4
        %v1771 = vor.u32 %v1770, %v1766
        %v1772 = vrot.slane %v1771, 4
        %v1774 = vshll.u32 %v1439, 16
        %v1776 = vrot.slane %v1774, 5
        %v1777 = vsel %vm220, %v1772, %v1776
        %v1779 = vshrl.u32 %v1422, 16
        %v1781 = vrot.slane %v1779, 4
        %v1782 = vshll.u32 %v1422, 16
        %v1784 = vrot.slane %v1782, 5
        %v1785 = vor.u32 %v1781, %v1784
        %v1786 = vrot.slane %v1785, 4
        %v1788 = vshll.u32 %v1423, 16
        %v1790 = vrot.slane %v1788, 5
        %v1791 = vsel %vm220, %v1786, %v1790
        %v1792 = vshrl.u32 %v1423, 16
        %v1794 = vrot.slane %v1792, 4
        %v1795 = vor.u32 %v1794, %v1790
        %v1796 = vrot.slane %v1795, 4
        %v1798 = vshll.u32 %v1440, 16
        %v1800 = vrot.slane %v1798, 5
        %v1801 = vsel %vm220, %v1796, %v1800
        %v1803 = vshrl.u32 %v1424, 16
        %v1805 = vrot.slane %v1803, 4
        %v1806 = vshll.u32 %v1424, 16
        %v1808 = vrot.slane %v1806, 5
        %v1809 = vor.u32 %v1805, %v1808
        %v1810 = vrot.slane %v1809, 4
        %v1812 = vshll.u32 %v1425, 16
        %v1814 = vrot.slane %v1812, 5
        %v1815 = vsel %vm220, %v1810, %v1814
        %v1816 = vshrl.u32 %v1425, 16
        %v1818 = vrot.slane %v1816, 4
        %v1819 = vor.u32 %v1818, %v1814
        %v1820 = vrot.slane %v1819, 4
        %v1822 = vshll.u32 %v1441, 16
        %v1824 = vrot.slane %v1822, 5
        %v1825 = vsel %vm220, %v1820, %v1824
        %v1826 = vld [vmem:[%s1393] sm:$0xe]
        %v1827 = vld [vmem:[%s1393 + $0xc] sm:$0xe]
        %v1828 = vld [vmem:[%s1393 + $0x18] sm:$0xe]
        %v1829 = vld [vmem:[%s1393 + $0x24] sm:$0xe]
        %v1830 = vld [vmem:[%s1393 + $0x30] sm:$0xe]
        %v1831 = vld [vmem:[%s1393 + $0x3c] sm:$0xe]
        %v1832 = vld [vmem:[%s1393 + $0x48] sm:$0xe]
        %v1833 = vld [vmem:[%s1393 + $0x54] sm:$0xe]
        %v1834 = vld [vmem:[%s1393 + $0x60] sm:$0xe]
        %v1835 = vld [vmem:[%s1393 + $0x6c] sm:$0xe]
        %v1836 = vld [vmem:[%s1393 + $0x78] sm:$0xe]
        %v1837 = vld [vmem:[%s1393 + $0x84] sm:$0xe]
        %v1838 = vld [vmem:[%s1393 + $0x90] sm:$0xe]
        %v1839 = vld [vmem:[%s1393 + $0x9c] sm:$0xe]
        %v1840 = vld [vmem:[%s1393 + $0xa8] sm:$0xe]
        %v1841 = vld [vmem:[%s1393 + $0xb4] sm:$0xe]
        %v1890 = vrot.slane %v1826, 5
        %v1891 = vrot.slane %v1890, 4
        %v1892 = vrot.slane %v1395, 5
        %v1893 = vsel %vm671, %v1891, %v1892
        %v1894 = vrot.slane %v1892, 4
        %v1895 = vrot.slane %v1426, 5
        %v1896 = vsel %vm671, %v1894, %v1895
        %v1897 = vrot.slane %v1827, 5
        %v1898 = vrot.slane %v1897, 4
        %v1899 = vrot.slane %v1397, 5
        %v1900 = vsel %vm671, %v1898, %v1899
        %v1901 = vrot.slane %v1899, 4
        %v1902 = vrot.slane %v1427, 5
        %v1903 = vsel %vm671, %v1901, %v1902
        %v1904 = vrot.slane %v1828, 5
        %v1905 = vrot.slane %v1904, 4
        %v1906 = vrot.slane %v1399, 5
        %v1907 = vsel %vm671, %v1905, %v1906
        %v1908 = vrot.slane %v1906, 4
        %v1909 = vrot.slane %v1428, 5
        %v1910 = vsel %vm671, %v1908, %v1909
        %v1911 = vrot.slane %v1829, 5
        %v1912 = vrot.slane %v1911, 4
        %v1913 = vrot.slane %v1401, 5
        %v1914 = vsel %vm671, %v1912, %v1913
        %v1915 = vrot.slane %v1913, 4
        %v1916 = vrot.slane %v1429, 5
        %v1917 = vsel %vm671, %v1915, %v1916
        %v1918 = vrot.slane %v1830, 5
        %v1919 = vrot.slane %v1918, 4
        %v1920 = vrot.slane %v1403, 5
        %v1921 = vsel %vm671, %v1919, %v1920
        %v1922 = vrot.slane %v1920, 4
        %v1923 = vrot.slane %v1430, 5
        %v1924 = vsel %vm671, %v1922, %v1923
        %v1925 = vrot.slane %v1831, 5
        %v1926 = vrot.slane %v1925, 4
        %v1927 = vrot.slane %v1405, 5
        %v1928 = vsel %vm671, %v1926, %v1927
        %v1929 = vrot.slane %v1927, 4
        %v1930 = vrot.slane %v1431, 5
        %v1931 = vsel %vm671, %v1929, %v1930
        %v1932 = vrot.slane %v1832, 5
        %v1933 = vrot.slane %v1932, 4
        %v1934 = vrot.slane %v1407, 5
        %v1935 = vsel %vm671, %v1933, %v1934
        %v1936 = vrot.slane %v1934, 4
        %v1937 = vrot.slane %v1432, 5
        %v1938 = vsel %vm671, %v1936, %v1937
        %v1939 = vrot.slane %v1833, 5
        %v1940 = vrot.slane %v1939, 4
        %v1941 = vrot.slane %v1409, 5
        %v1942 = vsel %vm671, %v1940, %v1941
        %v1943 = vrot.slane %v1941, 4
        %v1944 = vrot.slane %v1433, 5
        %v1945 = vsel %vm671, %v1943, %v1944
        %v1946 = vrot.slane %v1834, 5
        %v1947 = vrot.slane %v1946, 4
        %v1948 = vrot.slane %v1411, 5
        %v1949 = vsel %vm671, %v1947, %v1948
        %v1950 = vrot.slane %v1948, 4
        %v1951 = vrot.slane %v1434, 5
        %v1952 = vsel %vm671, %v1950, %v1951
        %v1953 = vrot.slane %v1835, 5
        %v1954 = vrot.slane %v1953, 4
        %v1955 = vrot.slane %v1413, 5
        %v1956 = vsel %vm671, %v1954, %v1955
        %v1957 = vrot.slane %v1955, 4
        %v1958 = vrot.slane %v1435, 5
        %v1959 = vsel %vm671, %v1957, %v1958
        %v1960 = vrot.slane %v1836, 5
        %v1961 = vrot.slane %v1960, 4
        %v1962 = vrot.slane %v1415, 5
        %v1963 = vsel %vm671, %v1961, %v1962
        %v1964 = vrot.slane %v1962, 4
        %v1965 = vrot.slane %v1436, 5
        %v1966 = vsel %vm671, %v1964, %v1965
        %v1967 = vrot.slane %v1837, 5
        %v1968 = vrot.slane %v1967, 4
        %v1969 = vrot.slane %v1417, 5
        %v1970 = vsel %vm671, %v1968, %v1969
        %v1971 = vrot.slane %v1969, 4
        %v1972 = vrot.slane %v1437, 5
        %v1973 = vsel %vm671, %v1971, %v1972
        %v1974 = vrot.slane %v1838, 5
        %v1975 = vrot.slane %v1974, 4
        %v1976 = vrot.slane %v1419, 5
        %v1977 = vsel %vm671, %v1975, %v1976
        %v1978 = vrot.slane %v1976, 4
        %v1979 = vrot.slane %v1438, 5
        %v1980 = vsel %vm671, %v1978, %v1979
        %v1981 = vrot.slane %v1839, 5
        %v1982 = vrot.slane %v1981, 4
        %v1983 = vrot.slane %v1421, 5
        %v1984 = vsel %vm671, %v1982, %v1983
        %v1985 = vrot.slane %v1983, 4
        %v1986 = vrot.slane %v1439, 5
        %v1987 = vsel %vm671, %v1985, %v1986
        %v1988 = vrot.slane %v1840, 5
        %v1989 = vrot.slane %v1988, 4
        %v1990 = vrot.slane %v1423, 5
        %v1991 = vsel %vm671, %v1989, %v1990
        %v1992 = vrot.slane %v1990, 4
        %v1993 = vrot.slane %v1440, 5
        %v1994 = vsel %vm671, %v1992, %v1993
        %v1995 = vrot.slane %v1841, 5
        %v1996 = vrot.slane %v1995, 4
        %v1997 = vrot.slane %v1425, 5
        %v1998 = vsel %vm671, %v1996, %v1997
        %v1999 = vrot.slane %v1997, 4
        %v2000 = vrot.slane %v1441, 5
        %v2001 = vsel %vm671, %v1999, %v2000
        %v2018 = vunpack.c.l.b16 %v170
        %v2019 = vunpack.c.l.b16 %v171
        %v2020 = vunpack.c.l.b16 %v172
        %v2021 = vunpack.c.l.b16 %v173
        %v2022 = vunpack.c.l.b16 %v174
        %v2023 = vunpack.c.l.b16 %v175
        %v2024 = vunpack.c.l.b16 %v176
        %v2025 = vunpack.c.l.b16 %v177
        %v2026 = vunpack.c.l.b16 %v178
        %v2027 = vunpack.c.l.b16 %v179
        %v2028 = vunpack.c.l.b16 %v180
        %v2029 = vunpack.c.l.b16 %v181
        %v2030 = vunpack.c.l.b16 %v182
        %v2031 = vunpack.c.l.b16 %v183
        %v2032 = vunpack.c.l.b16 %v184
        %v2033 = vunpack.c.l.b16 %v185
        %v2034 = vunpack.c.l.b16 %v186
        %v2035 = vunpack.c.l.b16 %v187
        %v2036 = vunpack.c.l.b16 %v188
        %v2037 = vunpack.c.l.b16 %v189
        %v2038 = vunpack.c.l.b16 %v190
        %v2039 = vunpack.c.l.b16 %v191
        %v2040 = vunpack.c.l.b16 %v192
        %v2041 = vunpack.c.l.b16 %v193
        %v2042 = vunpack.c.l.b16 %v194
        %v2043 = vunpack.c.l.b16 %v195
        %v2044 = vunpack.c.l.b16 %v196
        %v2045 = vunpack.c.l.b16 %v197
        %v2046 = vunpack.c.l.b16 %v198
        %v2047 = vunpack.c.l.b16 %v199
        %v2048 = vunpack.c.l.b16 %v200
        %v2049 = vunpack.c.l.b16 %v201
        %v2050 = vpack.c.b16 %v2019, %v2018
        %v2051 = vpack.c.b16 %v2021, %v2020
        %v2052 = vpack.c.b16 %v2023, %v2022
        %v2053 = vpack.c.b16 %v2025, %v2024
        %v2054 = vpack.c.b16 %v2027, %v2026
        %v2055 = vpack.c.b16 %v2029, %v2028
        %v2056 = vpack.c.b16 %v2031, %v2030
        %v2057 = vpack.c.b16 %v2033, %v2032
        %v2058 = vpack.c.b16 %v2035, %v2034
        %v2059 = vpack.c.b16 %v2037, %v2036
        %v2060 = vpack.c.b16 %v2039, %v2038
        %v2061 = vpack.c.b16 %v2041, %v2040
        %v2062 = vpack.c.b16 %v2043, %v2042
        %v2063 = vpack.c.b16 %v2045, %v2044
        %v2064 = vpack.c.b16 %v2047, %v2046
        %v2065 = vpack.c.b16 %v2049, %v2048
        %v2066 = vunpack.c.l.b16 %v234
        %v2067 = vunpack.c.l.b16 %v244
        %v2068 = vunpack.c.l.b16 %v258
        %v2069 = vunpack.c.l.b16 %v268
        %v2070 = vunpack.c.l.b16 %v282
        %v2071 = vunpack.c.l.b16 %v292
        %v2072 = vunpack.c.l.b16 %v306
        %v2073 = vunpack.c.l.b16 %v316
        %v2074 = vunpack.c.l.b16 %v330
        %v2075 = vunpack.c.l.b16 %v340
        %v2076 = vunpack.c.l.b16 %v354
        %v2077 = vunpack.c.l.b16 %v364
        %v2078 = vunpack.c.l.b16 %v378
        %v2079 = vunpack.c.l.b16 %v388
        %v2080 = vunpack.c.l.b16 %v402
        %v2081 = vunpack.c.l.b16 %v412
        %v2082 = vunpack.c.l.b16 %v426
        %v2083 = vunpack.c.l.b16 %v436
        %v2084 = vunpack.c.l.b16 %v450
        %v2085 = vunpack.c.l.b16 %v460
        %v2086 = vunpack.c.l.b16 %v474
        %v2087 = vunpack.c.l.b16 %v484
        %v2088 = vunpack.c.l.b16 %v498
        %v2089 = vunpack.c.l.b16 %v508
        %v2090 = vunpack.c.l.b16 %v522
        %v2091 = vunpack.c.l.b16 %v532
        %v2092 = vunpack.c.l.b16 %v546
        %v2093 = vunpack.c.l.b16 %v556
        %v2094 = vunpack.c.l.b16 %v570
        %v2095 = vunpack.c.l.b16 %v580
        %v2096 = vunpack.c.l.b16 %v594
        %v2097 = vunpack.c.l.b16 %v604
        %v2098 = vpack.c.b16 %v2067, %v2066
        %v2099 = vpack.c.b16 %v2069, %v2068
        %v2100 = vpack.c.b16 %v2071, %v2070
        %v2101 = vpack.c.b16 %v2073, %v2072
        %v2102 = vpack.c.b16 %v2075, %v2074
        %v2103 = vpack.c.b16 %v2077, %v2076
        %v2104 = vpack.c.b16 %v2079, %v2078
        %v2105 = vpack.c.b16 %v2081, %v2080
        %v2106 = vpack.c.b16 %v2083, %v2082
        %v2107 = vpack.c.b16 %v2085, %v2084
        %v2108 = vpack.c.b16 %v2087, %v2086
        %v2109 = vpack.c.b16 %v2089, %v2088
        %v2110 = vpack.c.b16 %v2091, %v2090
        %v2111 = vpack.c.b16 %v2093, %v2092
        %v2112 = vpack.c.b16 %v2095, %v2094
        %v2113 = vpack.c.b16 %v2097, %v2096
        %2114 = vrot.lane.b32.xlu0 %v2098, 3
        %v2115 = vpop.permute.xlu0 %2114
        %2116 = vrot.lane.b32.xlu0 %v2099, 3
        %v2117 = vpop.permute.xlu0 %2116
        %2118 = vrot.lane.b32.xlu0 %v2100, 3
        %v2119 = vpop.permute.xlu0 %2118
        %2120 = vrot.lane.b32.xlu0 %v2101, 3
        %v2121 = vpop.permute.xlu0 %2120
        %2122 = vrot.lane.b32.xlu0 %v2102, 3
        %v2123 = vpop.permute.xlu0 %2122
        %2124 = vrot.lane.b32.xlu0 %v2103, 3
        %v2125 = vpop.permute.xlu0 %2124
        %2126 = vrot.lane.b32.xlu0 %v2104, 3
        %v2127 = vpop.permute.xlu0 %2126
        %2128 = vrot.lane.b32.xlu0 %v2105, 3
        %v2129 = vpop.permute.xlu0 %2128
        %2130 = vrot.lane.b32.xlu0 %v2106, 3
        %v2131 = vpop.permute.xlu0 %2130
        %2132 = vrot.lane.b32.xlu0 %v2107, 3
        %v2133 = vpop.permute.xlu0 %2132
        %2134 = vrot.lane.b32.xlu0 %v2108, 3
        %v2135 = vpop.permute.xlu0 %2134
        %2136 = vrot.lane.b32.xlu0 %v2109, 3
        %v2137 = vpop.permute.xlu0 %2136
        %2138 = vrot.lane.b32.xlu0 %v2110, 3
        %v2139 = vpop.permute.xlu0 %2138
        %2140 = vrot.lane.b32.xlu0 %v2111, 3
        %v2141 = vpop.permute.xlu0 %2140
        %2142 = vrot.lane.b32.xlu0 %v2112, 3
        %v2143 = vpop.permute.xlu0 %2142
        %2144 = vrot.lane.b32.xlu0 %v2113, 3
        %v2145 = vpop.permute.xlu0 %2144
        %v2146 = vunpack.c.l.b16 %v675
        %v2147 = vunpack.c.l.b16 %v678
        %v2148 = vunpack.c.l.b16 %v682
        %v2149 = vunpack.c.l.b16 %v685
        %v2150 = vunpack.c.l.b16 %v689
        %v2151 = vunpack.c.l.b16 %v692
        %v2152 = vunpack.c.l.b16 %v696
        %v2153 = vunpack.c.l.b16 %v699
        %v2154 = vunpack.c.l.b16 %v703
        %v2155 = vunpack.c.l.b16 %v706
        %v2156 = vunpack.c.l.b16 %v710
        %v2157 = vunpack.c.l.b16 %v713
        %v2158 = vunpack.c.l.b16 %v717
        %v2159 = vunpack.c.l.b16 %v720
        %v2160 = vunpack.c.l.b16 %v724
        %v2161 = vunpack.c.l.b16 %v727
        %v2162 = vunpack.c.l.b16 %v731
        %v2163 = vunpack.c.l.b16 %v734
        %v2164 = vunpack.c.l.b16 %v738
        %v2165 = vunpack.c.l.b16 %v741
        %v2166 = vunpack.c.l.b16 %v745
        %v2167 = vunpack.c.l.b16 %v748
        %v2168 = vunpack.c.l.b16 %v752
        %v2169 = vunpack.c.l.b16 %v755
        %v2170 = vunpack.c.l.b16 %v759
        %v2171 = vunpack.c.l.b16 %v762
        %v2172 = vunpack.c.l.b16 %v766
        %v2173 = vunpack.c.l.b16 %v769
        %v2174 = vunpack.c.l.b16 %v773
        %v2175 = vunpack.c.l.b16 %v776
        %v2176 = vunpack.c.l.b16 %v780
        %v2177 = vunpack.c.l.b16 %v783
        %v2178 = vpack.c.b16 %v2147, %v2146
        %v2179 = vpack.c.b16 %v2149, %v2148
        %v2180 = vpack.c.b16 %v2151, %v2150
        %v2181 = vpack.c.b16 %v2153, %v2152
        %v2182 = vpack.c.b16 %v2155, %v2154
        %v2183 = vpack.c.b16 %v2157, %v2156
        %v2184 = vpack.c.b16 %v2159, %v2158
        %v2185 = vpack.c.b16 %v2161, %v2160
        %v2186 = vpack.c.b16 %v2163, %v2162
        %v2187 = vpack.c.b16 %v2165, %v2164
        %v2188 = vpack.c.b16 %v2167, %v2166
        %v2189 = vpack.c.b16 %v2169, %v2168
        %v2190 = vpack.c.b16 %v2171, %v2170
        %v2191 = vpack.c.b16 %v2173, %v2172
        %v2192 = vpack.c.b16 %v2175, %v2174
        %v2193 = vpack.c.b16 %v2177, %v2176
        %2194 = vrot.lane.b32.xlu0 %v2178, 6
        %v2195 = vpop.permute.xlu0 %2194
        %2196 = vrot.lane.b32.xlu0 %v2179, 6
        %v2197 = vpop.permute.xlu0 %2196
        %2198 = vrot.lane.b32.xlu0 %v2180, 6
        %v2199 = vpop.permute.xlu0 %2198
        %2200 = vrot.lane.b32.xlu0 %v2181, 6
        %v2201 = vpop.permute.xlu0 %2200
        %2202 = vrot.lane.b32.xlu0 %v2182, 6
        %v2203 = vpop.permute.xlu0 %2202
        %2204 = vrot.lane.b32.xlu0 %v2183, 6
        %v2205 = vpop.permute.xlu0 %2204
        %2206 = vrot.lane.b32.xlu0 %v2184, 6
        %v2207 = vpop.permute.xlu0 %2206
        %2208 = vrot.lane.b32.xlu0 %v2185, 6
        %v2209 = vpop.permute.xlu0 %2208
        %2210 = vrot.lane.b32.xlu0 %v2186, 6
        %v2211 = vpop.permute.xlu0 %2210
        %2212 = vrot.lane.b32.xlu0 %v2187, 6
        %v2213 = vpop.permute.xlu0 %2212
        %2214 = vrot.lane.b32.xlu0 %v2188, 6
        %v2215 = vpop.permute.xlu0 %2214
        %2216 = vrot.lane.b32.xlu0 %v2189, 6
        %v2217 = vpop.permute.xlu0 %2216
        %2218 = vrot.lane.b32.xlu0 %v2190, 6
        %v2219 = vpop.permute.xlu0 %2218
        %2220 = vrot.lane.b32.xlu0 %v2191, 6
        %v2221 = vpop.permute.xlu0 %2220
        %2222 = vrot.lane.b32.xlu0 %v2192, 6
        %v2223 = vpop.permute.xlu0 %2222
        %2224 = vrot.lane.b32.xlu0 %v2193, 6
        %v2225 = vpop.permute.xlu0 %2224
        %v2242 = vunpack.c.l.b16 %v785
        %v2243 = vunpack.c.l.b16 %v786
        %v2244 = vunpack.c.l.b16 %v787
        %v2245 = vunpack.c.l.b16 %v788
        %v2246 = vunpack.c.l.b16 %v789
        %v2247 = vunpack.c.l.b16 %v790
        %v2248 = vunpack.c.l.b16 %v791
        %v2249 = vunpack.c.l.b16 %v792
        %v2250 = vunpack.c.l.b16 %v793
        %v2251 = vunpack.c.l.b16 %v794
        %v2252 = vunpack.c.l.b16 %v795
        %v2253 = vunpack.c.l.b16 %v796
        %v2254 = vunpack.c.l.b16 %v797
        %v2255 = vunpack.c.l.b16 %v798
        %v2256 = vunpack.c.l.b16 %v799
        %v2257 = vunpack.c.l.b16 %v800
        %v2258 = vunpack.c.l.b16 %v801
        %v2259 = vunpack.c.l.b16 %v802
        %v2260 = vunpack.c.l.b16 %v803
        %v2261 = vunpack.c.l.b16 %v804
        %v2262 = vunpack.c.l.b16 %v805
        %v2263 = vunpack.c.l.b16 %v806
        %v2264 = vunpack.c.l.b16 %v807
        %v2265 = vunpack.c.l.b16 %v808
        %v2266 = vunpack.c.l.b16 %v809
        %v2267 = vunpack.c.l.b16 %v810
        %v2268 = vunpack.c.l.b16 %v811
        %v2269 = vunpack.c.l.b16 %v812
        %v2270 = vunpack.c.l.b16 %v813
        %v2271 = vunpack.c.l.b16 %v814
        %v2272 = vunpack.c.l.b16 %v815
        %v2273 = vunpack.c.l.b16 %v816
        %v2274 = vpack.c.b16 %v2243, %v2242
        %v2275 = vpack.c.b16 %v2245, %v2244
        %v2276 = vpack.c.b16 %v2247, %v2246
        %v2277 = vpack.c.b16 %v2249, %v2248
        %v2278 = vpack.c.b16 %v2251, %v2250
        %v2279 = vpack.c.b16 %v2253, %v2252
        %v2280 = vpack.c.b16 %v2255, %v2254
        %v2281 = vpack.c.b16 %v2257, %v2256
        %v2282 = vpack.c.b16 %v2259, %v2258
        %v2283 = vpack.c.b16 %v2261, %v2260
        %v2284 = vpack.c.b16 %v2263, %v2262
        %v2285 = vpack.c.b16 %v2265, %v2264
        %v2286 = vpack.c.b16 %v2267, %v2266
        %v2287 = vpack.c.b16 %v2269, %v2268
        %v2288 = vpack.c.b16 %v2271, %v2270
        %v2289 = vpack.c.b16 %v2273, %v2272
        %2290 = vrot.lane.b32.xlu0 %v2274, 9
        %v2291 = vpop.permute.xlu0 %2290
        %2292 = vrot.lane.b32.xlu0 %v2275, 9
        %v2293 = vpop.permute.xlu0 %2292
        %2294 = vrot.lane.b32.xlu0 %v2276, 9
        %v2295 = vpop.permute.xlu0 %2294
        %2296 = vrot.lane.b32.xlu0 %v2277, 9
        %v2297 = vpop.permute.xlu0 %2296
        %2298 = vrot.lane.b32.xlu0 %v2278, 9
        %v2299 = vpop.permute.xlu0 %2298
        %2300 = vrot.lane.b32.xlu0 %v2279, 9
        %v2301 = vpop.permute.xlu0 %2300
        %2302 = vrot.lane.b32.xlu0 %v2280, 9
        %v2303 = vpop.permute.xlu0 %2302
        %2304 = vrot.lane.b32.xlu0 %v2281, 9
        %v2305 = vpop.permute.xlu0 %2304
        %2306 = vrot.lane.b32.xlu0 %v2282, 9
        %v2307 = vpop.permute.xlu0 %2306
        %2308 = vrot.lane.b32.xlu0 %v2283, 9
        %v2309 = vpop.permute.xlu0 %2308
        %2310 = vrot.lane.b32.xlu0 %v2284, 9
        %v2311 = vpop.permute.xlu0 %2310
        %2312 = vrot.lane.b32.xlu0 %v2285, 9
        %v2313 = vpop.permute.xlu0 %2312
        %2314 = vrot.lane.b32.xlu0 %v2286, 9
        %v2315 = vpop.permute.xlu0 %2314
        %2316 = vrot.lane.b32.xlu0 %v2287, 9
        %v2317 = vpop.permute.xlu0 %2316
        %2318 = vrot.lane.b32.xlu0 %v2288, 9
        %v2319 = vpop.permute.xlu0 %2318
        %2320 = vrot.lane.b32.xlu0 %v2289, 9
        %v2321 = vpop.permute.xlu0 %2320
        %v2322 = vunpack.c.l.b16 %v846
        %v2323 = vunpack.c.l.b16 %v856
        %v2324 = vunpack.c.l.b16 %v870
        %v2325 = vunpack.c.l.b16 %v880
        %v2326 = vunpack.c.l.b16 %v894
        %v2327 = vunpack.c.l.b16 %v904
        %v2328 = vunpack.c.l.b16 %v918
        %v2329 = vunpack.c.l.b16 %v928
        %v2330 = vunpack.c.l.b16 %v942
        %v2331 = vunpack.c.l.b16 %v952
        %v2332 = vunpack.c.l.b16 %v966
        %v2333 = vunpack.c.l.b16 %v976
        %v2334 = vunpack.c.l.b16 %v990
        %v2335 = vunpack.c.l.b16 %v1000
        %v2336 = vunpack.c.l.b16 %v1014
        %v2337 = vunpack.c.l.b16 %v1024
        %v2338 = vunpack.c.l.b16 %v1038
        %v2339 = vunpack.c.l.b16 %v1048
        %v2340 = vunpack.c.l.b16 %v1062
        %v2341 = vunpack.c.l.b16 %v1072
        %v2342 = vunpack.c.l.b16 %v1086
        %v2343 = vunpack.c.l.b16 %v1096
        %v2344 = vunpack.c.l.b16 %v1110
        %v2345 = vunpack.c.l.b16 %v1120
        %v2346 = vunpack.c.l.b16 %v1134
        %v2347 = vunpack.c.l.b16 %v1144
        %v2348 = vunpack.c.l.b16 %v1158
        %v2349 = vunpack.c.l.b16 %v1168
        %v2350 = vunpack.c.l.b16 %v1182
        %v2351 = vunpack.c.l.b16 %v1192
        %v2352 = vunpack.c.l.b16 %v1206
        %v2353 = vunpack.c.l.b16 %v1216
        %v2354 = vpack.c.b16 %v2323, %v2322
        %v2355 = vpack.c.b16 %v2325, %v2324
        %v2356 = vpack.c.b16 %v2327, %v2326
        %v2357 = vpack.c.b16 %v2329, %v2328
        %v2358 = vpack.c.b16 %v2331, %v2330
        %v2359 = vpack.c.b16 %v2333, %v2332
        %v2360 = vpack.c.b16 %v2335, %v2334
        %v2361 = vpack.c.b16 %v2337, %v2336
        %v2362 = vpack.c.b16 %v2339, %v2338
        %v2363 = vpack.c.b16 %v2341, %v2340
        %v2364 = vpack.c.b16 %v2343, %v2342
        %v2365 = vpack.c.b16 %v2345, %v2344
        %v2366 = vpack.c.b16 %v2347, %v2346
        %v2367 = vpack.c.b16 %v2349, %v2348
        %v2368 = vpack.c.b16 %v2351, %v2350
        %v2369 = vpack.c.b16 %v2353, %v2352
        %2370 = vrot.lane.b32.xlu0 %v2354, 12
        %v2371 = vpop.permute.xlu0 %2370
        %2372 = vrot.lane.b32.xlu0 %v2355, 12
        %v2373 = vpop.permute.xlu0 %2372
        %2374 = vrot.lane.b32.xlu0 %v2356, 12
        %v2375 = vpop.permute.xlu0 %2374
        %2376 = vrot.lane.b32.xlu0 %v2357, 12
        %v2377 = vpop.permute.xlu0 %2376
        %2378 = vrot.lane.b32.xlu0 %v2358, 12
        %v2379 = vpop.permute.xlu0 %2378
        %2380 = vrot.lane.b32.xlu0 %v2359, 12
        %v2381 = vpop.permute.xlu0 %2380
        %2382 = vrot.lane.b32.xlu0 %v2360, 12
        %v2383 = vpop.permute.xlu0 %2382
        %2384 = vrot.lane.b32.xlu0 %v2361, 12
        %v2385 = vpop.permute.xlu0 %2384
        %2386 = vrot.lane.b32.xlu0 %v2362, 12
        %v2387 = vpop.permute.xlu0 %2386
        %2388 = vrot.lane.b32.xlu0 %v2363, 12
        %v2389 = vpop.permute.xlu0 %2388
        %2390 = vrot.lane.b32.xlu0 %v2364, 12
        %v2391 = vpop.permute.xlu0 %2390
        %2392 = vrot.lane.b32.xlu0 %v2365, 12
        %v2393 = vpop.permute.xlu0 %2392
        %2394 = vrot.lane.b32.xlu0 %v2366, 12
        %v2395 = vpop.permute.xlu0 %2394
        %2396 = vrot.lane.b32.xlu0 %v2367, 12
        %v2397 = vpop.permute.xlu0 %2396
        %2398 = vrot.lane.b32.xlu0 %v2368, 12
        %v2399 = vpop.permute.xlu0 %2398
        %2400 = vrot.lane.b32.xlu0 %v2369, 12
        %v2401 = vpop.permute.xlu0 %2400
        %v2402 = vunpack.c.l.b16 %v1284
        %v2403 = vunpack.c.l.b16 %v1287
        %v2404 = vunpack.c.l.b16 %v1291
        %v2405 = vunpack.c.l.b16 %v1294
        %v2406 = vunpack.c.l.b16 %v1298
        %v2407 = vunpack.c.l.b16 %v1301
        %v2408 = vunpack.c.l.b16 %v1305
        %v2409 = vunpack.c.l.b16 %v1308
        %v2410 = vunpack.c.l.b16 %v1312
        %v2411 = vunpack.c.l.b16 %v1315
        %v2412 = vunpack.c.l.b16 %v1319
        %v2413 = vunpack.c.l.b16 %v1322
        %v2414 = vunpack.c.l.b16 %v1326
        %v2415 = vunpack.c.l.b16 %v1329
        %v2416 = vunpack.c.l.b16 %v1333
        %v2417 = vunpack.c.l.b16 %v1336
        %v2418 = vunpack.c.l.b16 %v1340
        %v2419 = vunpack.c.l.b16 %v1343
        %v2420 = vunpack.c.l.b16 %v1347
        %v2421 = vunpack.c.l.b16 %v1350
        %v2422 = vunpack.c.l.b16 %v1354
        %v2423 = vunpack.c.l.b16 %v1357
        %v2424 = vunpack.c.l.b16 %v1361
        %v2425 = vunpack.c.l.b16 %v1364
        %v2426 = vunpack.c.l.b16 %v1368
        %v2427 = vunpack.c.l.b16 %v1371
        %v2428 = vunpack.c.l.b16 %v1375
        %v2429 = vunpack.c.l.b16 %v1378
        %v2430 = vunpack.c.l.b16 %v1382
        %v2431 = vunpack.c.l.b16 %v1385
        %v2432 = vunpack.c.l.b16 %v1389
        %v2433 = vunpack.c.l.b16 %v1392
        %v2434 = vpack.c.b16 %v2403, %v2402
        %v2435 = vpack.c.b16 %v2405, %v2404
        %v2436 = vpack.c.b16 %v2407, %v2406
        %v2437 = vpack.c.b16 %v2409, %v2408
        %v2438 = vpack.c.b16 %v2411, %v2410
        %v2439 = vpack.c.b16 %v2413, %v2412
        %v2440 = vpack.c.b16 %v2415, %v2414
        %v2441 = vpack.c.b16 %v2417, %v2416
        %v2442 = vpack.c.b16 %v2419, %v2418
        %v2443 = vpack.c.b16 %v2421, %v2420
        %v2444 = vpack.c.b16 %v2423, %v2422
        %v2445 = vpack.c.b16 %v2425, %v2424
        %v2446 = vpack.c.b16 %v2427, %v2426
        %v2447 = vpack.c.b16 %v2429, %v2428
        %v2448 = vpack.c.b16 %v2431, %v2430
        %v2449 = vpack.c.b16 %v2433, %v2432
        %2450 = vrot.lane.b32.xlu0 %v2434, 15
        %v2451 = vpop.permute.xlu0 %2450
        %2452 = vrot.lane.b32.xlu0 %v2435, 15
        %v2453 = vpop.permute.xlu0 %2452
        %2454 = vrot.lane.b32.xlu0 %v2436, 15
        %v2455 = vpop.permute.xlu0 %2454
        %2456 = vrot.lane.b32.xlu0 %v2437, 15
        %v2457 = vpop.permute.xlu0 %2456
        %2458 = vrot.lane.b32.xlu0 %v2438, 15
        %v2459 = vpop.permute.xlu0 %2458
        %2460 = vrot.lane.b32.xlu0 %v2439, 15
        %v2461 = vpop.permute.xlu0 %2460
        %2462 = vrot.lane.b32.xlu0 %v2440, 15
        %v2463 = vpop.permute.xlu0 %2462
        %2464 = vrot.lane.b32.xlu0 %v2441, 15
        %v2465 = vpop.permute.xlu0 %2464
        %2466 = vrot.lane.b32.xlu0 %v2442, 15
        %v2467 = vpop.permute.xlu0 %2466
        %2468 = vrot.lane.b32.xlu0 %v2443, 15
        %v2469 = vpop.permute.xlu0 %2468
        %2470 = vrot.lane.b32.xlu0 %v2444, 15
        %v2471 = vpop.permute.xlu0 %2470
        %2472 = vrot.lane.b32.xlu0 %v2445, 15
        %v2473 = vpop.permute.xlu0 %2472
        %2474 = vrot.lane.b32.xlu0 %v2446, 15
        %v2475 = vpop.permute.xlu0 %2474
        %2476 = vrot.lane.b32.xlu0 %v2447, 15
        %v2477 = vpop.permute.xlu0 %2476
        %2478 = vrot.lane.b32.xlu0 %v2448, 15
        %v2479 = vpop.permute.xlu0 %2478
        %2480 = vrot.lane.b32.xlu0 %v2449, 15
        %v2481 = vpop.permute.xlu0 %2480
        %v2498 = vunpack.c.l.b16 %v1394
        %v2499 = vunpack.c.l.b16 %v1395
        %v2500 = vunpack.c.l.b16 %v1396
        %v2501 = vunpack.c.l.b16 %v1397
        %v2502 = vunpack.c.l.b16 %v1398
        %v2503 = vunpack.c.l.b16 %v1399
        %v2504 = vunpack.c.l.b16 %v1400
        %v2505 = vunpack.c.l.b16 %v1401
        %v2506 = vunpack.c.l.b16 %v1402
        %v2507 = vunpack.c.l.b16 %v1403
        %v2508 = vunpack.c.l.b16 %v1404
        %v2509 = vunpack.c.l.b16 %v1405
        %v2510 = vunpack.c.l.b16 %v1406
        %v2511 = vunpack.c.l.b16 %v1407
        %v2512 = vunpack.c.l.b16 %v1408
        %v2513 = vunpack.c.l.b16 %v1409
        %v2514 = vunpack.c.l.b16 %v1410
        %v2515 = vunpack.c.l.b16 %v1411
        %v2516 = vunpack.c.l.b16 %v1412
        %v2517 = vunpack.c.l.b16 %v1413
        %v2518 = vunpack.c.l.b16 %v1414
        %v2519 = vunpack.c.l.b16 %v1415
        %v2520 = vunpack.c.l.b16 %v1416
        %v2521 = vunpack.c.l.b16 %v1417
        %v2522 = vunpack.c.l.b16 %v1418
        %v2523 = vunpack.c.l.b16 %v1419
        %v2524 = vunpack.c.l.b16 %v1420
        %v2525 = vunpack.c.l.b16 %v1421
        %v2526 = vunpack.c.l.b16 %v1422
        %v2527 = vunpack.c.l.b16 %v1423
        %v2528 = vunpack.c.l.b16 %v1424
        %v2529 = vunpack.c.l.b16 %v1425
        %v2530 = vpack.c.b16 %v2499, %v2498
        %v2531 = vpack.c.b16 %v2501, %v2500
        %v2532 = vpack.c.b16 %v2503, %v2502
        %v2533 = vpack.c.b16 %v2505, %v2504
        %v2534 = vpack.c.b16 %v2507, %v2506
        %v2535 = vpack.c.b16 %v2509, %v2508
        %v2536 = vpack.c.b16 %v2511, %v2510
        %v2537 = vpack.c.b16 %v2513, %v2512
        %v2538 = vpack.c.b16 %v2515, %v2514
        %v2539 = vpack.c.b16 %v2517, %v2516
        %v2540 = vpack.c.b16 %v2519, %v2518
        %v2541 = vpack.c.b16 %v2521, %v2520
        %v2542 = vpack.c.b16 %v2523, %v2522
        %v2543 = vpack.c.b16 %v2525, %v2524
        %v2544 = vpack.c.b16 %v2527, %v2526
        %v2545 = vpack.c.b16 %v2529, %v2528
        %2546 = vrot.lane.b32.xlu0 %v2530, 18
        %v2547 = vpop.permute.xlu0 %2546
        %2548 = vrot.lane.b32.xlu0 %v2531, 18
        %v2549 = vpop.permute.xlu0 %2548
        %2550 = vrot.lane.b32.xlu0 %v2532, 18
        %v2551 = vpop.permute.xlu0 %2550
        %2552 = vrot.lane.b32.xlu0 %v2533, 18
        %v2553 = vpop.permute.xlu0 %2552
        %2554 = vrot.lane.b32.xlu0 %v2534, 18
        %v2555 = vpop.permute.xlu0 %2554
        %2556 = vrot.lane.b32.xlu0 %v2535, 18
        %v2557 = vpop.permute.xlu0 %2556
        %2558 = vrot.lane.b32.xlu0 %v2536, 18
        %v2559 = vpop.permute.xlu0 %2558
        %2560 = vrot.lane.b32.xlu0 %v2537, 18
        %v2561 = vpop.permute.xlu0 %2560
        %2562 = vrot.lane.b32.xlu0 %v2538, 18
        %v2563 = vpop.permute.xlu0 %2562
        %2564 = vrot.lane.b32.xlu0 %v2539, 18
        %v2565 = vpop.permute.xlu0 %2564
        %2566 = vrot.lane.b32.xlu0 %v2540, 18
        %v2567 = vpop.permute.xlu0 %2566
        %2568 = vrot.lane.b32.xlu0 %v2541, 18
        %v2569 = vpop.permute.xlu0 %2568
        %2570 = vrot.lane.b32.xlu0 %v2542, 18
        %v2571 = vpop.permute.xlu0 %2570
        %2572 = vrot.lane.b32.xlu0 %v2543, 18
        %v2573 = vpop.permute.xlu0 %2572
        %2574 = vrot.lane.b32.xlu0 %v2544, 18
        %v2575 = vpop.permute.xlu0 %2574
        %2576 = vrot.lane.b32.xlu0 %v2545, 18
        %v2577 = vpop.permute.xlu0 %2576
        %v2578 = vunpack.c.l.b16 %v1455
        %v2579 = vunpack.c.l.b16 %v1465
        %v2580 = vunpack.c.l.b16 %v1479
        %v2581 = vunpack.c.l.b16 %v1489
        %v2582 = vunpack.c.l.b16 %v1503
        %v2583 = vunpack.c.l.b16 %v1513
        %v2584 = vunpack.c.l.b16 %v1527
        %v2585 = vunpack.c.l.b16 %v1537
        %v2586 = vunpack.c.l.b16 %v1551
        %v2587 = vunpack.c.l.b16 %v1561
        %v2588 = vunpack.c.l.b16 %v1575
        %v2589 = vunpack.c.l.b16 %v1585
        %v2590 = vunpack.c.l.b16 %v1599
        %v2591 = vunpack.c.l.b16 %v1609
        %v2592 = vunpack.c.l.b16 %v1623
        %v2593 = vunpack.c.l.b16 %v1633
        %v2594 = vunpack.c.l.b16 %v1647
        %v2595 = vunpack.c.l.b16 %v1657
        %v2596 = vunpack.c.l.b16 %v1671
        %v2597 = vunpack.c.l.b16 %v1681
        %v2598 = vunpack.c.l.b16 %v1695
        %v2599 = vunpack.c.l.b16 %v1705
        %v2600 = vunpack.c.l.b16 %v1719
        %v2601 = vunpack.c.l.b16 %v1729
        %v2602 = vunpack.c.l.b16 %v1743
        %v2603 = vunpack.c.l.b16 %v1753
        %v2604 = vunpack.c.l.b16 %v1767
        %v2605 = vunpack.c.l.b16 %v1777
        %v2606 = vunpack.c.l.b16 %v1791
        %v2607 = vunpack.c.l.b16 %v1801
        %v2608 = vunpack.c.l.b16 %v1815
        %v2609 = vunpack.c.l.b16 %v1825
        %v2610 = vpack.c.b16 %v2579, %v2578
        %v2611 = vpack.c.b16 %v2581, %v2580
        %v2612 = vpack.c.b16 %v2583, %v2582
        %v2613 = vpack.c.b16 %v2585, %v2584
        %v2614 = vpack.c.b16 %v2587, %v2586
        %v2615 = vpack.c.b16 %v2589, %v2588
        %v2616 = vpack.c.b16 %v2591, %v2590
        %v2617 = vpack.c.b16 %v2593, %v2592
        %v2618 = vpack.c.b16 %v2595, %v2594
        %v2619 = vpack.c.b16 %v2597, %v2596
        %v2620 = vpack.c.b16 %v2599, %v2598
        %v2621 = vpack.c.b16 %v2601, %v2600
        %v2622 = vpack.c.b16 %v2603, %v2602
        %v2623 = vpack.c.b16 %v2605, %v2604
        %v2624 = vpack.c.b16 %v2607, %v2606
        %v2625 = vpack.c.b16 %v2609, %v2608
        %2626 = vrot.lane.b32.xlu0 %v2610, 21
        %v2627 = vpop.permute.xlu0 %2626
        %2628 = vrot.lane.b32.xlu0 %v2611, 21
        %v2629 = vpop.permute.xlu0 %2628
        %2630 = vrot.lane.b32.xlu0 %v2612, 21
        %v2631 = vpop.permute.xlu0 %2630
        %2632 = vrot.lane.b32.xlu0 %v2613, 21
        %v2633 = vpop.permute.xlu0 %2632
        %2634 = vrot.lane.b32.xlu0 %v2614, 21
        %v2635 = vpop.permute.xlu0 %2634
        %2636 = vrot.lane.b32.xlu0 %v2615, 21
        %v2637 = vpop.permute.xlu0 %2636
        %2638 = vrot.lane.b32.xlu0 %v2616, 21
        %v2639 = vpop.permute.xlu0 %2638
        %2640 = vrot.lane.b32.xlu0 %v2617, 21
        %v2641 = vpop.permute.xlu0 %2640
        %2642 = vrot.lane.b32.xlu0 %v2618, 21
        %v2643 = vpop.permute.xlu0 %2642
        %2644 = vrot.lane.b32.xlu0 %v2619, 21
        %v2645 = vpop.permute.xlu0 %2644
        %2646 = vrot.lane.b32.xlu0 %v2620, 21
        %v2647 = vpop.permute.xlu0 %2646
        %2648 = vrot.lane.b32.xlu0 %v2621, 21
        %v2649 = vpop.permute.xlu0 %2648
        %2650 = vrot.lane.b32.xlu0 %v2622, 21
        %v2651 = vpop.permute.xlu0 %2650
        %2652 = vrot.lane.b32.xlu0 %v2623, 21
        %v2653 = vpop.permute.xlu0 %2652
        %2654 = vrot.lane.b32.xlu0 %v2624, 21
        %v2655 = vpop.permute.xlu0 %2654
        %2656 = vrot.lane.b32.xlu0 %v2625, 21
        %v2657 = vpop.permute.xlu0 %2656
        %v2658 = vunpack.c.l.b16 %v1893
        %v2659 = vunpack.c.l.b16 %v1896
        %v2660 = vunpack.c.l.b16 %v1900
        %v2661 = vunpack.c.l.b16 %v1903
        %v2662 = vunpack.c.l.b16 %v1907
        %v2663 = vunpack.c.l.b16 %v1910
        %v2664 = vunpack.c.l.b16 %v1914
        %v2665 = vunpack.c.l.b16 %v1917
        %v2666 = vunpack.c.l.b16 %v1921
        %v2667 = vunpack.c.l.b16 %v1924
        %v2668 = vunpack.c.l.b16 %v1928
        %v2669 = vunpack.c.l.b16 %v1931
        %v2670 = vunpack.c.l.b16 %v1935
        %v2671 = vunpack.c.l.b16 %v1938
        %v2672 = vunpack.c.l.b16 %v1942
        %v2673 = vunpack.c.l.b16 %v1945
        %v2674 = vunpack.c.l.b16 %v1949
        %v2675 = vunpack.c.l.b16 %v1952
        %v2676 = vunpack.c.l.b16 %v1956
        %v2677 = vunpack.c.l.b16 %v1959
        %v2678 = vunpack.c.l.b16 %v1963
        %v2679 = vunpack.c.l.b16 %v1966
        %v2680 = vunpack.c.l.b16 %v1970
        %v2681 = vunpack.c.l.b16 %v1973
        %v2682 = vunpack.c.l.b16 %v1977
        %v2683 = vunpack.c.l.b16 %v1980
        %v2684 = vunpack.c.l.b16 %v1984
        %v2685 = vunpack.c.l.b16 %v1987
        %v2686 = vunpack.c.l.b16 %v1991
        %v2687 = vunpack.c.l.b16 %v1994
        %v2688 = vunpack.c.l.b16 %v1998
        %v2689 = vunpack.c.l.b16 %v2001
        %v2690 = vpack.c.b16 %v2659, %v2658
        %v2691 = vpack.c.b16 %v2661, %v2660
        %v2692 = vpack.c.b16 %v2663, %v2662
        %v2693 = vpack.c.b16 %v2665, %v2664
        %v2694 = vpack.c.b16 %v2667, %v2666
        %v2695 = vpack.c.b16 %v2669, %v2668
        %v2696 = vpack.c.b16 %v2671, %v2670
        %v2697 = vpack.c.b16 %v2673, %v2672
        %v2698 = vpack.c.b16 %v2675, %v2674
        %v2699 = vpack.c.b16 %v2677, %v2676
        %v2700 = vpack.c.b16 %v2679, %v2678
        %v2701 = vpack.c.b16 %v2681, %v2680
        %v2702 = vpack.c.b16 %v2683, %v2682
        %v2703 = vpack.c.b16 %v2685, %v2684
        %v2704 = vpack.c.b16 %v2687, %v2686
        %v2705 = vpack.c.b16 %v2689, %v2688
        %2706 = vrot.lane.b32.xlu0 %v2690, 24
        %v2707 = vpop.permute.xlu0 %2706
        %2708 = vrot.lane.b32.xlu0 %v2691, 24
        %v2709 = vpop.permute.xlu0 %2708
        %2710 = vrot.lane.b32.xlu0 %v2692, 24
        %v2711 = vpop.permute.xlu0 %2710
        %2712 = vrot.lane.b32.xlu0 %v2693, 24
        %v2713 = vpop.permute.xlu0 %2712
        %2714 = vrot.lane.b32.xlu0 %v2694, 24
        %v2715 = vpop.permute.xlu0 %2714
        %2716 = vrot.lane.b32.xlu0 %v2695, 24
        %v2717 = vpop.permute.xlu0 %2716
        %2718 = vrot.lane.b32.xlu0 %v2696, 24
        %v2719 = vpop.permute.xlu0 %2718
        %2720 = vrot.lane.b32.xlu0 %v2697, 24
        %v2721 = vpop.permute.xlu0 %2720
        %2722 = vrot.lane.b32.xlu0 %v2698, 24
        %v2723 = vpop.permute.xlu0 %2722
        %2724 = vrot.lane.b32.xlu0 %v2699, 24
        %v2725 = vpop.permute.xlu0 %2724
        %2726 = vrot.lane.b32.xlu0 %v2700, 24
        %v2727 = vpop.permute.xlu0 %2726
        %2728 = vrot.lane.b32.xlu0 %v2701, 24
        %v2729 = vpop.permute.xlu0 %2728
        %2730 = vrot.lane.b32.xlu0 %v2702, 24
        %v2731 = vpop.permute.xlu0 %2730
        %2732 = vrot.lane.b32.xlu0 %v2703, 24
        %v2733 = vpop.permute.xlu0 %2732
        %2734 = vrot.lane.b32.xlu0 %v2704, 24
        %v2735 = vpop.permute.xlu0 %2734
        %2736 = vrot.lane.b32.xlu0 %v2705, 24
        %v2737 = vpop.permute.xlu0 %2736
        %vm2738 = vcmask 23552
        %v2741 = vsel %vm2738, %v2050, %v2115
        %v2744 = vsel %vm2738, %v2051, %v2117
        %v2747 = vsel %vm2738, %v2052, %v2119
        %v2750 = vsel %vm2738, %v2053, %v2121
        %v2753 = vsel %vm2738, %v2054, %v2123
        %v2756 = vsel %vm2738, %v2055, %v2125
        %v2759 = vsel %vm2738, %v2056, %v2127
        %v2762 = vsel %vm2738, %v2057, %v2129
        %v2765 = vsel %vm2738, %v2058, %v2131
        %v2768 = vsel %vm2738, %v2059, %v2133
        %v2771 = vsel %vm2738, %v2060, %v2135
        %v2774 = vsel %vm2738, %v2061, %v2137
        %v2777 = vsel %vm2738, %v2062, %v2139
        %v2780 = vsel %vm2738, %v2063, %v2141
        %v2783 = vsel %vm2738, %v2064, %v2143
        %v2786 = vsel %vm2738, %v2065, %v2145
        %vm2787 = vcmask 48128
        %v2789 = vsel %vm2787, %v2741, %v2195
        %v2791 = vsel %vm2787, %v2744, %v2197
        %v2793 = vsel %vm2787, %v2747, %v2199
        %v2795 = vsel %vm2787, %v2750, %v2201
        %v2797 = vsel %vm2787, %v2753, %v2203
        %v2799 = vsel %vm2787, %v2756, %v2205
        %v2801 = vsel %vm2787, %v2759, %v2207
        %v2803 = vsel %vm2787, %v2762, %v2209
        %v2805 = vsel %vm2787, %v2765, %v2211
        %v2807 = vsel %vm2787, %v2768, %v2213
        %v2809 = vsel %vm2787, %v2771, %v2215
        %v2811 = vsel %vm2787, %v2774, %v2217
        %v2813 = vsel %vm2787, %v2777, %v2219
        %v2815 = vsel %vm2787, %v2780, %v2221
        %v2817 = vsel %vm2787, %v2783, %v2223
        %v2819 = vsel %vm2787, %v2786, %v2225
        %vm2820 = vcmask 72704
        %v2822 = vsel %vm2820, %v2789, %v2291
        %v2824 = vsel %vm2820, %v2791, %v2293
        %v2826 = vsel %vm2820, %v2793, %v2295
        %v2828 = vsel %vm2820, %v2795, %v2297
        %v2830 = vsel %vm2820, %v2797, %v2299
        %v2832 = vsel %vm2820, %v2799, %v2301
        %v2834 = vsel %vm2820, %v2801, %v2303
        %v2836 = vsel %vm2820, %v2803, %v2305
        %v2838 = vsel %vm2820, %v2805, %v2307
        %v2840 = vsel %vm2820, %v2807, %v2309
        %v2842 = vsel %vm2820, %v2809, %v2311
        %v2844 = vsel %vm2820, %v2811, %v2313
        %v2846 = vsel %vm2820, %v2813, %v2315
        %v2848 = vsel %vm2820, %v2815, %v2317
        %v2850 = vsel %vm2820, %v2817, %v2319
        %v2852 = vsel %vm2820, %v2819, %v2321
        %vm2853 = vcmask 97280
        %v2855 = vsel %vm2853, %v2822, %v2371
        %v2857 = vsel %vm2853, %v2824, %v2373
        %v2859 = vsel %vm2853, %v2826, %v2375
        %v2861 = vsel %vm2853, %v2828, %v2377
        %v2863 = vsel %vm2853, %v2830, %v2379
        %v2865 = vsel %vm2853, %v2832, %v2381
        %v2867 = vsel %vm2853, %v2834, %v2383
        %v2869 = vsel %vm2853, %v2836, %v2385
        %v2871 = vsel %vm2853, %v2838, %v2387
        %v2873 = vsel %vm2853, %v2840, %v2389
        %v2875 = vsel %vm2853, %v2842, %v2391
        %v2877 = vsel %vm2853, %v2844, %v2393
        %v2879 = vsel %vm2853, %v2846, %v2395
        %v2881 = vsel %vm2853, %v2848, %v2397
        %v2883 = vsel %vm2853, %v2850, %v2399
        %v2885 = vsel %vm2853, %v2852, %v2401
        %vm2886 = vcmask 121856
        %v2888 = vsel %vm2886, %v2855, %v2451
        %v2890 = vsel %vm2886, %v2857, %v2453
        %v2892 = vsel %vm2886, %v2859, %v2455
        %v2894 = vsel %vm2886, %v2861, %v2457
        %v2896 = vsel %vm2886, %v2863, %v2459
        %v2898 = vsel %vm2886, %v2865, %v2461
        %v2900 = vsel %vm2886, %v2867, %v2463
        %v2902 = vsel %vm2886, %v2869, %v2465
        %v2904 = vsel %vm2886, %v2871, %v2467
        %v2906 = vsel %vm2886, %v2873, %v2469
        %v2908 = vsel %vm2886, %v2875, %v2471
        %v2910 = vsel %vm2886, %v2877, %v2473
        %v2912 = vsel %vm2886, %v2879, %v2475
        %v2914 = vsel %vm2886, %v2881, %v2477
        %v2916 = vsel %vm2886, %v2883, %v2479
        %v2918 = vsel %vm2886, %v2885, %v2481
        %vm2919 = vcmask 146432
        %v2921 = vsel %vm2919, %v2888, %v2547
        %v2923 = vsel %vm2919, %v2890, %v2549
        %v2925 = vsel %vm2919, %v2892, %v2551
        %v2927 = vsel %vm2919, %v2894, %v2553
        %v2929 = vsel %vm2919, %v2896, %v2555
        %v2931 = vsel %vm2919, %v2898, %v2557
        %v2933 = vsel %vm2919, %v2900, %v2559
        %v2935 = vsel %vm2919, %v2902, %v2561
        %v2937 = vsel %vm2919, %v2904, %v2563
        %v2939 = vsel %vm2919, %v2906, %v2565
        %v2941 = vsel %vm2919, %v2908, %v2567
        %v2943 = vsel %vm2919, %v2910, %v2569
        %v2945 = vsel %vm2919, %v2912, %v2571
        %v2947 = vsel %vm2919, %v2914, %v2573
        %v2949 = vsel %vm2919, %v2916, %v2575
        %v2951 = vsel %vm2919, %v2918, %v2577
        %vm2952 = vcmask 171008
        %v2954 = vsel %vm2952, %v2921, %v2627
        %v2956 = vsel %vm2952, %v2923, %v2629
        %v2958 = vsel %vm2952, %v2925, %v2631
        %v2960 = vsel %vm2952, %v2927, %v2633
        %v2962 = vsel %vm2952, %v2929, %v2635
        %v2964 = vsel %vm2952, %v2931, %v2637
        %v2966 = vsel %vm2952, %v2933, %v2639
        %v2968 = vsel %vm2952, %v2935, %v2641
        %v2970 = vsel %vm2952, %v2937, %v2643
        %v2972 = vsel %vm2952, %v2939, %v2645
        %v2974 = vsel %vm2952, %v2941, %v2647
        %v2976 = vsel %vm2952, %v2943, %v2649
        %v2978 = vsel %vm2952, %v2945, %v2651
        %v2980 = vsel %vm2952, %v2947, %v2653
        %v2982 = vsel %vm2952, %v2949, %v2655
        %v2984 = vsel %vm2952, %v2951, %v2657
        %vm2985 = vcmask 195584
        %v2987 = vsel %vm2985, %v2954, %v2707
        %v2989 = vsel %vm2985, %v2956, %v2709
        %v2991 = vsel %vm2985, %v2958, %v2711
        %v2993 = vsel %vm2985, %v2960, %v2713
        %v2995 = vsel %vm2985, %v2962, %v2715
        %v2997 = vsel %vm2985, %v2964, %v2717
        %v2999 = vsel %vm2985, %v2966, %v2719
        %v3001 = vsel %vm2985, %v2968, %v2721
        %v3003 = vsel %vm2985, %v2970, %v2723
        %v3005 = vsel %vm2985, %v2972, %v2725
        %v3007 = vsel %vm2985, %v2974, %v2727
        %v3009 = vsel %vm2985, %v2976, %v2729
        %v3011 = vsel %vm2985, %v2978, %v2731
        %v3013 = vsel %vm2985, %v2980, %v2733
        %v3015 = vsel %vm2985, %v2982, %v2735
        %v3017 = vsel %vm2985, %v2984, %v2737
        %v3018 = vld [vmem:[%s1] sm:$0xf]
        %v3019 = vld [vmem:[%s1 + $0x4] sm:$0xf]
        %v3020 = vld [vmem:[%s1 + $0x8] sm:$0xf]
        %v3021 = vld [vmem:[%s1 + $0xc] sm:$0x3]
        %v3022 = vld [vmem:[%s2] sm:$0x1]
        %v3024 = vlaneseq
        %v3025 = vshrl.u32 %v3024, 7
        %v3026 = vsub.s32 0, %v3025
        %v3027 = vrot.slane %v3022, %v3026
        %v3033 = vunpack.c.l.b16 %v3018
        %v3034 = vunpack.c.l.b16 %v3019
        %v3035 = vunpack.c.l.b16 %v3020
        %v3036 = vunpack.c.l.b16 %v3021
        %v3037 = vpack.c.b16 %v3034, %v3033
        %v3038 = vpack.c.b16 %v3036, %v3035
        %vm3040 = vcmask 220160
        %v3041 = vsel %vm3040, %v2987, 0
        %v3043 = vsel %vm3040, %v2989, 0
        %v3045 = vsel %vm3040, %v2991, 0
        %v3047 = vsel %vm3040, %v2993, 0
        %v3049 = vsel %vm3040, %v2995, 0
        %v3051 = vsel %vm3040, %v2997, 0
        %v3053 = vsel %vm3040, %v2999, 0
        %v3055 = vsel %vm3040, %v3001, 0
        %v3057 = vsel %vm3040, %v3003, 0
        %v3059 = vsel %vm3040, %v3005, 0
        %v3061 = vsel %vm3040, %v3007, 0
        %v3063 = vsel %vm3040, %v3009, 0
        %v3065 = vsel %vm3040, %v3011, 0
        %v3067 = vsel %vm3040, %v3013, 0
        %v3069 = vsel %vm3040, %v3015, 0
        %v3071 = vsel %vm3040, %v3017, 0
        %vm3073 = vcmask 1044480
        %vm3074 = vcmask 1045504
        %v3075 = vsel %vm3073, 4294967295, 65535
        %v3076 = vsel %vm3074, %v3075, 0
        %v3078 = vand.u32 %v3038, %v3076
        %3080 = vmatprep.subr.bf16.mxu0 0
        %3081 = vmatpush1.bf16.msra.mxu0 %v3037
        %3082 = vmatprep.subr.bf16.mxu0 0
        %3083 = vmatpush1.bf16.msra.mxu0 %v3078
        %3084 = vmatprep.subr.bf16.mxu0 0
        %3085 = vmatpush1.bf16.msra.mxu0 0
        %3086 = vmatprep.subr.bf16.mxu0 0
        %3087 = vmatpush1.bf16.msra.mxu0 0
        %3088 = vmatprep.subr.bf16.mxu0 0
        %3089 = vmatpush1.bf16.msra.mxu0 0
        %3090 = vmatprep.subr.bf16.mxu0 0
        %3091 = vmatpush1.bf16.msra.mxu0 0
        %3092 = vmatprep.subr.bf16.mxu0 0
        %3093 = vmatpush1.bf16.msra.mxu0 0
        %3094 = vmatprep.subr.bf16.mxu0 0
        %3095 = vmatpush1.bf16.msra.mxu0 0
        %3096 = vmatprep.subr.bf16.mxu0 0
        %3097 = vmatpush1.bf16.msra.mxu0 0
        %3098 = vmatprep.subr.bf16.mxu0 0
        %3099 = vmatpush1.bf16.msra.mxu0 0
        %3100 = vmatprep.subr.bf16.mxu0 0
        %3101 = vmatpush1.bf16.msra.mxu0 0
        %3102 = vmatprep.subr.bf16.mxu0 0
        %3103 = vmatpush1.bf16.msra.mxu0 0
        %3104 = vmatprep.subr.bf16.mxu0 0
        %3105 = vmatpush1.bf16.msra.mxu0 0
        %3106 = vmatprep.subr.bf16.mxu0 0
        %3107 = vmatpush1.bf16.msra.mxu0 0
        %3108 = vmatprep.subr.bf16.mxu0 0
        %3109 = vmatpush1.bf16.msra.mxu0 0
        %3110 = vmatprep.subr.bf16.mxu0 0
        %3111 = vmatpush1.bf16.msra.mxu0 0
        %3112 = vmatprep.mubr.bf16.mxu0 0
        %3113 = vmatmul.mubr.bf16.gmra.mrb[0].mxu0 %v3041
        %v3114 = vpop.f32.mrb[0].mxu0
        %v3115 = vadd.f32 %v3027, %v3114
        %v3116 = vpop.f32.mrb[0].mxu0
        %v3117 = vpop.f32.mrb[0].mxu0
        %v3118 = vadd.f32 %v3027, %v3117
        %v3119 = vpop.f32.mrb[0].mxu0
        %3120 = vmatprep.mubr.bf16.mxu0 0
        %3121 = vmatmul.mubr.bf16.gmra.mrb[0].mxu0 %v3043
        %v3122 = vpop.f32.mrb[0].mxu0
        %v3123 = vadd.f32 %v3027, %v3122
        %v3124 = vpop.f32.mrb[0].mxu0
        %v3125 = vpop.f32.mrb[0].mxu0
        %v3126 = vadd.f32 %v3027, %v3125
        %v3127 = vpop.f32.mrb[0].mxu0
        %3128 = vmatprep.mubr.bf16.mxu0 0
        %3129 = vmatmul.mubr.bf16.gmra.mrb[0].mxu0 %v3045
        %v3130 = vpop.f32.mrb[0].mxu0
        %v3131 = vadd.f32 %v3027, %v3130
        %v3132 = vpop.f32.mrb[0].mxu0
        %v3133 = vpop.f32.mrb[0].mxu0
        %v3134 = vadd.f32 %v3027, %v3133
        %v3135 = vpop.f32.mrb[0].mxu0
        %3136 = vmatprep.mubr.bf16.mxu0 0
        %3137 = vmatmul.mubr.bf16.gmra.mrb[0].mxu0 %v3047
        %v3138 = vpop.f32.mrb[0].mxu0
        %v3139 = vadd.f32 %v3027, %v3138
        %v3140 = vpop.f32.mrb[0].mxu0
        %v3141 = vpop.f32.mrb[0].mxu0
        %v3142 = vadd.f32 %v3027, %v3141
        %v3143 = vpop.f32.mrb[0].mxu0
        %3144 = vmatprep.mubr.bf16.mxu0 0
        %3145 = vmatmul.mubr.bf16.gmra.mrb[0].mxu0 %v3049
        %v3146 = vpop.f32.mrb[0].mxu0
        %v3147 = vadd.f32 %v3027, %v3146
        %v3148 = vpop.f32.mrb[0].mxu0
        %v3149 = vpop.f32.mrb[0].mxu0
        %v3150 = vadd.f32 %v3027, %v3149
        %v3151 = vpop.f32.mrb[0].mxu0
        %3152 = vmatprep.mubr.bf16.mxu0 0
        %3153 = vmatmul.mubr.bf16.gmra.mrb[0].mxu0 %v3051
        %v3154 = vpop.f32.mrb[0].mxu0
        %v3155 = vadd.f32 %v3027, %v3154
        %v3156 = vpop.f32.mrb[0].mxu0
        %v3157 = vpop.f32.mrb[0].mxu0
        %v3158 = vadd.f32 %v3027, %v3157
        %v3159 = vpop.f32.mrb[0].mxu0
        %3160 = vmatprep.mubr.bf16.mxu0 0
        %3161 = vmatmul.mubr.bf16.gmra.mrb[0].mxu0 %v3053
        %v3162 = vpop.f32.mrb[0].mxu0
        %v3163 = vadd.f32 %v3027, %v3162
        %v3164 = vpop.f32.mrb[0].mxu0
        %v3165 = vpop.f32.mrb[0].mxu0
        %v3166 = vadd.f32 %v3027, %v3165
        %v3167 = vpop.f32.mrb[0].mxu0
        %3168 = vmatprep.mubr.bf16.mxu0 0
        %3169 = vmatmul.mubr.bf16.gmra.mrb[0].mxu0 %v3055
        %v3170 = vpop.f32.mrb[0].mxu0
        %v3171 = vadd.f32 %v3027, %v3170
        %v3172 = vpop.f32.mrb[0].mxu0
        %v3173 = vpop.f32.mrb[0].mxu0
        %v3174 = vadd.f32 %v3027, %v3173
        %v3175 = vpop.f32.mrb[0].mxu0
        %3176 = vmatprep.mubr.bf16.mxu0 0
        %3177 = vmatmul.mubr.bf16.gmra.mrb[0].mxu0 %v3057
        %v3178 = vpop.f32.mrb[0].mxu0
        %v3179 = vadd.f32 %v3027, %v3178
        %v3180 = vpop.f32.mrb[0].mxu0
        %v3181 = vpop.f32.mrb[0].mxu0
        %v3182 = vadd.f32 %v3027, %v3181
        %v3183 = vpop.f32.mrb[0].mxu0
        %3184 = vmatprep.mubr.bf16.mxu0 0
        %3185 = vmatmul.mubr.bf16.gmra.mrb[0].mxu0 %v3059
        %v3186 = vpop.f32.mrb[0].mxu0
        %v3187 = vadd.f32 %v3027, %v3186
        %v3188 = vpop.f32.mrb[0].mxu0
        %v3189 = vpop.f32.mrb[0].mxu0
        %v3190 = vadd.f32 %v3027, %v3189
        %v3191 = vpop.f32.mrb[0].mxu0
        %3192 = vmatprep.mubr.bf16.mxu0 0
        %3193 = vmatmul.mubr.bf16.gmra.mrb[0].mxu0 %v3061
        %v3194 = vpop.f32.mrb[0].mxu0
        %v3195 = vadd.f32 %v3027, %v3194
        %v3196 = vpop.f32.mrb[0].mxu0
        %v3197 = vpop.f32.mrb[0].mxu0
        %v3198 = vadd.f32 %v3027, %v3197
        %v3199 = vpop.f32.mrb[0].mxu0
        %3200 = vmatprep.mubr.bf16.mxu0 0
        %3201 = vmatmul.mubr.bf16.gmra.mrb[0].mxu0 %v3063
        %v3202 = vpop.f32.mrb[0].mxu0
        %v3203 = vadd.f32 %v3027, %v3202
        %v3204 = vpop.f32.mrb[0].mxu0
        %v3205 = vpop.f32.mrb[0].mxu0
        %v3206 = vadd.f32 %v3027, %v3205
        %v3207 = vpop.f32.mrb[0].mxu0
        %3208 = vmatprep.mubr.bf16.mxu0 0
        %3209 = vmatmul.mubr.bf16.gmra.mrb[0].mxu0 %v3065
        %v3210 = vpop.f32.mrb[0].mxu0
        %v3211 = vadd.f32 %v3027, %v3210
        %v3212 = vpop.f32.mrb[0].mxu0
        %v3213 = vpop.f32.mrb[0].mxu0
        %v3214 = vadd.f32 %v3027, %v3213
        %v3215 = vpop.f32.mrb[0].mxu0
        %3216 = vmatprep.mubr.bf16.mxu0 0
        %3217 = vmatmul.mubr.bf16.gmra.mrb[0].mxu0 %v3067
        %v3218 = vpop.f32.mrb[0].mxu0
        %v3219 = vadd.f32 %v3027, %v3218
        %v3220 = vpop.f32.mrb[0].mxu0
        %v3221 = vpop.f32.mrb[0].mxu0
        %v3222 = vadd.f32 %v3027, %v3221
        %v3223 = vpop.f32.mrb[0].mxu0
        %3224 = vmatprep.mubr.bf16.mxu0 0
        %3225 = vmatmul.mubr.bf16.gmra.mrb[0].mxu0 %v3069
        %v3226 = vpop.f32.mrb[0].mxu0
        %v3227 = vadd.f32 %v3027, %v3226
        %v3228 = vpop.f32.mrb[0].mxu0
        %v3229 = vpop.f32.mrb[0].mxu0
        %v3230 = vadd.f32 %v3027, %v3229
        %v3231 = vpop.f32.mrb[0].mxu0
        %3232 = vmatprep.mubr.bf16.mxu0 0
        %3233 = vmatmul.mubr.bf16.gmra.mrb[0].mxu0 %v3071
        %v3234 = vpop.f32.mrb[0].mxu0
        %v3235 = vadd.f32 %v3027, %v3234
        %v3236 = vpop.f32.mrb[0].mxu0
        %v3237 = vpop.f32.mrb[0].mxu0
        %v3238 = vadd.f32 %v3027, %v3237
        %v3239 = vpop.f32.mrb[0].mxu0
        %3240 = vdwg.mxu0
        %vm3241 = vcmp.ge.f32.partialorder %v3115, 0.0
        %vm3242 = vcmp.ge.f32.partialorder %v3118, 0.0
        %vm3243 = vcmp.ge.f32.partialorder %v3123, 0.0
        %vm3244 = vcmp.ge.f32.partialorder %v3126, 0.0
        %vm3245 = vcmp.ge.f32.partialorder %v3131, 0.0
        %vm3246 = vcmp.ge.f32.partialorder %v3134, 0.0
        %vm3247 = vcmp.ge.f32.partialorder %v3139, 0.0
        %vm3248 = vcmp.ge.f32.partialorder %v3142, 0.0
        %vm3249 = vcmp.ge.f32.partialorder %v3147, 0.0
        %vm3250 = vcmp.ge.f32.partialorder %v3150, 0.0
        %vm3251 = vcmp.ge.f32.partialorder %v3155, 0.0
        %vm3252 = vcmp.ge.f32.partialorder %v3158, 0.0
        %vm3253 = vcmp.ge.f32.partialorder %v3163, 0.0
        %vm3254 = vcmp.ge.f32.partialorder %v3166, 0.0
        %vm3255 = vcmp.ge.f32.partialorder %v3171, 0.0
        %vm3256 = vcmp.ge.f32.partialorder %v3174, 0.0
        %vm3257 = vcmp.ge.f32.partialorder %v3179, 0.0
        %vm3258 = vcmp.ge.f32.partialorder %v3182, 0.0
        %vm3259 = vcmp.ge.f32.partialorder %v3187, 0.0
        %vm3260 = vcmp.ge.f32.partialorder %v3190, 0.0
        %vm3261 = vcmp.ge.f32.partialorder %v3195, 0.0
        %vm3262 = vcmp.ge.f32.partialorder %v3198, 0.0
        %vm3263 = vcmp.ge.f32.partialorder %v3203, 0.0
        %vm3264 = vcmp.ge.f32.partialorder %v3206, 0.0
        %vm3265 = vcmp.ge.f32.partialorder %v3211, 0.0
        %vm3266 = vcmp.ge.f32.partialorder %v3214, 0.0
        %vm3267 = vcmp.ge.f32.partialorder %v3219, 0.0
        %vm3268 = vcmp.ge.f32.partialorder %v3222, 0.0
        %vm3269 = vcmp.ge.f32.partialorder %v3227, 0.0
        %vm3270 = vcmp.ge.f32.partialorder %v3230, 0.0
        %vm3271 = vcmp.ge.f32.partialorder %v3235, 0.0
        %vm3272 = vcmp.ge.f32.partialorder %v3238, 0.0
        %v3273 = vmul.f32 %v3115, 0.1
        %v3274 = vmul.f32 %v3118, 0.1
        %v3275 = vmul.f32 %v3123, 0.1
        %v3276 = vmul.f32 %v3126, 0.1
        %v3277 = vmul.f32 %v3131, 0.1
        %v3278 = vmul.f32 %v3134, 0.1
        %v3279 = vmul.f32 %v3139, 0.1
        %v3280 = vmul.f32 %v3142, 0.1
        %v3281 = vmul.f32 %v3147, 0.1
        %v3282 = vmul.f32 %v3150, 0.1
        %v3283 = vmul.f32 %v3155, 0.1
        %v3284 = vmul.f32 %v3158, 0.1
        %v3285 = vmul.f32 %v3163, 0.1
        %v3286 = vmul.f32 %v3166, 0.1
        %v3287 = vmul.f32 %v3171, 0.1
        %v3288 = vmul.f32 %v3174, 0.1
        %v3289 = vmul.f32 %v3179, 0.1
        %v3290 = vmul.f32 %v3182, 0.1
        %v3291 = vmul.f32 %v3187, 0.1
        %v3292 = vmul.f32 %v3190, 0.1
        %v3293 = vmul.f32 %v3195, 0.1
        %v3294 = vmul.f32 %v3198, 0.1
        %v3295 = vmul.f32 %v3203, 0.1
        %v3296 = vmul.f32 %v3206, 0.1
        %v3297 = vmul.f32 %v3211, 0.1
        %v3298 = vmul.f32 %v3214, 0.1
        %v3299 = vmul.f32 %v3219, 0.1
        %v3300 = vmul.f32 %v3222, 0.1
        %v3301 = vmul.f32 %v3227, 0.1
        %v3302 = vmul.f32 %v3230, 0.1
        %v3303 = vmul.f32 %v3235, 0.1
        %v3304 = vmul.f32 %v3238, 0.1
        %v3305 = vsel %vm3241, %v3115, %v3273
        %v3306 = vsel %vm3242, %v3118, %v3274
        %v3307 = vsel %vm3243, %v3123, %v3275
        %v3308 = vsel %vm3244, %v3126, %v3276
        %v3309 = vsel %vm3245, %v3131, %v3277
        %v3310 = vsel %vm3246, %v3134, %v3278
        %v3311 = vsel %vm3247, %v3139, %v3279
        %v3312 = vsel %vm3248, %v3142, %v3280
        %v3313 = vsel %vm3249, %v3147, %v3281
        %v3314 = vsel %vm3250, %v3150, %v3282
        %v3315 = vsel %vm3251, %v3155, %v3283
        %v3316 = vsel %vm3252, %v3158, %v3284
        %v3317 = vsel %vm3253, %v3163, %v3285
        %v3318 = vsel %vm3254, %v3166, %v3286
        %v3319 = vsel %vm3255, %v3171, %v3287
        %v3320 = vsel %vm3256, %v3174, %v3288
        %v3321 = vsel %vm3257, %v3179, %v3289
        %v3322 = vsel %vm3258, %v3182, %v3290
        %v3323 = vsel %vm3259, %v3187, %v3291
        %v3324 = vsel %vm3260, %v3190, %v3292
        %v3325 = vsel %vm3261, %v3195, %v3293
        %v3326 = vsel %vm3262, %v3198, %v3294
        %v3327 = vsel %vm3263, %v3203, %v3295
        %v3328 = vsel %vm3264, %v3206, %v3296
        %v3329 = vsel %vm3265, %v3211, %v3297
        %v3330 = vsel %vm3266, %v3214, %v3298
        %v3331 = vsel %vm3267, %v3219, %v3299
        %v3332 = vsel %vm3268, %v3222, %v3300
        %v3333 = vsel %vm3269, %v3227, %v3301
        %v3334 = vsel %vm3270, %v3230, %v3302
        %v3335 = vsel %vm3271, %v3235, %v3303
        %v3336 = vsel %vm3272, %v3238, %v3304
        %v3337 = vpack.c.bf16 %v3306, %v3305
        %v3338 = vpack.c.bf16 %v3308, %v3307
        %v3339 = vpack.c.bf16 %v3310, %v3309
        %v3340 = vpack.c.bf16 %v3312, %v3311
        %v3341 = vpack.c.bf16 %v3314, %v3313
        %v3342 = vpack.c.bf16 %v3316, %v3315
        %v3343 = vpack.c.bf16 %v3318, %v3317
        %v3344 = vpack.c.bf16 %v3320, %v3319
        %v3345 = vpack.c.bf16 %v3322, %v3321
        %v3346 = vpack.c.bf16 %v3324, %v3323
        %v3347 = vpack.c.bf16 %v3326, %v3325
        %v3348 = vpack.c.bf16 %v3328, %v3327
        %v3349 = vpack.c.bf16 %v3330, %v3329
        %v3350 = vpack.c.bf16 %v3332, %v3331
        %v3351 = vpack.c.bf16 %v3334, %v3333
        %v3352 = vpack.c.bf16 %v3336, %v3335
        %v3369 = vunpack.c.l.b16 %v3337
        %v3370 = vunpack.c.h.b16 %v3337
        %v3371 = vunpack.c.l.b16 %v3338
        %v3372 = vunpack.c.h.b16 %v3338
        %v3373 = vunpack.c.l.b16 %v3339
        %v3374 = vunpack.c.h.b16 %v3339
        %v3375 = vunpack.c.l.b16 %v3340
        %v3376 = vunpack.c.h.b16 %v3340
        %v3377 = vunpack.c.l.b16 %v3341
        %v3378 = vunpack.c.h.b16 %v3341
        %v3379 = vunpack.c.l.b16 %v3342
        %v3380 = vunpack.c.h.b16 %v3342
        %v3381 = vunpack.c.l.b16 %v3343
        %v3382 = vunpack.c.h.b16 %v3343
        %v3383 = vunpack.c.l.b16 %v3344
        %v3384 = vunpack.c.h.b16 %v3344
        %v3385 = vunpack.c.l.b16 %v3345
        %v3386 = vunpack.c.h.b16 %v3345
        %v3387 = vunpack.c.l.b16 %v3346
        %v3388 = vunpack.c.h.b16 %v3346
        %v3389 = vunpack.c.l.b16 %v3347
        %v3390 = vunpack.c.h.b16 %v3347
        %v3391 = vunpack.c.l.b16 %v3348
        %v3392 = vunpack.c.h.b16 %v3348
        %v3393 = vunpack.c.l.b16 %v3349
        %v3394 = vunpack.c.h.b16 %v3349
        %v3395 = vunpack.c.l.b16 %v3350
        %v3396 = vunpack.c.h.b16 %v3350
        %v3397 = vunpack.c.l.b16 %v3351
        %v3398 = vunpack.c.h.b16 %v3351
        %v3399 = vunpack.c.l.b16 %v3352
        %v3400 = vunpack.c.h.b16 %v3352
        %v3401 = vpack.c.b16 %v3369, %v3369
        %v3402 = vpack.c.b16 %v3370, %v3370
        %v3403 = vpack.c.b16 %v3371, %v3371
        %v3404 = vpack.c.b16 %v3372, %v3372
        %v3405 = vpack.c.b16 %v3373, %v3373
        %v3406 = vpack.c.b16 %v3374, %v3374
        %v3407 = vpack.c.b16 %v3375, %v3375
        %v3408 = vpack.c.b16 %v3376, %v3376
        %v3409 = vpack.c.b16 %v3377, %v3377
        %v3410 = vpack.c.b16 %v3378, %v3378
        %v3411 = vpack.c.b16 %v3379, %v3379
        %v3412 = vpack.c.b16 %v3380, %v3380
        %v3413 = vpack.c.b16 %v3381, %v3381
        %v3414 = vpack.c.b16 %v3382, %v3382
        %v3415 = vpack.c.b16 %v3383, %v3383
        %v3416 = vpack.c.b16 %v3384, %v3384
        %v3417 = vpack.c.b16 %v3385, %v3385
        %v3418 = vpack.c.b16 %v3386, %v3386
        %v3419 = vpack.c.b16 %v3387, %v3387
        %v3420 = vpack.c.b16 %v3388, %v3388
        %v3421 = vpack.c.b16 %v3389, %v3389
        %v3422 = vpack.c.b16 %v3390, %v3390
        %v3423 = vpack.c.b16 %v3391, %v3391
        %v3424 = vpack.c.b16 %v3392, %v3392
        %v3425 = vpack.c.b16 %v3393, %v3393
        %v3426 = vpack.c.b16 %v3394, %v3394
        %v3427 = vpack.c.b16 %v3395, %v3395
        %v3428 = vpack.c.b16 %v3396, %v3396
        %v3429 = vpack.c.b16 %v3397, %v3397
        %v3430 = vpack.c.b16 %v3398, %v3398
        %v3431 = vpack.c.b16 %v3399, %v3399
        %v3432 = vpack.c.b16 %v3400, %v3400
        %vm3465 = vcmask 257024
        %3466 = vst.msk [vmem:[%s163] sm:$0xf] %vm3465, %v3401
        %3467 = vst.msk [vmem:[%s163 + $0x4] sm:$0xf] %vm3465, %v3402
        %3468 = vst.msk [vmem:[%s163 + $0x8] sm:$0xf] %vm3465, %v3403
        %3469 = vst.msk [vmem:[%s163 + $0xc] sm:$0xf] %vm3465, %v3404
        %3470 = vst.msk [vmem:[%s163 + $0x10] sm:$0xf] %vm3465, %v3405
        %3471 = vst.msk [vmem:[%s163 + $0x14] sm:$0xf] %vm3465, %v3406
        %3472 = vst.msk [vmem:[%s163 + $0x18] sm:$0xf] %vm3465, %v3407
        %3473 = vst.msk [vmem:[%s163 + $0x1c] sm:$0xf] %vm3465, %v3408
        %3474 = vst.msk [vmem:[%s163 + $0x20] sm:$0xf] %vm3465, %v3409
        %3475 = vst.msk [vmem:[%s163 + $0x24] sm:$0xf] %vm3465, %v3410
        %3476 = vst.msk [vmem:[%s163 + $0x28] sm:$0xf] %vm3465, %v3411
        %3477 = vst.msk [vmem:[%s163 + $0x2c] sm:$0xf] %vm3465, %v3412
        %3478 = vst.msk [vmem:[%s163 + $0x30] sm:$0xf] %vm3465, %v3413
        %3479 = vst.msk [vmem:[%s163 + $0x34] sm:$0xf] %vm3465, %v3414
        %3480 = vst.msk [vmem:[%s163 + $0x38] sm:$0xf] %vm3465, %v3415
        %3481 = vst.msk [vmem:[%s163 + $0x3c] sm:$0xf] %vm3465, %v3416
        %3482 = vst.msk [vmem:[%s163 + $0x40] sm:$0xf] %vm3465, %v3417
        %3483 = vst.msk [vmem:[%s163 + $0x44] sm:$0xf] %vm3465, %v3418
        %3484 = vst.msk [vmem:[%s163 + $0x48] sm:$0xf] %vm3465, %v3419
        %3485 = vst.msk [vmem:[%s163 + $0x4c] sm:$0xf] %vm3465, %v3420
        %3486 = vst.msk [vmem:[%s163 + $0x50] sm:$0xf] %vm3465, %v3421
        %3487 = vst.msk [vmem:[%s163 + $0x54] sm:$0xf] %vm3465, %v3422
        %3488 = vst.msk [vmem:[%s163 + $0x58] sm:$0xf] %vm3465, %v3423
        %3489 = vst.msk [vmem:[%s163 + $0x5c] sm:$0xf] %vm3465, %v3424
        %3490 = vst.msk [vmem:[%s163 + $0x60] sm:$0xf] %vm3465, %v3425
        %3491 = vst.msk [vmem:[%s163 + $0x64] sm:$0xf] %vm3465, %v3426
        %3492 = vst.msk [vmem:[%s163 + $0x68] sm:$0xf] %vm3465, %v3427
        %3493 = vst.msk [vmem:[%s163 + $0x6c] sm:$0xf] %vm3465, %v3428
        %3494 = vst.msk [vmem:[%s163 + $0x70] sm:$0xf] %vm3465, %v3429
        %3495 = vst.msk [vmem:[%s163 + $0x74] sm:$0xf] %vm3465, %v3430
        %3496 = vst.msk [vmem:[%s163 + $0x78] sm:$0xf] %vm3465, %v3431
        %3497 = vst.msk [vmem:[%s163 + $0x7c] sm:$0xf] %vm3465, %v3432
        %s3498 = sand.u32 %s93, 1
        %s3499 = scalar_lea.sflag [#allocation3], %s3498
        %s3500 = sand.u32 %s93, 1
        %s3501 = smul.addr %s3500, 128
        %s3502 = scalar_lea.vmem [#allocation2], %s3501
        // Predicated region
        $region33: #{conv2d.1} parent=31 // pred_check
          %p3503 = pneg %p103
        $region34: #{conv2d.1} parent=31 // pred_check_branch
          %3505 = sbr.rel (%p3503) target = $region36
        $region35: #{conv2d.1} parent=31 // pred_region
          %s3507 = ssub.s32 2048, 2048
          %3508 = vsyncadd %s3499, %s3507
          %s3509 = smul.addr %s17, 32
          %s3510 = smul.addr %s3509, 64
          %s3511 = scalar_lea.hbm %s3, %s3510
          %s3512 = sshll.u32 %s3502, 4
          %s3513 = int_to_ptr.vmem [resolvable:$true] %s3512
          %3518 = dma.vmem_to_hbm [thread:$0]  %s3513, 2048, %s3511, %s3499, 64, 64, 4
        $region36: #{conv2d.1} parent=31 // pred_fallthru
          _
      $region32: #{conv2d.1} parent=5 // pred_fallthru
        _
      %p3519 = scmp.le.s32.totalorder 2, %s12
      // Predicated region
      $region37: #{conv2d.1} parent=5 // pred_check
        %p3520 = pneg %p3519
      $region38: #{conv2d.1} parent=5 // pred_check_branch
        %3522 = sbr.rel (%p3520) target = $region40
      $region39: #{conv2d.1} parent=5 // pred_region
        %s3523 = ssub.s32 %s12, 2
        // Predicated region
        $region41: #{conv2d.1} parent=39 // pred_check
          %p3524 = pneg %p109
        $region42: #{conv2d.1} parent=39 // pred_check_branch
          %3526 = sbr.rel (%p3524) target = $region44
        $region43: #{conv2d.1} parent=39 // pred_region
          %s3527 = sand.u32 %s94, 1
          %s3528 = scalar_lea.sflag [#allocation3], %s3527
          %s3529 = sand.u32 %s94, 1
          %s3530 = smul.addr %s3529, 128
          %s3531 = scalar_lea.vmem [#allocation2], %s3530
          %3532 = dma.done %s3528, 2048
        $region44: #{conv2d.1} parent=39 // pred_fallthru
          _
      $region40: #{conv2d.1} parent=5 // pred_fallthru
        _
    $region6: #{conv2d.1} parent=1 // loop_footer
      %s16 = sadd.s32 1, %s12
    $region7: #{conv2d.1} parent=1 // loop_footer_branch
      %11 = sbr.rel target = $region3
    $region8: #{conv2d.1} parent=1 // loop_exit
      _
    %3533 = vsyncpa [#allocation3], 1
    %s3534 = scalar_lea.sflag [#allocation3], 1
    %3535 = vsyncpa %s3534, 1

</llo_original>
